<compile_context>
chip_gen: v7x
topology: tpu7x:2x2x1
jax: 0.10.0
libtpu: 0.0.40
codegen_flags: <defaults>
</compile_context>

<pallas_src>
import jax
import jax.numpy as jnp
from jax.experimental import pallas as pl
from jax.experimental.pallas import tpu as pltpu

DIM1 = 16            # args.dim1
DIM2 = 16            # args.dim2
VDIM = DIM1 + DIM2   # 32
IB_J = 32            # IB bottleneck width per view


def _round_up(n, m):
    return ((n + m - 1) // m) * m


def _log_softmax(x):
    m = jnp.max(x, axis=1, keepdims=True)
    s = x - m
    return s - jnp.log(jnp.sum(jnp.exp(s), axis=1, keepdims=True))


# ---------------------------------------------------------------------------
# Kernel
# ---------------------------------------------------------------------------
def net_kernel(x_ref, wa_ref, wb1_ref, wb2_ref, we_ref,
               wd1_ref, wd2_ref, wd3_ref, bias_ref, out_ref):
    f32 = jnp.float32
    bf16 = jnp.bfloat16
    relu = lambda z: jnp.maximum(z, 0.0)

    def mm(x, w_ref):
        return jnp.dot(x.astype(bf16), w_ref[...], preferred_element_type=f32)

    x = x_ref[...]                                          # (TB, 1024) bf16

    # 1) fused feature-extraction Linear(392->256), both views (block-diag, K padded to 512/view)
    f = relu(mm(x, wa_ref) + bias_ref[0:1, :])              # (TB, 512) = [f1 | f2]

    # 2) fused feature-extraction Linear(256->256), both views (block-diag)
    f = relu(mm(f, wb1_ref) + bias_ref[1:2, :])             # (TB, 512)

    # 3) fused IB heads -> (TB, 128) = [mu1_pre | mu2_pre | sig1_pre | sig2_pre]
    h = mm(f, wb2_ref) + bias_ref[2:3, 0:128]
    mu = 10.0 * jnp.tanh(h[:, 0:64])                        # [mu1 | mu2]
    z = h[:, 64:128]                                        # pre-sigmoid
    sig = jax.nn.sigmoid(z)                                 # [sigma1 | sigma2]
    # stable log(sigma^2) = 2 * log_sigmoid(z)  (avoids log(0) -> -inf)
    log_var = -2.0 * (jnp.maximum(-z, 0.0) + jnp.log1p(jnp.exp(-jnp.abs(z))))
    # per-row KL contribution: sum_j [log(var) - var - mu^2] over both views;
    # the batch reduction and -0.5*(... + 2J)/B finalization happen in the wrapper.
    kl_r = jnp.sum(log_var - sig * sig - mu * mu, axis=1, keepdims=True)   # (TB, 1)

    # 4) eval mode: feature = mu. Fused encoders (block-diag) + straight-through quantization.
    # TODO(synk): training-mode Gaussian reparameterization noise is not implemented.
    e = jax.nn.sigmoid(mm(mu, we_ref) + bias_ref[3:4, 0:64])   # (TB, 64)
    vsf = jnp.round(e) - 0.5                                   # [vsf1 | vsf2]

    # 5) fused decoder layer 1: [vsd1a | vsd2a | d1a | d2a] (block-structured)
    hd = relu(mm(vsf, wd1_ref) + bias_ref[4:5, 0:256])         # (TB, 256)

    # 6) fused decoder layer 2: [d1b | d2b | vsd1b | vsd2b]
    s2 = mm(hd, wd2_ref) + bias_ref[5:6, 0:256]                # (TB, 256)
    hd2 = relu(s2[:, 0:128])                                   # [h_d1b | h_d2b]
    vs1 = s2[:, 128:138]                                       # view_specific_output1 logits
    vs2 = s2[:, 144:154]                                       # view_specific_output2 logits

    # 7) final heads: [d1c | d2c]
    s3 = mm(hd2, wd3_ref) + bias_ref[6:7, 0:32]                # (TB, 32)
    t1 = s3[:, 0:10]
    t2 = s3[:, 16:26]

    # single lane-dense (TB, 128) output store
    seg = lambda v: jnp.pad(v, ((0, 0), (0, 16 - v.shape[1])))
    tile = jnp.concatenate(
        [seg(_log_softmax(t2)),                                # cols  0:16
         seg(_log_softmax(t1)),                                # cols 16:32
         seg(_log_softmax(vs1)),                               # cols 32:48
         seg(_log_softmax(vs2)),                               # cols 48:64
         jnp.pad(kl_r, ((0, 0), (0, 63)))],                    # col 64 + filler
        axis=1)
    out_ref[...] = tile


# ---------------------------------------------------------------------------
# Parameter init / packing
# ---------------------------------------------------------------------------
_LAYERS = [
    ("fe1a", 392, 256), ("fe1b", 256, 256),
    ("fe2a", 392, 256), ("fe2b", 256, 256),
    ("mu1", 256, IB_J), ("mu2", 256, IB_J),
    ("sig1", 256, IB_J), ("sig2", 256, IB_J),
    ("e11", IB_J, DIM1), ("e12", IB_J, DIM2),
    ("e21", IB_J, DIM1), ("e22", IB_J, DIM2),
    ("vsd1a", VDIM, 64), ("vsd1b", 64, 10),
    ("vsd2a", VDIM, 64), ("vsd2b", 64, 10),
    ("d1a", 2 * DIM1, 64), ("d1b", 64, 64), ("d1c", 64, 10),
    ("d2a", 2 * VDIM, 64), ("d2b", 64, 64), ("d2c", 64, 10),
]


def init_params(key):
    """PyTorch-Linear-style uniform init, packed into 7 aligned bf16 slabs + 1 f32 bias table."""
    raw = {}
    for name, fi, fo in _LAYERS:
        key, kw, kb = jax.random.split(key, 3)
        bound = 1.0 / float(fi) ** 0.5
        raw[name] = (
            jax.random.uniform(kw, (fi, fo), jnp.float32, -bound, bound),
            jax.random.uniform(kb, (fo,), jnp.float32, -bound, bound),
        )
    return pack_params(raw)


def pack_params(raw):
    W = lambda n: raw[n][0]
    Bv = lambda n: raw[n][1]

    def place(shape, entries):
        m = jnp.zeros(shape, jnp.float32)
        for r0, c0, w in entries:
            m = m.at[r0:r0 + w.shape[0], c0:c0 + w.shape[1]].set(w)
        return m.astype(jnp.bfloat16)

    # 1) fused fe Linear1: rows 0:392 <- view1, rows 512:904 <- view2
    wa = place((1024, 512), [(0, 0, W("fe1a")), (512, 256, W("fe2a"))])

    # 2) fused fe Linear2 (block-diag)
    wb1 = place((512, 512), [(0, 0, W("fe1b")), (256, 256, W("fe2b"))])

    # 3) fused IB heads -> [mu1 | mu2 | sig1 | sig2]
    wb2 = place((512, 128), [(0, 0, W("mu1")), (256, 32, W("mu2")),
                             (0, 64, W("sig1")), (256, 96, W("sig2"))])

    # 4) fused encoders: rows 0:32 <- mu1, rows 32:64 <- mu2
    we = place((64, 64), [(0, 0, W("e11")), (0, DIM1, W("e12")),
                          (32, VDIM, W("e21")), (32, VDIM + DIM1, W("e22"))])

    # 5) decoder stage 1 on X = [vsf1 | vsf2]
    wd1 = place((64, 256), [(0, 0, W("vsd1a")),
                            (32, 64, W("vsd2a")),
                            (0, 128, W("d1a")[0:DIM1]),      # rT1 = [vsf1[:, :16], vsf2[:, :16]]
                            (32, 128, W("d1a")[DIM1:2 * DIM1]),
                            (0, 192, W("d2a"))])             # rT2 = [vsf1 | vsf2]

    # 6) decoder stage 2 on [h_vsd1 | h_vsd2 | h_d1 | h_d2]
    wd2 = place((256, 256), [(128, 0, W("d1b")), (192, 64, W("d2b")),
                             (0, 128, W("vsd1b")), (64, 144, W("vsd2b"))])

    # 7) final heads on [h_d1b | h_d2b]
    wd3 = place((128, 32), [(0, 0, W("d1c")), (64, 16, W("d2c"))])

    bias = jnp.zeros((8, 512), jnp.float32)

    def set_row(b, r, pieces):
        for c0, v in pieces:
            b = b.at[r, c0:c0 + v.shape[0]].set(v)
        return b

    bias = set_row(bias, 0, [(0, Bv("fe1a")), (256, Bv("fe2a"))])
    bias = set_row(bias, 1, [(0, Bv("fe1b")), (256, Bv("fe2b"))])
    bias = set_row(bias, 2, [(0, Bv("mu1")), (32, Bv("mu2")),
                             (64, Bv("sig1")), (96, Bv("sig2"))])
    bias = set_row(bias, 3, [(0, Bv("e11")), (DIM1, Bv("e12")),
                             (VDIM, Bv("e21")), (VDIM + DIM1, Bv("e22"))])
    bias = set_row(bias, 4, [(0, Bv("vsd1a")), (64, Bv("vsd2a")),
                             (128, Bv("d1a")), (192, Bv("d2a"))])
    bias = set_row(bias, 5, [(0, Bv("d1b")), (64, Bv("d2b")),
                             (128, Bv("vsd1b")), (144, Bv("vsd2b"))])
    bias = set_row(bias, 6, [(0, Bv("d1c")), (16, Bv("d2c"))])

    return (wa, wb1, wb2, we, wd1, wd2, wd3, bias)


# ---------------------------------------------------------------------------
# Wrapper
# ---------------------------------------------------------------------------
def net_forward(x, params):
    """x: NCHW float32 [B, 1, 28, 28]. Returns (log_softmax T2, T1, vs1, vs2, KL[1,1])."""
    wa, wb1, wb2, we, wd1, wd2, wd3, bias = params
    B = x.shape[0]
    v1 = x[:, :, 0:14, :].reshape(B, 392)
    v2 = x[:, :, 14:, :].reshape(B, 392)
    # single packed, lane-aligned input: [view1 pad->512 | view2 pad->512]
    xin = jnp.concatenate([jnp.pad(v1, ((0, 0), (0, 120))),
                           jnp.pad(v2, ((0, 0), (0, 120)))],
                          axis=1).astype(jnp.bfloat16)       # (B, 1024)

    # batch tile: large (amortizes per-step overhead) but guarantees >=2 grid
    # steps for B >= 16 so both v7x TensorCores get work.
    TB = min(512, _round_up((B + 1) // 2, 8))
    Bp = _round_up(B, TB)
    if Bp != B:
        xin = jnp.pad(xin, ((0, Bp - B), (0, 0)))

    resident = lambda a: pl.BlockSpec(a.shape, lambda i: (0, 0))

    out = pl.pallas_call(
        net_kernel,
        out_shape=jax.ShapeDtypeStruct((Bp, 128), jnp.float32),
        grid_spec=pltpu.PrefetchScalarGridSpec(
            num_scalar_prefetch=0,
            grid=(Bp // TB,),
            in_specs=[
                pl.BlockSpec((TB, 1024), lambda i: (i, 0)),  # packed input tile
                resident(wa), resident(wb1), resident(wb2),  # weights stay VMEM-resident
                resident(we), resident(wd1), resident(wd2), resident(wd3),
                resident(bias),
            ],
            out_specs=pl.BlockSpec((TB, 128), lambda i: (i, 0)),
        ),
        compiler_params=pltpu.CompilerParams(
            dimension_semantics=("parallel",)),
    )(xin, wa, wb1, wb2, we, wd1, wd2, wd3, bias)

    t2_ls = out[:B, 0:10]
    t1_ls = out[:B, 16:26]
    vs1_ls = out[:B, 32:42]
    vs2_ls = out[:B, 48:58]
    kl = (-0.5 * (jnp.sum(out[:B, 64]) / B + 2.0 * IB_J)).reshape(1, 1)
    return t2_ls, t1_ls, vs1_ls, vs2_ls, kl


if __name__ == "__main__":
    key = jax.random.PRNGKey(0)
    key, kx, kp = jax.random.split(key, 3)

    B = 8
    x = jax.random.normal(kx, (B, 1, 28, 28), jnp.float32)
    params = init_params(kp)

    outs = jax.jit(net_forward)(x, params)
    outs = jax.block_until_ready(outs)

    t2_ls, t1_ls, vs1_ls, vs2_ls, kl = outs
    assert t2_ls.shape == (B, 10) and t1_ls.shape == (B, 10)
    assert vs1_ls.shape == (B, 10) and vs2_ls.shape == (B, 10)
    assert kl.shape == (1, 1)
    assert bool(jnp.isfinite(kl[0, 0]))
    # log-softmax rows must sum (in prob space) to ~1
    for o in (t2_ls, t1_ls, vs1_ls, vs2_ls):
        assert bool(jnp.all(jnp.abs(jnp.sum(jnp.exp(o), axis=1) - 1.0) < 1e-4))
    print("KERNEL_OK")
</pallas_src>

<mosaic_0001>
module attributes {stable_mosaic.version = 11 : i64} {
  func.func @net_kernel(%arg0: i32, %arg1: memref<8x1024xbf16, #tpu.memory_space<vmem>>, %arg2: memref<1024x512xbf16, #tpu.memory_space<vmem>>, %arg3: memref<512x512xbf16, #tpu.memory_space<vmem>>, %arg4: memref<512x128xbf16, #tpu.memory_space<vmem>>, %arg5: memref<64x64xbf16, #tpu.memory_space<vmem>>, %arg6: memref<64x256xbf16, #tpu.memory_space<vmem>>, %arg7: memref<256x256xbf16, #tpu.memory_space<vmem>>, %arg8: memref<128x32xbf16, #tpu.memory_space<vmem>>, %arg9: memref<8x512xf32, #tpu.memory_space<vmem>>, %arg10: memref<8x128xf32, #tpu.memory_space<vmem>>) attributes {dimension_semantics = [#tpu.dimension_semantics<parallel>], iteration_bounds = array<i64: 1>, scalar_prefetch = 0 : i64, scratch_operands = 0 : i64, tpu.core_type = #tpu.core_type<tc>, window_params = [{transform_indices = @transform_0, window_bounds = array<i64: 8, 1024>}, {pipeline_mode = #tpu.pipeline_mode<synchronous>, transform_indices = @transform_1, window_bounds = array<i64: 1024, 512>}, {pipeline_mode = #tpu.pipeline_mode<synchronous>, transform_indices = @transform_2, window_bounds = array<i64: 512, 512>}, {pipeline_mode = #tpu.pipeline_mode<synchronous>, transform_indices = @transform_3, window_bounds = array<i64: 512, 128>}, {pipeline_mode = #tpu.pipeline_mode<synchronous>, transform_indices = @transform_4, window_bounds = array<i64: 64, 64>}, {pipeline_mode = #tpu.pipeline_mode<synchronous>, transform_indices = @transform_5, window_bounds = array<i64: 64, 256>}, {pipeline_mode = #tpu.pipeline_mode<synchronous>, transform_indices = @transform_6, window_bounds = array<i64: 256, 256>}, {pipeline_mode = #tpu.pipeline_mode<synchronous>, transform_indices = @transform_7, window_bounds = array<i64: 128, 32>}, {pipeline_mode = #tpu.pipeline_mode<synchronous>, transform_indices = @transform_8, window_bounds = array<i64: 8, 512>}, {transform_indices = @transform_9, window_bounds = array<i64: 8, 128>}]} {
    %c0 = arith.constant 0 : index
    %c0_0 = arith.constant 0 : index
    %0 = vector.load %arg1[%c0, %c0_0] : memref<8x1024xbf16, #tpu.memory_space<vmem>>, vector<8x1024xbf16>
    %c0_1 = arith.constant 0 : index
    %c0_2 = arith.constant 0 : index
    %1 = vector.load %arg2[%c0_1, %c0_2] : memref<1024x512xbf16, #tpu.memory_space<vmem>>, vector<1024x512xbf16>
    %cst = arith.constant dense<0.000000e+00> : vector<8x512xf32>
    %2 = tpu.matmul %0, %1, %cst {dimension_numbers = #tpu.dot_dimension_numbers<[1], [0], [0], [1], [0, 0, 1, 1], [], []>} : vector<8x1024xbf16>, vector<1024x512xbf16>, vector<8x512xf32> -> vector<8x512xf32>
    %c0_3 = arith.constant 0 : index
    %c0_4 = arith.constant 0 : index
    %3 = vector.load %arg9[%c0_3, %c0_4] : memref<8x512xf32, #tpu.memory_space<vmem>>, vector<1x512xf32>
    %4 = vector.broadcast %3 : vector<1x512xf32> to vector<8x512xf32>
    %5 = arith.addf %2, %4 : vector<8x512xf32>
    %cst_5 = arith.constant 0.000000e+00 : f32
    %6 = vector.broadcast %cst_5 : f32 to vector<8x512xf32>
    %7 = arith.maximumf %5, %6 : vector<8x512xf32>
    %8 = arith.truncf %7 : vector<8x512xf32> to vector<8x512xbf16>
    %c0_6 = arith.constant 0 : index
    %c0_7 = arith.constant 0 : index
    %9 = vector.load %arg3[%c0_6, %c0_7] : memref<512x512xbf16, #tpu.memory_space<vmem>>, vector<512x512xbf16>
    %cst_8 = arith.constant dense<0.000000e+00> : vector<8x512xf32>
    %10 = tpu.matmul %8, %9, %cst_8 {dimension_numbers = #tpu.dot_dimension_numbers<[1], [0], [0], [1], [0, 0, 1, 1], [], []>} : vector<8x512xbf16>, vector<512x512xbf16>, vector<8x512xf32> -> vector<8x512xf32>
    %c1 = arith.constant 1 : index
    %c0_9 = arith.constant 0 : index
    %11 = vector.load %arg9[%c1, %c0_9] : memref<8x512xf32, #tpu.memory_space<vmem>>, vector<1x512xf32>
    %12 = vector.broadcast %11 : vector<1x512xf32> to vector<8x512xf32>
    %13 = arith.addf %10, %12 : vector<8x512xf32>
    %cst_10 = arith.constant 0.000000e+00 : f32
    %14 = vector.broadcast %cst_10 : f32 to vector<8x512xf32>
    %15 = arith.maximumf %13, %14 : vector<8x512xf32>
    %16 = arith.truncf %15 : vector<8x512xf32> to vector<8x512xbf16>
    %c0_11 = arith.constant 0 : index
    %c0_12 = arith.constant 0 : index
    %17 = vector.load %arg4[%c0_11, %c0_12] : memref<512x128xbf16, #tpu.memory_space<vmem>>, vector<512x128xbf16>
    %cst_13 = arith.constant dense<0.000000e+00> : vector<8x128xf32>
    %18 = tpu.matmul %16, %17, %cst_13 {dimension_numbers = #tpu.dot_dimension_numbers<[1], [0], [0], [1], [0, 0, 1, 1], [], []>} : vector<8x512xbf16>, vector<512x128xbf16>, vector<8x128xf32> -> vector<8x128xf32>
    %c2 = arith.constant 2 : index
    %c0_14 = arith.constant 0 : index
    %19 = vector.load %arg9[%c2, %c0_14] : memref<8x512xf32, #tpu.memory_space<vmem>>, vector<1x128xf32>
    %20 = vector.broadcast %19 : vector<1x128xf32> to vector<8x128xf32>
    %21 = arith.addf %18, %20 : vector<8x128xf32>
    %22 = vector.extract_strided_slice %21 {offsets = [0, 0], sizes = [8, 64], strides = [1, 1]} : vector<8x128xf32> to vector<8x64xf32>
    %23 = math.tanh %22 : vector<8x64xf32>
    %cst_15 = arith.constant 1.000000e+01 : f32
    %24 = vector.broadcast %cst_15 : f32 to vector<8x64xf32>
    %25 = arith.mulf %24, %23 : vector<8x64xf32>
    %26 = vector.extract_strided_slice %21 {offsets = [0, 64], sizes = [8, 64], strides = [1, 1]} : vector<8x128xf32> to vector<8x64xf32>
    %27 = arith.negf %26 : vector<8x64xf32>
    %28 = math.exp %27 : vector<8x64xf32>
    %cst_16 = arith.constant 1.000000e+00 : f32
    %29 = vector.broadcast %cst_16 : f32 to vector<8x64xf32>
    %30 = arith.addf %29, %28 : vector<8x64xf32>
    %31 = arith.divf %29, %30 : vector<8x64xf32>
    %cst_17 = arith.constant 0.000000e+00 : f32
    %32 = vector.broadcast %cst_17 : f32 to vector<8x64xf32>
    %33 = arith.subf %32, %26 : vector<8x64xf32>
    %cst_18 = arith.constant 0.000000e+00 : f32
    %34 = vector.broadcast %cst_18 : f32 to vector<8x64xf32>
    %35 = arith.maximumf %33, %34 : vector<8x64xf32>
    %36 = math.absf %26 : vector<8x64xf32>
    %cst_19 = arith.constant 0.000000e+00 : f32
    %37 = vector.broadcast %cst_19 : f32 to vector<8x64xf32>
    %38 = arith.subf %37, %36 : vector<8x64xf32>
    %39 = math.exp %38 : vector<8x64xf32>
    %40 = math.log1p %39 : vector<8x64xf32>
    %41 = arith.addf %35, %40 : vector<8x64xf32>
    %cst_20 = arith.constant -2.000000e+00 : f32
    %42 = vector.broadcast %cst_20 : f32 to vector<8x64xf32>
    %43 = arith.mulf %42, %41 : vector<8x64xf32>
    %44 = arith.mulf %31, %31 : vector<8x64xf32>
    %45 = arith.subf %43, %44 : vector<8x64xf32>
    %46 = arith.mulf %25, %25 : vector<8x64xf32>
    %47 = arith.subf %45, %46 : vector<8x64xf32>
    %cst_21 = arith.constant dense<0.000000e+00> : vector<8xf32>
    %48 = vector.multi_reduction <add>, %47, %cst_21 [1] : vector<8x64xf32> to vector<8xf32>
    %49 = vector.shape_cast %48 : vector<8xf32> to vector<8x1xf32>
    %50 = arith.truncf %25 : vector<8x64xf32> to vector<8x64xbf16>
    %c0_22 = arith.constant 0 : index
    %c0_23 = arith.constant 0 : index
    %51 = vector.load %arg5[%c0_22, %c0_23] : memref<64x64xbf16, #tpu.memory_space<vmem>>, vector<64x64xbf16>
    %cst_24 = arith.constant dense<0.000000e+00> : vector<8x64xf32>
    %52 = tpu.matmul %50, %51, %cst_24 {dimension_numbers = #tpu.dot_dimension_numbers<[1], [0], [0], [1], [0, 0, 1, 1], [], []>} : vector<8x64xbf16>, vector<64x64xbf16>, vector<8x64xf32> -> vector<8x64xf32>
    %c3 = arith.constant 3 : index
    %c0_25 = arith.constant 0 : index
    %53 = vector.load %arg9[%c3, %c0_25] : memref<8x512xf32, #tpu.memory_space<vmem>>, vector<1x64xf32>
    %54 = vector.broadcast %53 : vector<1x64xf32> to vector<8x64xf32>
    %55 = arith.addf %52, %54 : vector<8x64xf32>
    %56 = arith.negf %55 : vector<8x64xf32>
    %57 = math.exp %56 : vector<8x64xf32>
    %cst_26 = arith.constant 1.000000e+00 : f32
    %58 = vector.broadcast %cst_26 : f32 to vector<8x64xf32>
    %59 = arith.addf %58, %57 : vector<8x64xf32>
    %60 = arith.divf %58, %59 : vector<8x64xf32>
    %61 = math.roundeven %60 : vector<8x64xf32>
    %cst_27 = arith.constant 5.000000e-01 : f32
    %62 = vector.broadcast %cst_27 : f32 to vector<8x64xf32>
    %63 = arith.subf %61, %62 : vector<8x64xf32>
    %64 = arith.truncf %63 : vector<8x64xf32> to vector<8x64xbf16>
    %c0_28 = arith.constant 0 : index
    %c0_29 = arith.constant 0 : index
    %65 = vector.load %arg6[%c0_28, %c0_29] : memref<64x256xbf16, #tpu.memory_space<vmem>>, vector<64x256xbf16>
    %cst_30 = arith.constant dense<0.000000e+00> : vector<8x256xf32>
    %66 = tpu.matmul %64, %65, %cst_30 {dimension_numbers = #tpu.dot_dimension_numbers<[1], [0], [0], [1], [0, 0, 1, 1], [], []>} : vector<8x64xbf16>, vector<64x256xbf16>, vector<8x256xf32> -> vector<8x256xf32>
    %c4 = arith.constant 4 : index
    %c0_31 = arith.constant 0 : index
    %67 = vector.load %arg9[%c4, %c0_31] : memref<8x512xf32, #tpu.memory_space<vmem>>, vector<1x256xf32>
    %68 = vector.broadcast %67 : vector<1x256xf32> to vector<8x256xf32>
    %69 = arith.addf %66, %68 : vector<8x256xf32>
    %cst_32 = arith.constant 0.000000e+00 : f32
    %70 = vector.broadcast %cst_32 : f32 to vector<8x256xf32>
    %71 = arith.maximumf %69, %70 : vector<8x256xf32>
    %72 = arith.truncf %71 : vector<8x256xf32> to vector<8x256xbf16>
    %c0_33 = arith.constant 0 : index
    %c0_34 = arith.constant 0 : index
    %73 = vector.load %arg7[%c0_33, %c0_34] : memref<256x256xbf16, #tpu.memory_space<vmem>>, vector<256x256xbf16>
    %cst_35 = arith.constant dense<0.000000e+00> : vector<8x256xf32>
    %74 = tpu.matmul %72, %73, %cst_35 {dimension_numbers = #tpu.dot_dimension_numbers<[1], [0], [0], [1], [0, 0, 1, 1], [], []>} : vector<8x256xbf16>, vector<256x256xbf16>, vector<8x256xf32> -> vector<8x256xf32>
    %c5 = arith.constant 5 : index
    %c0_36 = arith.constant 0 : index
    %75 = vector.load %arg9[%c5, %c0_36] : memref<8x512xf32, #tpu.memory_space<vmem>>, vector<1x256xf32>
    %76 = vector.broadcast %75 : vector<1x256xf32> to vector<8x256xf32>
    %77 = arith.addf %74, %76 : vector<8x256xf32>
    %78 = vector.extract_strided_slice %77 {offsets = [0, 0], sizes = [8, 128], strides = [1, 1]} : vector<8x256xf32> to vector<8x128xf32>
    %cst_37 = arith.constant 0.000000e+00 : f32
    %79 = vector.broadcast %cst_37 : f32 to vector<8x128xf32>
    %80 = arith.maximumf %78, %79 : vector<8x128xf32>
    %81 = vector.extract_strided_slice %77 {offsets = [0, 128], sizes = [8, 10], strides = [1, 1]} : vector<8x256xf32> to vector<8x10xf32>
    %82 = vector.extract_strided_slice %77 {offsets = [0, 144], sizes = [8, 10], strides = [1, 1]} : vector<8x256xf32> to vector<8x10xf32>
    %83 = arith.truncf %80 : vector<8x128xf32> to vector<8x128xbf16>
    %c0_38 = arith.constant 0 : index
    %c0_39 = arith.constant 0 : index
    %84 = vector.load %arg8[%c0_38, %c0_39] : memref<128x32xbf16, #tpu.memory_space<vmem>>, vector<128x32xbf16>
    %cst_40 = arith.constant dense<0.000000e+00> : vector<8x32xf32>
    %85 = tpu.matmul %83, %84, %cst_40 {dimension_numbers = #tpu.dot_dimension_numbers<[1], [0], [0], [1], [0, 0, 1, 1], [], []>} : vector<8x128xbf16>, vector<128x32xbf16>, vector<8x32xf32> -> vector<8x32xf32>
    %c6 = arith.constant 6 : index
    %c0_41 = arith.constant 0 : index
    %86 = vector.load %arg9[%c6, %c0_41] : memref<8x512xf32, #tpu.memory_space<vmem>>, vector<1x32xf32>
    %87 = vector.broadcast %86 : vector<1x32xf32> to vector<8x32xf32>
    %88 = arith.addf %85, %87 : vector<8x32xf32>
    %89 = vector.extract_strided_slice %88 {offsets = [0, 0], sizes = [8, 10], strides = [1, 1]} : vector<8x32xf32> to vector<8x10xf32>
    %90 = vector.extract_strided_slice %88 {offsets = [0, 16], sizes = [8, 10], strides = [1, 1]} : vector<8x32xf32> to vector<8x10xf32>
    %cst_42 = arith.constant dense<0xFF800000> : vector<8xf32>
    %91 = vector.multi_reduction <maximumf>, %90, %cst_42 [1] : vector<8x10xf32> to vector<8xf32>
    %92 = vector.shape_cast %91 : vector<8xf32> to vector<8x1xf32>
    %93 = vector.broadcast %92 : vector<8x1xf32> to vector<8x10xf32>
    %94 = arith.subf %90, %93 : vector<8x10xf32>
    %95 = math.exp %94 : vector<8x10xf32>
    %cst_43 = arith.constant dense<0.000000e+00> : vector<8xf32>
    %96 = vector.multi_reduction <add>, %95, %cst_43 [1] : vector<8x10xf32> to vector<8xf32>
    %97 = vector.shape_cast %96 : vector<8xf32> to vector<8x1xf32>
    %98 = math.log %97 : vector<8x1xf32>
    %99 = vector.broadcast %98 : vector<8x1xf32> to vector<8x10xf32>
    %100 = arith.subf %94, %99 : vector<8x10xf32>
    %c0_i32 = arith.constant 0 : i32
    %101 = arith.sitofp %c0_i32 : i32 to f32
    %102 = vector.broadcast %101 : f32 to vector<8x6xf32>
    %103 = tpu.concatenate %100, %102 in 1 : vector<8x10xf32>, vector<8x6xf32> -> vector<8x16xf32>
    %cst_44 = arith.constant dense<0xFF800000> : vector<8xf32>
    %104 = vector.multi_reduction <maximumf>, %89, %cst_44 [1] : vector<8x10xf32> to vector<8xf32>
    %105 = vector.shape_cast %104 : vector<8xf32> to vector<8x1xf32>
    %106 = vector.broadcast %105 : vector<8x1xf32> to vector<8x10xf32>
    %107 = arith.subf %89, %106 : vector<8x10xf32>
    %108 = math.exp %107 : vector<8x10xf32>
    %cst_45 = arith.constant dense<0.000000e+00> : vector<8xf32>
    %109 = vector.multi_reduction <add>, %108, %cst_45 [1] : vector<8x10xf32> to vector<8xf32>
    %110 = vector.shape_cast %109 : vector<8xf32> to vector<8x1xf32>
    %111 = math.log %110 : vector<8x1xf32>
    %112 = vector.broadcast %111 : vector<8x1xf32> to vector<8x10xf32>
    %113 = arith.subf %107, %112 : vector<8x10xf32>
    %c0_i32_46 = arith.constant 0 : i32
    %114 = arith.sitofp %c0_i32_46 : i32 to f32
    %115 = vector.broadcast %114 : f32 to vector<8x6xf32>
    %116 = tpu.concatenate %113, %115 in 1 : vector<8x10xf32>, vector<8x6xf32> -> vector<8x16xf32>
    %cst_47 = arith.constant dense<0xFF800000> : vector<8xf32>
    %117 = vector.multi_reduction <maximumf>, %81, %cst_47 [1] : vector<8x10xf32> to vector<8xf32>
    %118 = vector.shape_cast %117 : vector<8xf32> to vector<8x1xf32>
    %119 = vector.broadcast %118 : vector<8x1xf32> to vector<8x10xf32>
    %120 = arith.subf %81, %119 : vector<8x10xf32>
    %121 = math.exp %120 : vector<8x10xf32>
    %cst_48 = arith.constant dense<0.000000e+00> : vector<8xf32>
    %122 = vector.multi_reduction <add>, %121, %cst_48 [1] : vector<8x10xf32> to vector<8xf32>
    %123 = vector.shape_cast %122 : vector<8xf32> to vector<8x1xf32>
    %124 = math.log %123 : vector<8x1xf32>
    %125 = vector.broadcast %124 : vector<8x1xf32> to vector<8x10xf32>
    %126 = arith.subf %120, %125 : vector<8x10xf32>
    %c0_i32_49 = arith.constant 0 : i32
    %127 = arith.sitofp %c0_i32_49 : i32 to f32
    %128 = vector.broadcast %127 : f32 to vector<8x6xf32>
    %129 = tpu.concatenate %126, %128 in 1 : vector<8x10xf32>, vector<8x6xf32> -> vector<8x16xf32>
    %cst_50 = arith.constant dense<0xFF800000> : vector<8xf32>
    %130 = vector.multi_reduction <maximumf>, %82, %cst_50 [1] : vector<8x10xf32> to vector<8xf32>
    %131 = vector.shape_cast %130 : vector<8xf32> to vector<8x1xf32>
    %132 = vector.broadcast %131 : vector<8x1xf32> to vector<8x10xf32>
    %133 = arith.subf %82, %132 : vector<8x10xf32>
    %134 = math.exp %133 : vector<8x10xf32>
    %cst_51 = arith.constant dense<0.000000e+00> : vector<8xf32>
    %135 = vector.multi_reduction <add>, %134, %cst_51 [1] : vector<8x10xf32> to vector<8xf32>
    %136 = vector.shape_cast %135 : vector<8xf32> to vector<8x1xf32>
    %137 = math.log %136 : vector<8x1xf32>
    %138 = vector.broadcast %137 : vector<8x1xf32> to vector<8x10xf32>
    %139 = arith.subf %133, %138 : vector<8x10xf32>
    %c0_i32_52 = arith.constant 0 : i32
    %140 = arith.sitofp %c0_i32_52 : i32 to f32
    %141 = vector.broadcast %140 : f32 to vector<8x6xf32>
    %142 = tpu.concatenate %139, %141 in 1 : vector<8x10xf32>, vector<8x6xf32> -> vector<8x16xf32>
    %c0_i32_53 = arith.constant 0 : i32
    %143 = arith.sitofp %c0_i32_53 : i32 to f32
    %144 = vector.broadcast %143 : f32 to vector<8x63xf32>
    %145 = tpu.concatenate %49, %144 in 1 : vector<8x1xf32>, vector<8x63xf32> -> vector<8x64xf32>
    %146 = tpu.concatenate %103, %116, %129, %142, %145 in 1 : vector<8x16xf32>, vector<8x16xf32>, vector<8x16xf32>, vector<8x16xf32>, vector<8x64xf32> -> vector<8x128xf32>
    %c0_54 = arith.constant 0 : index
    %c0_55 = arith.constant 0 : index
    %147 = vector.load %arg10[%c0_54, %c0_55] : memref<8x128xf32, #tpu.memory_space<vmem>>, vector<8x128xf32>
    tpu.vector_store %arg10[%c0_54, %c0_55], %146 {strides = array<i32>} : memref<8x128xf32, #tpu.memory_space<vmem>>, vector<8x128xf32>,
    return
  }
  func.func @transform_0(%arg0: i32) -> (i32, i32) {
    %c0_i32 = arith.constant 0 : i32
    %c0_i32_0 = arith.constant 0 : i32
    return %arg0, %c0_i32 : i32, i32
  }
  func.func @transform_1(%arg0: i32) -> (i32, i32) {
    %c0_i32 = arith.constant 0 : i32
    %c0_i32_0 = arith.constant 0 : i32
    %c0_i32_1 = arith.constant 0 : i32
    return %c0_i32, %c0_i32_0 : i32, i32
  }
  func.func @transform_2(%arg0: i32) -> (i32, i32) {
    %c0_i32 = arith.constant 0 : i32
    %c0_i32_0 = arith.constant 0 : i32
    %c0_i32_1 = arith.constant 0 : i32
    return %c0_i32, %c0_i32_0 : i32, i32
  }
  func.func @transform_3(%arg0: i32) -> (i32, i32) {
    %c0_i32 = arith.constant 0 : i32
    %c0_i32_0 = arith.constant 0 : i32
    %c0_i32_1 = arith.constant 0 : i32
    return %c0_i32, %c0_i32_0 : i32, i32
  }
  func.func @transform_4(%arg0: i32) -> (i32, i32) {
    %c0_i32 = arith.constant 0 : i32
    %c0_i32_0 = arith.constant 0 : i32
    %c0_i32_1 = arith.constant 0 : i32
    return %c0_i32, %c0_i32_0 : i32, i32
  }
  func.func @transform_5(%arg0: i32) -> (i32, i32) {
    %c0_i32 = arith.constant 0 : i32
    %c0_i32_0 = arith.constant 0 : i32
    %c0_i32_1 = arith.constant 0 : i32
    return %c0_i32, %c0_i32_0 : i32, i32
  }
  func.func @transform_6(%arg0: i32) -> (i32, i32) {
    %c0_i32 = arith.constant 0 : i32
    %c0_i32_0 = arith.constant 0 : i32
    %c0_i32_1 = arith.constant 0 : i32
    return %c0_i32, %c0_i32_0 : i32, i32
  }
  func.func @transform_7(%arg0: i32) -> (i32, i32) {
    %c0_i32 = arith.constant 0 : i32
    %c0_i32_0 = arith.constant 0 : i32
    %c0_i32_1 = arith.constant 0 : i32
    return %c0_i32, %c0_i32_0 : i32, i32
  }
  func.func @transform_8(%arg0: i32) -> (i32, i32) {
    %c0_i32 = arith.constant 0 : i32
    %c0_i32_0 = arith.constant 0 : i32
    %c0_i32_1 = arith.constant 0 : i32
    return %c0_i32, %c0_i32_0 : i32, i32
  }
  func.func @transform_9(%arg0: i32) -> (i32, i32) {
    %c0_i32 = arith.constant 0 : i32
    %c0_i32_0 = arith.constant 0 : i32
    return %arg0, %c0_i32 : i32, i32
  }
}

</mosaic_0001>

<llo_original>
// kernel: net_forward.1
$region0: #{net_forward.1}
  #allocation0 [shape = 'u32[]', space=smem, size = 0x4, offset = 0x4, fixed_abs, tag = 'smem constant byte address 0x4 - core index']
  #allocation1 [shape = 'u32[144,128]{1,0:T(1,128)}', space=vmem, size = 0x12000, scoped, tag = 'internal scratch']
  %s0 = inlined_call_operand.vmem [shape: bf16[8,1024], index: 0, kind: input, shape index: {}]
  %s1 = inlined_call_operand.hbm [shape: bf16[1024,512], index: 1, kind: input, shape index: {}]
  %s2 = inlined_call_operand.vmem [shape: bf16[512,512], index: 2, kind: input, shape index: {}]
  %s3 = inlined_call_operand.hbm [shape: bf16[512,128], index: 3, kind: input, shape index: {}]
  %s4 = inlined_call_operand.vmem [shape: bf16[64,64], index: 4, kind: input, shape index: {}]
  %s5 = inlined_call_operand.vmem [shape: bf16[64,256], index: 5, kind: input, shape index: {}]
  %s6 = inlined_call_operand.hbm [shape: bf16[256,256], index: 6, kind: input, shape index: {}]
  %s7 = inlined_call_operand.vmem [shape: bf16[128,32], index: 7, kind: input, shape index: {}]
  %s8 = inlined_call_operand.hbm [shape: f32[8,512], index: 8, kind: input, shape index: {}]
  %s9 = inlined_call_operand.vmem [shape: f32[8,128], index: 9, kind: output, shape index: {}]
  %s10 = sld [smem:[#allocation0]]
  $region62: #{net_forward.1} parent=0
    _
  %s12 = ssub.s32 1, %s10
  %s13 = scalar_select 0, %s12, %s10
  $region1: #{net_forward.1} parent=0
    #allocation2 [shape = 'u8[1048576]{0}', space=vmem, size = 0x100000, scoped, tag = 'input window, operand 1, single buffered']
    #allocation3 [shape = 's32[1]{0}', space=sflag, size = 0x4, scoped, tag = 'scoped memory for net_forward.1']
    #allocation4 [shape = 'u8[131072]{0}', space=vmem, size = 0x20000, scoped, tag = 'input window, operand 3, single buffered']
    #allocation5 [shape = 's32[1]{0}', space=sflag, size = 0x4, scoped, tag = 'scoped memory for net_forward.1']
    #allocation6 [shape = 'u8[131072]{0}', space=vmem, size = 0x20000, scoped, tag = 'input window, operand 6, single buffered']
    #allocation7 [shape = 'u8[16384]{0}', space=vmem, size = 0x4000, scoped, tag = 'input window, operand 8, single buffered']
    #allocation8 [shape = 's32[1]{0}', space=sflag, size = 0x4, scoped, tag = 'scoped memory for net_forward.1']
    %14 = vsyncpa [#allocation3], 0
    %15 = vsyncpa [#allocation5], 0
    %16 = vsyncpa [#allocation8], 0
    // Predicated region
    $region2: #{net_forward.1} parent=1 // pred_check
      _
    $region3: #{net_forward.1} parent=1 // pred_check_branch
      %18 = sbr.rel (0) target = $region5
    $region4: #{net_forward.1} parent=1 // pred_region
      _
    $region5: #{net_forward.1} parent=1 // pred_fallthru
      _
    // Predicated region
    $region6: #{net_forward.1} parent=1 // pred_check
      _
    $region7: #{net_forward.1} parent=1 // pred_check_branch
      %20 = sbr.rel (0) target = $region9
    $region8: #{net_forward.1} parent=1 // pred_region
      %s22 = ssub.s32 32768, 32768
      %23 = vsyncadd [#allocation3], %s22
      %s24 = sshll.u32 [#allocation2], 4
      %s25 = int_to_ptr.vmem [resolvable:$true] %s24
      %30 = dma.hbm_to_vmem [thread:$0]  %s1, 32768, %s25, [#allocation3], 256, 256, 16
    $region9: #{net_forward.1} parent=1 // pred_fallthru
      _
    // Predicated region
    $region10: #{net_forward.1} parent=1 // pred_check
      _
    $region11: #{net_forward.1} parent=1 // pred_check_branch
      %32 = sbr.rel (0) target = $region13
    $region12: #{net_forward.1} parent=1 // pred_region
      _
    $region13: #{net_forward.1} parent=1 // pred_fallthru
      _
    // Predicated region
    $region14: #{net_forward.1} parent=1 // pred_check
      _
    $region15: #{net_forward.1} parent=1 // pred_check_branch
      %34 = sbr.rel (0) target = $region17
    $region16: #{net_forward.1} parent=1 // pred_region
      %s36 = ssub.s32 4096, 4096
      %37 = vsyncadd [#allocation5], %s36
      %s38 = sshll.u32 [#allocation4], 4
      %s39 = int_to_ptr.vmem [resolvable:$true] %s38
      %44 = dma.hbm_to_vmem [thread:$0]  %s3, 4096, %s39, [#allocation5], 64, 64, 4
    $region17: #{net_forward.1} parent=1 // pred_fallthru
      _
    // Predicated region
    $region18: #{net_forward.1} parent=1 // pred_check
      _
    $region19: #{net_forward.1} parent=1 // pred_check_branch
      %46 = sbr.rel (0) target = $region21
    $region20: #{net_forward.1} parent=1 // pred_region
      _
    $region21: #{net_forward.1} parent=1 // pred_fallthru
      _
    // Predicated region
    $region22: #{net_forward.1} parent=1 // pred_check
      _
    $region23: #{net_forward.1} parent=1 // pred_check_branch
      %48 = sbr.rel (0) target = $region25
    $region24: #{net_forward.1} parent=1 // pred_region
      _
    $region25: #{net_forward.1} parent=1 // pred_fallthru
      _
    // Predicated region
    $region26: #{net_forward.1} parent=1 // pred_check
      _
    $region27: #{net_forward.1} parent=1 // pred_check_branch
      %50 = sbr.rel (0) target = $region29
    $region28: #{net_forward.1} parent=1 // pred_region
      %s52 = ssub.s32 4096, 4096
      %53 = vsyncadd [#allocation5], %s52
      %s54 = sshll.u32 [#allocation6], 4
      %s55 = int_to_ptr.vmem [resolvable:$true] %s54
      %60 = dma.hbm_to_vmem [thread:$0]  %s6, 4096, %s55, [#allocation5], 128, 128, 8
    $region29: #{net_forward.1} parent=1 // pred_fallthru
      _
    // Predicated region
    $region30: #{net_forward.1} parent=1 // pred_check
      _
    $region31: #{net_forward.1} parent=1 // pred_check_branch
      %62 = sbr.rel (0) target = $region33
    $region32: #{net_forward.1} parent=1 // pred_region
      _
    $region33: #{net_forward.1} parent=1 // pred_fallthru
      _
    // Predicated region
    $region34: #{net_forward.1} parent=1 // pred_check
      _
    $region35: #{net_forward.1} parent=1 // pred_check_branch
      %64 = sbr.rel (0) target = $region37
    $region36: #{net_forward.1} parent=1 // pred_region
      %s66 = ssub.s32 512, 512
      %67 = vsyncadd [#allocation8], %s66
      %s69 = sshll.u32 [#allocation7], 4
      %s70 = int_to_ptr.vmem [resolvable:$true] %s69
      %72 = dma.hbm_to_vmem [thread:$0]  %s8, 512, %s70, [#allocation8]
    $region37: #{net_forward.1} parent=1 // pred_fallthru
      _
    // Predicated region
    $region38: #{net_forward.1} parent=1 // pred_check
      _
    $region39: #{net_forward.1} parent=1 // pred_check_branch
      %74 = sbr.rel (0) target = $region41
    $region40: #{net_forward.1} parent=1 // pred_region
      %75 = dma.done [#allocation3], 32768
    $region41: #{net_forward.1} parent=1 // pred_fallthru
      _
    // Predicated region
    $region42: #{net_forward.1} parent=1 // pred_check
      _
    $region43: #{net_forward.1} parent=1 // pred_check_branch
      %77 = sbr.rel (0) target = $region45
    $region44: #{net_forward.1} parent=1 // pred_region
      %78 = dma.done [#allocation5], 4096
    $region45: #{net_forward.1} parent=1 // pred_fallthru
      _
    // Predicated region
    $region46: #{net_forward.1} parent=1 // pred_check
      _
    $region47: #{net_forward.1} parent=1 // pred_check_branch
      %80 = sbr.rel (0) target = $region49
    $region48: #{net_forward.1} parent=1 // pred_region
      %81 = dma.done [#allocation5], 4096
    $region49: #{net_forward.1} parent=1 // pred_fallthru
      _
    // Predicated region
    $region50: #{net_forward.1} parent=1 // pred_check
      _
    $region51: #{net_forward.1} parent=1 // pred_check_branch
      %83 = sbr.rel (0) target = $region53
    $region52: #{net_forward.1} parent=1 // pred_region
      %84 = dma.done [#allocation8], 512
    $region53: #{net_forward.1} parent=1 // pred_fallthru
      _
    %v86 = vld [vmem:[%s0] sm:$0xff]
    %v87 = vld [vmem:[%s0 + $0x8] sm:$0xff]
    %v88 = vld [vmem:[%s0 + $0x10] sm:$0xff]
    %v89 = vld [vmem:[%s0 + $0x18] sm:$0xff]
    %v90 = vld [vmem:[#allocation2] sm:$0xff]
    %v91 = vld [vmem:[#allocation2 + $0x8] sm:$0xff]
    %v92 = vld [vmem:[#allocation2 + $0x10] sm:$0xff]
    %v93 = vld [vmem:[#allocation2 + $0x18] sm:$0xff]
    %v94 = vld [vmem:[#allocation2 + $0x20] sm:$0xff]
    %v95 = vld [vmem:[#allocation2 + $0x28] sm:$0xff]
    %v96 = vld [vmem:[#allocation2 + $0x30] sm:$0xff]
    %v97 = vld [vmem:[#allocation2 + $0x38] sm:$0xff]
    %v98 = vld [vmem:[#allocation2 + $0x40] sm:$0xff]
    %v99 = vld [vmem:[#allocation2 + $0x48] sm:$0xff]
    %v100 = vld [vmem:[#allocation2 + $0x50] sm:$0xff]
    %v101 = vld [vmem:[#allocation2 + $0x58] sm:$0xff]
    %v102 = vld [vmem:[#allocation2 + $0x60] sm:$0xff]
    %v103 = vld [vmem:[#allocation2 + $0x68] sm:$0xff]
    %v104 = vld [vmem:[#allocation2 + $0x70] sm:$0xff]
    %v105 = vld [vmem:[#allocation2 + $0x78] sm:$0xff]
    %v106 = vld [vmem:[#allocation2 + $0x80] sm:$0xff]
    %v107 = vld [vmem:[#allocation2 + $0x88] sm:$0xff]
    %v108 = vld [vmem:[#allocation2 + $0x90] sm:$0xff]
    %v109 = vld [vmem:[#allocation2 + $0x98] sm:$0xff]
    %v110 = vld [vmem:[#allocation2 + $0xa0] sm:$0xff]
    %v111 = vld [vmem:[#allocation2 + $0xa8] sm:$0xff]
    %v112 = vld [vmem:[#allocation2 + $0xb0] sm:$0xff]
    %v113 = vld [vmem:[#allocation2 + $0xb8] sm:$0xff]
    %v114 = vld [vmem:[#allocation2 + $0xc0] sm:$0xff]
    %v115 = vld [vmem:[#allocation2 + $0xc8] sm:$0xff]
    %v116 = vld [vmem:[#allocation2 + $0xd0] sm:$0xff]
    %v117 = vld [vmem:[#allocation2 + $0xd8] sm:$0xff]
    %v118 = vld [vmem:[#allocation2 + $0xe0] sm:$0xff]
    %v119 = vld [vmem:[#allocation2 + $0xe8] sm:$0xff]
    %v120 = vld [vmem:[#allocation2 + $0xf0] sm:$0xff]
    %v121 = vld [vmem:[#allocation2 + $0xf8] sm:$0xff]
    %v122 = vld [vmem:[#allocation2 + $0x100] sm:$0xff]
    %v123 = vld [vmem:[#allocation2 + $0x108] sm:$0xff]
    %v124 = vld [vmem:[#allocation2 + $0x110] sm:$0xff]
    %v125 = vld [vmem:[#allocation2 + $0x118] sm:$0xff]
    %v126 = vld [vmem:[#allocation2 + $0x120] sm:$0xff]
    %v127 = vld [vmem:[#allocation2 + $0x128] sm:$0xff]
    %v128 = vld [vmem:[#allocation2 + $0x130] sm:$0xff]
    %v129 = vld [vmem:[#allocation2 + $0x138] sm:$0xff]
    %v130 = vld [vmem:[#allocation2 + $0x140] sm:$0xff]
    %v131 = vld [vmem:[#allocation2 + $0x148] sm:$0xff]
    %v132 = vld [vmem:[#allocation2 + $0x150] sm:$0xff]
    %v133 = vld [vmem:[#allocation2 + $0x158] sm:$0xff]
    %v134 = vld [vmem:[#allocation2 + $0x160] sm:$0xff]
    %v135 = vld [vmem:[#allocation2 + $0x168] sm:$0xff]
    %v136 = vld [vmem:[#allocation2 + $0x170] sm:$0xff]
    %v137 = vld [vmem:[#allocation2 + $0x178] sm:$0xff]
    %v138 = vld [vmem:[#allocation2 + $0x180] sm:$0xff]
    %v139 = vld [vmem:[#allocation2 + $0x188] sm:$0xff]
    %v140 = vld [vmem:[#allocation2 + $0x190] sm:$0xff]
    %v141 = vld [vmem:[#allocation2 + $0x198] sm:$0xff]
    %v142 = vld [vmem:[#allocation2 + $0x1a0] sm:$0xff]
    %v143 = vld [vmem:[#allocation2 + $0x1a8] sm:$0xff]
    %v144 = vld [vmem:[#allocation2 + $0x1b0] sm:$0xff]
    %v145 = vld [vmem:[#allocation2 + $0x1b8] sm:$0xff]
    %v146 = vld [vmem:[#allocation2 + $0x1c0] sm:$0xff]
    %v147 = vld [vmem:[#allocation2 + $0x1c8] sm:$0xff]
    %v148 = vld [vmem:[#allocation2 + $0x1d0] sm:$0xff]
    %v149 = vld [vmem:[#allocation2 + $0x1d8] sm:$0xff]
    %v150 = vld [vmem:[#allocation2 + $0x1e0] sm:$0xff]
    %v151 = vld [vmem:[#allocation2 + $0x1e8] sm:$0xff]
    %v152 = vld [vmem:[#allocation2 + $0x1f0] sm:$0xff]
    %v153 = vld [vmem:[#allocation2 + $0x1f8] sm:$0xff]
    %v154 = vld [vmem:[#allocation2 + $0x200] sm:$0xff]
    %v155 = vld [vmem:[#allocation2 + $0x208] sm:$0xff]
    %v156 = vld [vmem:[#allocation2 + $0x210] sm:$0xff]
    %v157 = vld [vmem:[#allocation2 + $0x218] sm:$0xff]
    %v158 = vld [vmem:[#allocation2 + $0x220] sm:$0xff]
    %v159 = vld [vmem:[#allocation2 + $0x228] sm:$0xff]
    %v160 = vld [vmem:[#allocation2 + $0x230] sm:$0xff]
    %v161 = vld [vmem:[#allocation2 + $0x238] sm:$0xff]
    %v162 = vld [vmem:[#allocation2 + $0x240] sm:$0xff]
    %v163 = vld [vmem:[#allocation2 + $0x248] sm:$0xff]
    %v164 = vld [vmem:[#allocation2 + $0x250] sm:$0xff]
    %v165 = vld [vmem:[#allocation2 + $0x258] sm:$0xff]
    %v166 = vld [vmem:[#allocation2 + $0x260] sm:$0xff]
    %v167 = vld [vmem:[#allocation2 + $0x268] sm:$0xff]
    %v168 = vld [vmem:[#allocation2 + $0x270] sm:$0xff]
    %v169 = vld [vmem:[#allocation2 + $0x278] sm:$0xff]
    %v170 = vld [vmem:[#allocation2 + $0x280] sm:$0xff]
    %v171 = vld [vmem:[#allocation2 + $0x288] sm:$0xff]
    %v172 = vld [vmem:[#allocation2 + $0x290] sm:$0xff]
    %v173 = vld [vmem:[#allocation2 + $0x298] sm:$0xff]
    %v174 = vld [vmem:[#allocation2 + $0x2a0] sm:$0xff]
    %v175 = vld [vmem:[#allocation2 + $0x2a8] sm:$0xff]
    %v176 = vld [vmem:[#allocation2 + $0x2b0] sm:$0xff]
    %v177 = vld [vmem:[#allocation2 + $0x2b8] sm:$0xff]
    %v178 = vld [vmem:[#allocation2 + $0x2c0] sm:$0xff]
    %v179 = vld [vmem:[#allocation2 + $0x2c8] sm:$0xff]
    %v180 = vld [vmem:[#allocation2 + $0x2d0] sm:$0xff]
    %v181 = vld [vmem:[#allocation2 + $0x2d8] sm:$0xff]
    %v182 = vld [vmem:[#allocation2 + $0x2e0] sm:$0xff]
    %v183 = vld [vmem:[#allocation2 + $0x2e8] sm:$0xff]
    %v184 = vld [vmem:[#allocation2 + $0x2f0] sm:$0xff]
    %v185 = vld [vmem:[#allocation2 + $0x2f8] sm:$0xff]
    %v186 = vld [vmem:[#allocation2 + $0x300] sm:$0xff]
    %v187 = vld [vmem:[#allocation2 + $0x308] sm:$0xff]
    %v188 = vld [vmem:[#allocation2 + $0x310] sm:$0xff]
    %v189 = vld [vmem:[#allocation2 + $0x318] sm:$0xff]
    %v190 = vld [vmem:[#allocation2 + $0x320] sm:$0xff]
    %v191 = vld [vmem:[#allocation2 + $0x328] sm:$0xff]
    %v192 = vld [vmem:[#allocation2 + $0x330] sm:$0xff]
    %v193 = vld [vmem:[#allocation2 + $0x338] sm:$0xff]
    %v194 = vld [vmem:[#allocation2 + $0x340] sm:$0xff]
    %v195 = vld [vmem:[#allocation2 + $0x348] sm:$0xff]
    %v196 = vld [vmem:[#allocation2 + $0x350] sm:$0xff]
    %v197 = vld [vmem:[#allocation2 + $0x358] sm:$0xff]
    %v198 = vld [vmem:[#allocation2 + $0x360] sm:$0xff]
    %v199 = vld [vmem:[#allocation2 + $0x368] sm:$0xff]
    %v200 = vld [vmem:[#allocation2 + $0x370] sm:$0xff]
    %v201 = vld [vmem:[#allocation2 + $0x378] sm:$0xff]
    %v202 = vld [vmem:[#allocation2 + $0x380] sm:$0xff]
    %v203 = vld [vmem:[#allocation2 + $0x388] sm:$0xff]
    %v204 = vld [vmem:[#allocation2 + $0x390] sm:$0xff]
    %v205 = vld [vmem:[#allocation2 + $0x398] sm:$0xff]
    %v206 = vld [vmem:[#allocation2 + $0x3a0] sm:$0xff]
    %v207 = vld [vmem:[#allocation2 + $0x3a8] sm:$0xff]
    %v208 = vld [vmem:[#allocation2 + $0x3b0] sm:$0xff]
    %v209 = vld [vmem:[#allocation2 + $0x3b8] sm:$0xff]
    %v210 = vld [vmem:[#allocation2 + $0x3c0] sm:$0xff]
    %v211 = vld [vmem:[#allocation2 + $0x3c8] sm:$0xff]
    %v212 = vld [vmem:[#allocation2 + $0x3d0] sm:$0xff]
    %v213 = vld [vmem:[#allocation2 + $0x3d8] sm:$0xff]
    %v214 = vld [vmem:[#allocation2 + $0x3e0] sm:$0xff]
    %v215 = vld [vmem:[#allocation2 + $0x3e8] sm:$0xff]
    %v216 = vld [vmem:[#allocation2 + $0x3f0] sm:$0xff]
    %v217 = vld [vmem:[#allocation2 + $0x3f8] sm:$0xff]
    %v218 = vld [vmem:[#allocation2 + $0x400] sm:$0xff]
    %v219 = vld [vmem:[#allocation2 + $0x408] sm:$0xff]
    %v220 = vld [vmem:[#allocation2 + $0x410] sm:$0xff]
    %v221 = vld [vmem:[#allocation2 + $0x418] sm:$0xff]
    %v222 = vld [vmem:[#allocation2 + $0x420] sm:$0xff]
    %v223 = vld [vmem:[#allocation2 + $0x428] sm:$0xff]
    %v224 = vld [vmem:[#allocation2 + $0x430] sm:$0xff]
    %v225 = vld [vmem:[#allocation2 + $0x438] sm:$0xff]
    %v226 = vld [vmem:[#allocation2 + $0x440] sm:$0xff]
    %v227 = vld [vmem:[#allocation2 + $0x448] sm:$0xff]
    %v228 = vld [vmem:[#allocation2 + $0x450] sm:$0xff]
    %v229 = vld [vmem:[#allocation2 + $0x458] sm:$0xff]
    %v230 = vld [vmem:[#allocation2 + $0x460] sm:$0xff]
    %v231 = vld [vmem:[#allocation2 + $0x468] sm:$0xff]
    %v232 = vld [vmem:[#allocation2 + $0x470] sm:$0xff]
    %v233 = vld [vmem:[#allocation2 + $0x478] sm:$0xff]
    %v234 = vld [vmem:[#allocation2 + $0x480] sm:$0xff]
    %v235 = vld [vmem:[#allocation2 + $0x488] sm:$0xff]
    %v236 = vld [vmem:[#allocation2 + $0x490] sm:$0xff]
    %v237 = vld [vmem:[#allocation2 + $0x498] sm:$0xff]
    %v238 = vld [vmem:[#allocation2 + $0x4a0] sm:$0xff]
    %v239 = vld [vmem:[#allocation2 + $0x4a8] sm:$0xff]
    %v240 = vld [vmem:[#allocation2 + $0x4b0] sm:$0xff]
    %v241 = vld [vmem:[#allocation2 + $0x4b8] sm:$0xff]
    %v242 = vld [vmem:[#allocation2 + $0x4c0] sm:$0xff]
    %v243 = vld [vmem:[#allocation2 + $0x4c8] sm:$0xff]
    %v244 = vld [vmem:[#allocation2 + $0x4d0] sm:$0xff]
    %v245 = vld [vmem:[#allocation2 + $0x4d8] sm:$0xff]
    %v246 = vld [vmem:[#allocation2 + $0x4e0] sm:$0xff]
    %v247 = vld [vmem:[#allocation2 + $0x4e8] sm:$0xff]
    %v248 = vld [vmem:[#allocation2 + $0x4f0] sm:$0xff]
    %v249 = vld [vmem:[#allocation2 + $0x4f8] sm:$0xff]
    %v250 = vld [vmem:[#allocation2 + $0x500] sm:$0xff]
    %v251 = vld [vmem:[#allocation2 + $0x508] sm:$0xff]
    %v252 = vld [vmem:[#allocation2 + $0x510] sm:$0xff]
    %v253 = vld [vmem:[#allocation2 + $0x518] sm:$0xff]
    %v254 = vld [vmem:[#allocation2 + $0x520] sm:$0xff]
    %v255 = vld [vmem:[#allocation2 + $0x528] sm:$0xff]
    %v256 = vld [vmem:[#allocation2 + $0x530] sm:$0xff]
    %v257 = vld [vmem:[#allocation2 + $0x538] sm:$0xff]
    %v258 = vld [vmem:[#allocation2 + $0x540] sm:$0xff]
    %v259 = vld [vmem:[#allocation2 + $0x548] sm:$0xff]
    %v260 = vld [vmem:[#allocation2 + $0x550] sm:$0xff]
    %v261 = vld [vmem:[#allocation2 + $0x558] sm:$0xff]
    %v262 = vld [vmem:[#allocation2 + $0x560] sm:$0xff]
    %v263 = vld [vmem:[#allocation2 + $0x568] sm:$0xff]
    %v264 = vld [vmem:[#allocation2 + $0x570] sm:$0xff]
    %v265 = vld [vmem:[#allocation2 + $0x578] sm:$0xff]
    %v266 = vld [vmem:[#allocation2 + $0x580] sm:$0xff]
    %v267 = vld [vmem:[#allocation2 + $0x588] sm:$0xff]
    %v268 = vld [vmem:[#allocation2 + $0x590] sm:$0xff]
    %v269 = vld [vmem:[#allocation2 + $0x598] sm:$0xff]
    %v270 = vld [vmem:[#allocation2 + $0x5a0] sm:$0xff]
    %v271 = vld [vmem:[#allocation2 + $0x5a8] sm:$0xff]
    %v272 = vld [vmem:[#allocation2 + $0x5b0] sm:$0xff]
    %v273 = vld [vmem:[#allocation2 + $0x5b8] sm:$0xff]
    %v274 = vld [vmem:[#allocation2 + $0x5c0] sm:$0xff]
    %v275 = vld [vmem:[#allocation2 + $0x5c8] sm:$0xff]
    %v276 = vld [vmem:[#allocation2 + $0x5d0] sm:$0xff]
    %v277 = vld [vmem:[#allocation2 + $0x5d8] sm:$0xff]
    %v278 = vld [vmem:[#allocation2 + $0x5e0] sm:$0xff]
    %v279 = vld [vmem:[#allocation2 + $0x5e8] sm:$0xff]
    %v280 = vld [vmem:[#allocation2 + $0x5f0] sm:$0xff]
    %v281 = vld [vmem:[#allocation2 + $0x5f8] sm:$0xff]
    %v282 = vld [vmem:[#allocation2 + $0x600] sm:$0xff]
    %v283 = vld [vmem:[#allocation2 + $0x608] sm:$0xff]
    %v284 = vld [vmem:[#allocation2 + $0x610] sm:$0xff]
    %v285 = vld [vmem:[#allocation2 + $0x618] sm:$0xff]
    %v286 = vld [vmem:[#allocation2 + $0x620] sm:$0xff]
    %v287 = vld [vmem:[#allocation2 + $0x628] sm:$0xff]
    %v288 = vld [vmem:[#allocation2 + $0x630] sm:$0xff]
    %v289 = vld [vmem:[#allocation2 + $0x638] sm:$0xff]
    %v290 = vld [vmem:[#allocation2 + $0x640] sm:$0xff]
    %v291 = vld [vmem:[#allocation2 + $0x648] sm:$0xff]
    %v292 = vld [vmem:[#allocation2 + $0x650] sm:$0xff]
    %v293 = vld [vmem:[#allocation2 + $0x658] sm:$0xff]
    %v294 = vld [vmem:[#allocation2 + $0x660] sm:$0xff]
    %v295 = vld [vmem:[#allocation2 + $0x668] sm:$0xff]
    %v296 = vld [vmem:[#allocation2 + $0x670] sm:$0xff]
    %v297 = vld [vmem:[#allocation2 + $0x678] sm:$0xff]
    %v298 = vld [vmem:[#allocation2 + $0x680] sm:$0xff]
    %v299 = vld [vmem:[#allocation2 + $0x688] sm:$0xff]
    %v300 = vld [vmem:[#allocation2 + $0x690] sm:$0xff]
    %v301 = vld [vmem:[#allocation2 + $0x698] sm:$0xff]
    %v302 = vld [vmem:[#allocation2 + $0x6a0] sm:$0xff]
    %v303 = vld [vmem:[#allocation2 + $0x6a8] sm:$0xff]
    %v304 = vld [vmem:[#allocation2 + $0x6b0] sm:$0xff]
    %v305 = vld [vmem:[#allocation2 + $0x6b8] sm:$0xff]
    %v306 = vld [vmem:[#allocation2 + $0x6c0] sm:$0xff]
    %v307 = vld [vmem:[#allocation2 + $0x6c8] sm:$0xff]
    %v308 = vld [vmem:[#allocation2 + $0x6d0] sm:$0xff]
    %v309 = vld [vmem:[#allocation2 + $0x6d8] sm:$0xff]
    %v310 = vld [vmem:[#allocation2 + $0x6e0] sm:$0xff]
    %v311 = vld [vmem:[#allocation2 + $0x6e8] sm:$0xff]
    %v312 = vld [vmem:[#allocation2 + $0x6f0] sm:$0xff]
    %v313 = vld [vmem:[#allocation2 + $0x6f8] sm:$0xff]
    %v314 = vld [vmem:[#allocation2 + $0x700] sm:$0xff]
    %v315 = vld [vmem:[#allocation2 + $0x708] sm:$0xff]
    %v316 = vld [vmem:[#allocation2 + $0x710] sm:$0xff]
    %v317 = vld [vmem:[#allocation2 + $0x718] sm:$0xff]
    %v318 = vld [vmem:[#allocation2 + $0x720] sm:$0xff]
    %v319 = vld [vmem:[#allocation2 + $0x728] sm:$0xff]
    %v320 = vld [vmem:[#allocation2 + $0x730] sm:$0xff]
    %v321 = vld [vmem:[#allocation2 + $0x738] sm:$0xff]
    %v322 = vld [vmem:[#allocation2 + $0x740] sm:$0xff]
    %v323 = vld [vmem:[#allocation2 + $0x748] sm:$0xff]
    %v324 = vld [vmem:[#allocation2 + $0x750] sm:$0xff]
    %v325 = vld [vmem:[#allocation2 + $0x758] sm:$0xff]
    %v326 = vld [vmem:[#allocation2 + $0x760] sm:$0xff]
    %v327 = vld [vmem:[#allocation2 + $0x768] sm:$0xff]
    %v328 = vld [vmem:[#allocation2 + $0x770] sm:$0xff]
    %v329 = vld [vmem:[#allocation2 + $0x778] sm:$0xff]
    %v330 = vld [vmem:[#allocation2 + $0x780] sm:$0xff]
    %v331 = vld [vmem:[#allocation2 + $0x788] sm:$0xff]
    %v332 = vld [vmem:[#allocation2 + $0x790] sm:$0xff]
    %v333 = vld [vmem:[#allocation2 + $0x798] sm:$0xff]
    %v334 = vld [vmem:[#allocation2 + $0x7a0] sm:$0xff]
    %v335 = vld [vmem:[#allocation2 + $0x7a8] sm:$0xff]
    %v336 = vld [vmem:[#allocation2 + $0x7b0] sm:$0xff]
    %v337 = vld [vmem:[#allocation2 + $0x7b8] sm:$0xff]
    %v338 = vld [vmem:[#allocation2 + $0x7c0] sm:$0xff]
    %v339 = vld [vmem:[#allocation2 + $0x7c8] sm:$0xff]
    %v340 = vld [vmem:[#allocation2 + $0x7d0] sm:$0xff]
    %v341 = vld [vmem:[#allocation2 + $0x7d8] sm:$0xff]
    %v342 = vld [vmem:[#allocation2 + $0x7e0] sm:$0xff]
    %v343 = vld [vmem:[#allocation2 + $0x7e8] sm:$0xff]
    %v344 = vld [vmem:[#allocation2 + $0x7f0] sm:$0xff]
    %v345 = vld [vmem:[#allocation2 + $0x7f8] sm:$0xff]
    %v346 = vld [vmem:[#allocation7] ss:$8 sm:$0xf]
    %v348 = vlaneseq
    %v349 = vshrl.u32 %v348, 7
    %v350 = vsub.s32 0, %v349
    %v351 = vrot.slane %v346, %v350
    %v352 = vlaneseq
    %v353 = vshrl.u32 %v352, 7
    %v354 = vsub.s32 1, %v353
    %v355 = vrot.slane %v346, %v354
    %v356 = vlaneseq
    %v357 = vshrl.u32 %v356, 7
    %v358 = vsub.s32 2, %v357
    %v359 = vrot.slane %v346, %v358
    %v360 = vlaneseq
    %v361 = vshrl.u32 %v360, 7
    %v362 = vsub.s32 3, %v361
    %v363 = vrot.slane %v346, %v362
    %v372 = vunpack.c.l.b16 %v86
    %v373 = vunpack.c.h.b16 %v86
    %v374 = vunpack.c.l.b16 %v87
    %v375 = vunpack.c.h.b16 %v87
    %v376 = vunpack.c.l.b16 %v88
    %v377 = vunpack.c.h.b16 %v88
    %v378 = vunpack.c.l.b16 %v89
    %v379 = vunpack.c.h.b16 %v89
    %v380 = vpack.c.b16 %v372, %v372
    %v381 = vpack.c.b16 %v373, %v373
    %v382 = vpack.c.b16 %v374, %v374
    %v383 = vpack.c.b16 %v375, %v375
    %v384 = vpack.c.b16 %v376, %v376
    %v385 = vpack.c.b16 %v377, %v377
    %v386 = vpack.c.b16 %v378, %v378
    %v387 = vpack.c.b16 %v379, %v379
    %v652 = vunpack.c.l.b16 %v90
    %v653 = vunpack.c.h.b16 %v90
    %v654 = vunpack.c.l.b16 %v91
    %v655 = vunpack.c.h.b16 %v91
    %v656 = vunpack.c.l.b16 %v92
    %v657 = vunpack.c.h.b16 %v92
    %v658 = vunpack.c.l.b16 %v93
    %v659 = vunpack.c.h.b16 %v93
    %v660 = vunpack.c.l.b16 %v94
    %v661 = vunpack.c.h.b16 %v94
    %v662 = vunpack.c.l.b16 %v95
    %v663 = vunpack.c.h.b16 %v95
    %v664 = vunpack.c.l.b16 %v96
    %v665 = vunpack.c.h.b16 %v96
    %v666 = vunpack.c.l.b16 %v97
    %v667 = vunpack.c.h.b16 %v97
    %v668 = vunpack.c.l.b16 %v98
    %v669 = vunpack.c.h.b16 %v98
    %v670 = vunpack.c.l.b16 %v99
    %v671 = vunpack.c.h.b16 %v99
    %v672 = vunpack.c.l.b16 %v100
    %v673 = vunpack.c.h.b16 %v100
    %v674 = vunpack.c.l.b16 %v101
    %v675 = vunpack.c.h.b16 %v101
    %v676 = vunpack.c.l.b16 %v102
    %v677 = vunpack.c.h.b16 %v102
    %v678 = vunpack.c.l.b16 %v103
    %v679 = vunpack.c.h.b16 %v103
    %v680 = vunpack.c.l.b16 %v104
    %v681 = vunpack.c.h.b16 %v104
    %v682 = vunpack.c.l.b16 %v105
    %v683 = vunpack.c.h.b16 %v105
    %v684 = vunpack.c.l.b16 %v106
    %v685 = vunpack.c.h.b16 %v106
    %v686 = vunpack.c.l.b16 %v107
    %v687 = vunpack.c.h.b16 %v107
    %v688 = vunpack.c.l.b16 %v108
    %v689 = vunpack.c.h.b16 %v108
    %v690 = vunpack.c.l.b16 %v109
    %v691 = vunpack.c.h.b16 %v109
    %v692 = vunpack.c.l.b16 %v110
    %v693 = vunpack.c.h.b16 %v110
    %v694 = vunpack.c.l.b16 %v111
    %v695 = vunpack.c.h.b16 %v111
    %v696 = vunpack.c.l.b16 %v112
    %v697 = vunpack.c.h.b16 %v112
    %v698 = vunpack.c.l.b16 %v113
    %v699 = vunpack.c.h.b16 %v113
    %v700 = vunpack.c.l.b16 %v114
    %v701 = vunpack.c.h.b16 %v114
    %v702 = vunpack.c.l.b16 %v115
    %v703 = vunpack.c.h.b16 %v115
    %v704 = vunpack.c.l.b16 %v116
    %v705 = vunpack.c.h.b16 %v116
    %v706 = vunpack.c.l.b16 %v117
    %v707 = vunpack.c.h.b16 %v117
    %v708 = vunpack.c.l.b16 %v118
    %v709 = vunpack.c.h.b16 %v118
    %v710 = vunpack.c.l.b16 %v119
    %v711 = vunpack.c.h.b16 %v119
    %v712 = vunpack.c.l.b16 %v120
    %v713 = vunpack.c.h.b16 %v120
    %v714 = vunpack.c.l.b16 %v121
    %v715 = vunpack.c.h.b16 %v121
    %v716 = vunpack.c.l.b16 %v122
    %v717 = vunpack.c.h.b16 %v122
    %v718 = vunpack.c.l.b16 %v123
    %v719 = vunpack.c.h.b16 %v123
    %v720 = vunpack.c.l.b16 %v124
    %v721 = vunpack.c.h.b16 %v124
    %v722 = vunpack.c.l.b16 %v125
    %v723 = vunpack.c.h.b16 %v125
    %v724 = vunpack.c.l.b16 %v126
    %v725 = vunpack.c.h.b16 %v126
    %v726 = vunpack.c.l.b16 %v127
    %v727 = vunpack.c.h.b16 %v127
    %v728 = vunpack.c.l.b16 %v128
    %v729 = vunpack.c.h.b16 %v128
    %v730 = vunpack.c.l.b16 %v129
    %v731 = vunpack.c.h.b16 %v129
    %v732 = vunpack.c.l.b16 %v130
    %v733 = vunpack.c.h.b16 %v130
    %v734 = vunpack.c.l.b16 %v131
    %v735 = vunpack.c.h.b16 %v131
    %v736 = vunpack.c.l.b16 %v132
    %v737 = vunpack.c.h.b16 %v132
    %v738 = vunpack.c.l.b16 %v133
    %v739 = vunpack.c.h.b16 %v133
    %v740 = vunpack.c.l.b16 %v134
    %v741 = vunpack.c.h.b16 %v134
    %v742 = vunpack.c.l.b16 %v135
    %v743 = vunpack.c.h.b16 %v135
    %v744 = vunpack.c.l.b16 %v136
    %v745 = vunpack.c.h.b16 %v136
    %v746 = vunpack.c.l.b16 %v137
    %v747 = vunpack.c.h.b16 %v137
    %v748 = vunpack.c.l.b16 %v138
    %v749 = vunpack.c.h.b16 %v138
    %v750 = vunpack.c.l.b16 %v139
    %v751 = vunpack.c.h.b16 %v139
    %v752 = vunpack.c.l.b16 %v140
    %v753 = vunpack.c.h.b16 %v140
    %v754 = vunpack.c.l.b16 %v141
    %v755 = vunpack.c.h.b16 %v141
    %v756 = vunpack.c.l.b16 %v142
    %v757 = vunpack.c.h.b16 %v142
    %v758 = vunpack.c.l.b16 %v143
    %v759 = vunpack.c.h.b16 %v143
    %v760 = vunpack.c.l.b16 %v144
    %v761 = vunpack.c.h.b16 %v144
    %v762 = vunpack.c.l.b16 %v145
    %v763 = vunpack.c.h.b16 %v145
    %v764 = vunpack.c.l.b16 %v146
    %v765 = vunpack.c.h.b16 %v146
    %v766 = vunpack.c.l.b16 %v147
    %v767 = vunpack.c.h.b16 %v147
    %v768 = vunpack.c.l.b16 %v148
    %v769 = vunpack.c.h.b16 %v148
    %v770 = vunpack.c.l.b16 %v149
    %v771 = vunpack.c.h.b16 %v149
    %v772 = vunpack.c.l.b16 %v150
    %v773 = vunpack.c.h.b16 %v150
    %v774 = vunpack.c.l.b16 %v151
    %v775 = vunpack.c.h.b16 %v151
    %v776 = vunpack.c.l.b16 %v152
    %v777 = vunpack.c.h.b16 %v152
    %v778 = vunpack.c.l.b16 %v153
    %v779 = vunpack.c.h.b16 %v153
    %v780 = vunpack.c.l.b16 %v154
    %v781 = vunpack.c.h.b16 %v154
    %v782 = vunpack.c.l.b16 %v155
    %v783 = vunpack.c.h.b16 %v155
    %v784 = vunpack.c.l.b16 %v156
    %v785 = vunpack.c.h.b16 %v156
    %v786 = vunpack.c.l.b16 %v157
    %v787 = vunpack.c.h.b16 %v157
    %v788 = vunpack.c.l.b16 %v158
    %v789 = vunpack.c.h.b16 %v158
    %v790 = vunpack.c.l.b16 %v159
    %v791 = vunpack.c.h.b16 %v159
    %v792 = vunpack.c.l.b16 %v160
    %v793 = vunpack.c.h.b16 %v160
    %v794 = vunpack.c.l.b16 %v161
    %v795 = vunpack.c.h.b16 %v161
    %v796 = vunpack.c.l.b16 %v162
    %v797 = vunpack.c.h.b16 %v162
    %v798 = vunpack.c.l.b16 %v163
    %v799 = vunpack.c.h.b16 %v163
    %v800 = vunpack.c.l.b16 %v164
    %v801 = vunpack.c.h.b16 %v164
    %v802 = vunpack.c.l.b16 %v165
    %v803 = vunpack.c.h.b16 %v165
    %v804 = vunpack.c.l.b16 %v166
    %v805 = vunpack.c.h.b16 %v166
    %v806 = vunpack.c.l.b16 %v167
    %v807 = vunpack.c.h.b16 %v167
    %v808 = vunpack.c.l.b16 %v168
    %v809 = vunpack.c.h.b16 %v168
    %v810 = vunpack.c.l.b16 %v169
    %v811 = vunpack.c.h.b16 %v169
    %v812 = vunpack.c.l.b16 %v170
    %v813 = vunpack.c.h.b16 %v170
    %v814 = vunpack.c.l.b16 %v171
    %v815 = vunpack.c.h.b16 %v171
    %v816 = vunpack.c.l.b16 %v172
    %v817 = vunpack.c.h.b16 %v172
    %v818 = vunpack.c.l.b16 %v173
    %v819 = vunpack.c.h.b16 %v173
    %v820 = vunpack.c.l.b16 %v174
    %v821 = vunpack.c.h.b16 %v174
    %v822 = vunpack.c.l.b16 %v175
    %v823 = vunpack.c.h.b16 %v175
    %v824 = vunpack.c.l.b16 %v176
    %v825 = vunpack.c.h.b16 %v176
    %v826 = vunpack.c.l.b16 %v177
    %v827 = vunpack.c.h.b16 %v177
    %v828 = vunpack.c.l.b16 %v178
    %v829 = vunpack.c.h.b16 %v178
    %v830 = vunpack.c.l.b16 %v179
    %v831 = vunpack.c.h.b16 %v179
    %v832 = vunpack.c.l.b16 %v180
    %v833 = vunpack.c.h.b16 %v180
    %v834 = vunpack.c.l.b16 %v181
    %v835 = vunpack.c.h.b16 %v181
    %v836 = vunpack.c.l.b16 %v182
    %v837 = vunpack.c.h.b16 %v182
    %v838 = vunpack.c.l.b16 %v183
    %v839 = vunpack.c.h.b16 %v183
    %v840 = vunpack.c.l.b16 %v184
    %v841 = vunpack.c.h.b16 %v184
    %v842 = vunpack.c.l.b16 %v185
    %v843 = vunpack.c.h.b16 %v185
    %v844 = vunpack.c.l.b16 %v186
    %v845 = vunpack.c.h.b16 %v186
    %v846 = vunpack.c.l.b16 %v187
    %v847 = vunpack.c.h.b16 %v187
    %v848 = vunpack.c.l.b16 %v188
    %v849 = vunpack.c.h.b16 %v188
    %v850 = vunpack.c.l.b16 %v189
    %v851 = vunpack.c.h.b16 %v189
    %v852 = vunpack.c.l.b16 %v190
    %v853 = vunpack.c.h.b16 %v190
    %v854 = vunpack.c.l.b16 %v191
    %v855 = vunpack.c.h.b16 %v191
    %v856 = vunpack.c.l.b16 %v192
    %v857 = vunpack.c.h.b16 %v192
    %v858 = vunpack.c.l.b16 %v193
    %v859 = vunpack.c.h.b16 %v193
    %v860 = vunpack.c.l.b16 %v194
    %v861 = vunpack.c.h.b16 %v194
    %v862 = vunpack.c.l.b16 %v195
    %v863 = vunpack.c.h.b16 %v195
    %v864 = vunpack.c.l.b16 %v196
    %v865 = vunpack.c.h.b16 %v196
    %v866 = vunpack.c.l.b16 %v197
    %v867 = vunpack.c.h.b16 %v197
    %v868 = vunpack.c.l.b16 %v198
    %v869 = vunpack.c.h.b16 %v198
    %v870 = vunpack.c.l.b16 %v199
    %v871 = vunpack.c.h.b16 %v199
    %v872 = vunpack.c.l.b16 %v200
    %v873 = vunpack.c.h.b16 %v200
    %v874 = vunpack.c.l.b16 %v201
    %v875 = vunpack.c.h.b16 %v201
    %v876 = vunpack.c.l.b16 %v202
    %v877 = vunpack.c.h.b16 %v202
    %v878 = vunpack.c.l.b16 %v203
    %v879 = vunpack.c.h.b16 %v203
    %v880 = vunpack.c.l.b16 %v204
    %v881 = vunpack.c.h.b16 %v204
    %v882 = vunpack.c.l.b16 %v205
    %v883 = vunpack.c.h.b16 %v205
    %v884 = vunpack.c.l.b16 %v206
    %v885 = vunpack.c.h.b16 %v206
    %v886 = vunpack.c.l.b16 %v207
    %v887 = vunpack.c.h.b16 %v207
    %v888 = vunpack.c.l.b16 %v208
    %v889 = vunpack.c.h.b16 %v208
    %v890 = vunpack.c.l.b16 %v209
    %v891 = vunpack.c.h.b16 %v209
    %v892 = vunpack.c.l.b16 %v210
    %v893 = vunpack.c.h.b16 %v210
    %v894 = vunpack.c.l.b16 %v211
    %v895 = vunpack.c.h.b16 %v211
    %v896 = vunpack.c.l.b16 %v212
    %v897 = vunpack.c.h.b16 %v212
    %v898 = vunpack.c.l.b16 %v213
    %v899 = vunpack.c.h.b16 %v213
    %v900 = vunpack.c.l.b16 %v214
    %v901 = vunpack.c.h.b16 %v214
    %v902 = vunpack.c.l.b16 %v215
    %v903 = vunpack.c.h.b16 %v215
    %v904 = vunpack.c.l.b16 %v216
    %v905 = vunpack.c.h.b16 %v216
    %v906 = vunpack.c.l.b16 %v217
    %v907 = vunpack.c.h.b16 %v217
    %v908 = vunpack.c.l.b16 %v218
    %v909 = vunpack.c.h.b16 %v218
    %v910 = vunpack.c.l.b16 %v219
    %v911 = vunpack.c.h.b16 %v219
    %v912 = vunpack.c.l.b16 %v220
    %v913 = vunpack.c.h.b16 %v220
    %v914 = vunpack.c.l.b16 %v221
    %v915 = vunpack.c.h.b16 %v221
    %v916 = vunpack.c.l.b16 %v222
    %v917 = vunpack.c.h.b16 %v222
    %v918 = vunpack.c.l.b16 %v223
    %v919 = vunpack.c.h.b16 %v223
    %v920 = vunpack.c.l.b16 %v224
    %v921 = vunpack.c.h.b16 %v224
    %v922 = vunpack.c.l.b16 %v225
    %v923 = vunpack.c.h.b16 %v225
    %v924 = vunpack.c.l.b16 %v226
    %v925 = vunpack.c.h.b16 %v226
    %v926 = vunpack.c.l.b16 %v227
    %v927 = vunpack.c.h.b16 %v227
    %v928 = vunpack.c.l.b16 %v228
    %v929 = vunpack.c.h.b16 %v228
    %v930 = vunpack.c.l.b16 %v229
    %v931 = vunpack.c.h.b16 %v229
    %v932 = vunpack.c.l.b16 %v230
    %v933 = vunpack.c.h.b16 %v230
    %v934 = vunpack.c.l.b16 %v231
    %v935 = vunpack.c.h.b16 %v231
    %v936 = vunpack.c.l.b16 %v232
    %v937 = vunpack.c.h.b16 %v232
    %v938 = vunpack.c.l.b16 %v233
    %v939 = vunpack.c.h.b16 %v233
    %v940 = vunpack.c.l.b16 %v234
    %v941 = vunpack.c.h.b16 %v234
    %v942 = vunpack.c.l.b16 %v235
    %v943 = vunpack.c.h.b16 %v235
    %v944 = vunpack.c.l.b16 %v236
    %v945 = vunpack.c.h.b16 %v236
    %v946 = vunpack.c.l.b16 %v237
    %v947 = vunpack.c.h.b16 %v237
    %v948 = vunpack.c.l.b16 %v238
    %v949 = vunpack.c.h.b16 %v238
    %v950 = vunpack.c.l.b16 %v239
    %v951 = vunpack.c.h.b16 %v239
    %v952 = vunpack.c.l.b16 %v240
    %v953 = vunpack.c.h.b16 %v240
    %v954 = vunpack.c.l.b16 %v241
    %v955 = vunpack.c.h.b16 %v241
    %v956 = vunpack.c.l.b16 %v242
    %v957 = vunpack.c.h.b16 %v242
    %v958 = vunpack.c.l.b16 %v243
    %v959 = vunpack.c.h.b16 %v243
    %v960 = vunpack.c.l.b16 %v244
    %v961 = vunpack.c.h.b16 %v244
    %v962 = vunpack.c.l.b16 %v245
    %v963 = vunpack.c.h.b16 %v245
    %v964 = vunpack.c.l.b16 %v246
    %v965 = vunpack.c.h.b16 %v246
    %v966 = vunpack.c.l.b16 %v247
    %v967 = vunpack.c.h.b16 %v247
    %v968 = vunpack.c.l.b16 %v248
    %v969 = vunpack.c.h.b16 %v248
    %v970 = vunpack.c.l.b16 %v249
    %v971 = vunpack.c.h.b16 %v249
    %v972 = vunpack.c.l.b16 %v250
    %v973 = vunpack.c.h.b16 %v250
    %v974 = vunpack.c.l.b16 %v251
    %v975 = vunpack.c.h.b16 %v251
    %v976 = vunpack.c.l.b16 %v252
    %v977 = vunpack.c.h.b16 %v252
    %v978 = vunpack.c.l.b16 %v253
    %v979 = vunpack.c.h.b16 %v253
    %v980 = vunpack.c.l.b16 %v254
    %v981 = vunpack.c.h.b16 %v254
    %v982 = vunpack.c.l.b16 %v255
    %v983 = vunpack.c.h.b16 %v255
    %v984 = vunpack.c.l.b16 %v256
    %v985 = vunpack.c.h.b16 %v256
    %v986 = vunpack.c.l.b16 %v257
    %v987 = vunpack.c.h.b16 %v257
    %v988 = vunpack.c.l.b16 %v258
    %v989 = vunpack.c.h.b16 %v258
    %v990 = vunpack.c.l.b16 %v259
    %v991 = vunpack.c.h.b16 %v259
    %v992 = vunpack.c.l.b16 %v260
    %v993 = vunpack.c.h.b16 %v260
    %v994 = vunpack.c.l.b16 %v261
    %v995 = vunpack.c.h.b16 %v261
    %v996 = vunpack.c.l.b16 %v262
    %v997 = vunpack.c.h.b16 %v262
    %v998 = vunpack.c.l.b16 %v263
    %v999 = vunpack.c.h.b16 %v263
    %v1000 = vunpack.c.l.b16 %v264
    %v1001 = vunpack.c.h.b16 %v264
    %v1002 = vunpack.c.l.b16 %v265
    %v1003 = vunpack.c.h.b16 %v265
    %v1004 = vunpack.c.l.b16 %v266
    %v1005 = vunpack.c.h.b16 %v266
    %v1006 = vunpack.c.l.b16 %v267
    %v1007 = vunpack.c.h.b16 %v267
    %v1008 = vunpack.c.l.b16 %v268
    %v1009 = vunpack.c.h.b16 %v268
    %v1010 = vunpack.c.l.b16 %v269
    %v1011 = vunpack.c.h.b16 %v269
    %v1012 = vunpack.c.l.b16 %v270
    %v1013 = vunpack.c.h.b16 %v270
    %v1014 = vunpack.c.l.b16 %v271
    %v1015 = vunpack.c.h.b16 %v271
    %v1016 = vunpack.c.l.b16 %v272
    %v1017 = vunpack.c.h.b16 %v272
    %v1018 = vunpack.c.l.b16 %v273
    %v1019 = vunpack.c.h.b16 %v273
    %v1020 = vunpack.c.l.b16 %v274
    %v1021 = vunpack.c.h.b16 %v274
    %v1022 = vunpack.c.l.b16 %v275
    %v1023 = vunpack.c.h.b16 %v275
    %v1024 = vunpack.c.l.b16 %v276
    %v1025 = vunpack.c.h.b16 %v276
    %v1026 = vunpack.c.l.b16 %v277
    %v1027 = vunpack.c.h.b16 %v277
    %v1028 = vunpack.c.l.b16 %v278
    %v1029 = vunpack.c.h.b16 %v278
    %v1030 = vunpack.c.l.b16 %v279
    %v1031 = vunpack.c.h.b16 %v279
    %v1032 = vunpack.c.l.b16 %v280
    %v1033 = vunpack.c.h.b16 %v280
    %v1034 = vunpack.c.l.b16 %v281
    %v1035 = vunpack.c.h.b16 %v281
    %v1036 = vunpack.c.l.b16 %v282
    %v1037 = vunpack.c.h.b16 %v282
    %v1038 = vunpack.c.l.b16 %v283
    %v1039 = vunpack.c.h.b16 %v283
    %v1040 = vunpack.c.l.b16 %v284
    %v1041 = vunpack.c.h.b16 %v284
    %v1042 = vunpack.c.l.b16 %v285
    %v1043 = vunpack.c.h.b16 %v285
    %v1044 = vunpack.c.l.b16 %v286
    %v1045 = vunpack.c.h.b16 %v286
    %v1046 = vunpack.c.l.b16 %v287
    %v1047 = vunpack.c.h.b16 %v287
    %v1048 = vunpack.c.l.b16 %v288
    %v1049 = vunpack.c.h.b16 %v288
    %v1050 = vunpack.c.l.b16 %v289
    %v1051 = vunpack.c.h.b16 %v289
    %v1052 = vunpack.c.l.b16 %v290
    %v1053 = vunpack.c.h.b16 %v290
    %v1054 = vunpack.c.l.b16 %v291
    %v1055 = vunpack.c.h.b16 %v291
    %v1056 = vunpack.c.l.b16 %v292
    %v1057 = vunpack.c.h.b16 %v292
    %v1058 = vunpack.c.l.b16 %v293
    %v1059 = vunpack.c.h.b16 %v293
    %v1060 = vunpack.c.l.b16 %v294
    %v1061 = vunpack.c.h.b16 %v294
    %v1062 = vunpack.c.l.b16 %v295
    %v1063 = vunpack.c.h.b16 %v295
    %v1064 = vunpack.c.l.b16 %v296
    %v1065 = vunpack.c.h.b16 %v296
    %v1066 = vunpack.c.l.b16 %v297
    %v1067 = vunpack.c.h.b16 %v297
    %v1068 = vunpack.c.l.b16 %v298
    %v1069 = vunpack.c.h.b16 %v298
    %v1070 = vunpack.c.l.b16 %v299
    %v1071 = vunpack.c.h.b16 %v299
    %v1072 = vunpack.c.l.b16 %v300
    %v1073 = vunpack.c.h.b16 %v300
    %v1074 = vunpack.c.l.b16 %v301
    %v1075 = vunpack.c.h.b16 %v301
    %v1076 = vunpack.c.l.b16 %v302
    %v1077 = vunpack.c.h.b16 %v302
    %v1078 = vunpack.c.l.b16 %v303
    %v1079 = vunpack.c.h.b16 %v303
    %v1080 = vunpack.c.l.b16 %v304
    %v1081 = vunpack.c.h.b16 %v304
    %v1082 = vunpack.c.l.b16 %v305
    %v1083 = vunpack.c.h.b16 %v305
    %v1084 = vunpack.c.l.b16 %v306
    %v1085 = vunpack.c.h.b16 %v306
    %v1086 = vunpack.c.l.b16 %v307
    %v1087 = vunpack.c.h.b16 %v307
    %v1088 = vunpack.c.l.b16 %v308
    %v1089 = vunpack.c.h.b16 %v308
    %v1090 = vunpack.c.l.b16 %v309
    %v1091 = vunpack.c.h.b16 %v309
    %v1092 = vunpack.c.l.b16 %v310
    %v1093 = vunpack.c.h.b16 %v310
    %v1094 = vunpack.c.l.b16 %v311
    %v1095 = vunpack.c.h.b16 %v311
    %v1096 = vunpack.c.l.b16 %v312
    %v1097 = vunpack.c.h.b16 %v312
    %v1098 = vunpack.c.l.b16 %v313
    %v1099 = vunpack.c.h.b16 %v313
    %v1100 = vunpack.c.l.b16 %v314
    %v1101 = vunpack.c.h.b16 %v314
    %v1102 = vunpack.c.l.b16 %v315
    %v1103 = vunpack.c.h.b16 %v315
    %v1104 = vunpack.c.l.b16 %v316
    %v1105 = vunpack.c.h.b16 %v316
    %v1106 = vunpack.c.l.b16 %v317
    %v1107 = vunpack.c.h.b16 %v317
    %v1108 = vunpack.c.l.b16 %v318
    %v1109 = vunpack.c.h.b16 %v318
    %v1110 = vunpack.c.l.b16 %v319
    %v1111 = vunpack.c.h.b16 %v319
    %v1112 = vunpack.c.l.b16 %v320
    %v1113 = vunpack.c.h.b16 %v320
    %v1114 = vunpack.c.l.b16 %v321
    %v1115 = vunpack.c.h.b16 %v321
    %v1116 = vunpack.c.l.b16 %v322
    %v1117 = vunpack.c.h.b16 %v322
    %v1118 = vunpack.c.l.b16 %v323
    %v1119 = vunpack.c.h.b16 %v323
    %v1120 = vunpack.c.l.b16 %v324
    %v1121 = vunpack.c.h.b16 %v324
    %v1122 = vunpack.c.l.b16 %v325
    %v1123 = vunpack.c.h.b16 %v325
    %v1124 = vunpack.c.l.b16 %v326
    %v1125 = vunpack.c.h.b16 %v326
    %v1126 = vunpack.c.l.b16 %v327
    %v1127 = vunpack.c.h.b16 %v327
    %v1128 = vunpack.c.l.b16 %v328
    %v1129 = vunpack.c.h.b16 %v328
    %v1130 = vunpack.c.l.b16 %v329
    %v1131 = vunpack.c.h.b16 %v329
    %v1132 = vunpack.c.l.b16 %v330
    %v1133 = vunpack.c.h.b16 %v330
    %v1134 = vunpack.c.l.b16 %v331
    %v1135 = vunpack.c.h.b16 %v331
    %v1136 = vunpack.c.l.b16 %v332
    %v1137 = vunpack.c.h.b16 %v332
    %v1138 = vunpack.c.l.b16 %v333
    %v1139 = vunpack.c.h.b16 %v333
    %v1140 = vunpack.c.l.b16 %v334
    %v1141 = vunpack.c.h.b16 %v334
    %v1142 = vunpack.c.l.b16 %v335
    %v1143 = vunpack.c.h.b16 %v335
    %v1144 = vunpack.c.l.b16 %v336
    %v1145 = vunpack.c.h.b16 %v336
    %v1146 = vunpack.c.l.b16 %v337
    %v1147 = vunpack.c.h.b16 %v337
    %v1148 = vunpack.c.l.b16 %v338
    %v1149 = vunpack.c.h.b16 %v338
    %v1150 = vunpack.c.l.b16 %v339
    %v1151 = vunpack.c.h.b16 %v339
    %v1152 = vunpack.c.l.b16 %v340
    %v1153 = vunpack.c.h.b16 %v340
    %v1154 = vunpack.c.l.b16 %v341
    %v1155 = vunpack.c.h.b16 %v341
    %v1156 = vunpack.c.l.b16 %v342
    %v1157 = vunpack.c.h.b16 %v342
    %v1158 = vunpack.c.l.b16 %v343
    %v1159 = vunpack.c.h.b16 %v343
    %v1160 = vunpack.c.l.b16 %v344
    %v1161 = vunpack.c.h.b16 %v344
    %v1162 = vunpack.c.l.b16 %v345
    %v1163 = vunpack.c.h.b16 %v345
    %v1164 = vpack.c.b16 %v656, %v652
    %v1165 = vpack.c.b16 %v657, %v653
    %v1166 = vpack.c.b16 %v658, %v654
    %v1167 = vpack.c.b16 %v659, %v655
    %v1168 = vpack.c.b16 %v664, %v660
    %v1169 = vpack.c.b16 %v665, %v661
    %v1170 = vpack.c.b16 %v666, %v662
    %v1171 = vpack.c.b16 %v667, %v663
    %v1172 = vpack.c.b16 %v672, %v668
    %v1173 = vpack.c.b16 %v673, %v669
    %v1174 = vpack.c.b16 %v674, %v670
    %v1175 = vpack.c.b16 %v675, %v671
    %v1176 = vpack.c.b16 %v680, %v676
    %v1177 = vpack.c.b16 %v681, %v677
    %v1178 = vpack.c.b16 %v682, %v678
    %v1179 = vpack.c.b16 %v683, %v679
    %v1180 = vpack.c.b16 %v688, %v684
    %v1181 = vpack.c.b16 %v689, %v685
    %v1182 = vpack.c.b16 %v690, %v686
    %v1183 = vpack.c.b16 %v691, %v687
    %v1184 = vpack.c.b16 %v696, %v692
    %v1185 = vpack.c.b16 %v697, %v693
    %v1186 = vpack.c.b16 %v698, %v694
    %v1187 = vpack.c.b16 %v699, %v695
    %v1188 = vpack.c.b16 %v704, %v700
    %v1189 = vpack.c.b16 %v705, %v701
    %v1190 = vpack.c.b16 %v706, %v702
    %v1191 = vpack.c.b16 %v707, %v703
    %v1192 = vpack.c.b16 %v712, %v708
    %v1193 = vpack.c.b16 %v713, %v709
    %v1194 = vpack.c.b16 %v714, %v710
    %v1195 = vpack.c.b16 %v715, %v711
    %v1196 = vpack.c.b16 %v720, %v716
    %v1197 = vpack.c.b16 %v721, %v717
    %v1198 = vpack.c.b16 %v722, %v718
    %v1199 = vpack.c.b16 %v723, %v719
    %v1200 = vpack.c.b16 %v728, %v724
    %v1201 = vpack.c.b16 %v729, %v725
    %v1202 = vpack.c.b16 %v730, %v726
    %v1203 = vpack.c.b16 %v731, %v727
    %v1204 = vpack.c.b16 %v736, %v732
    %v1205 = vpack.c.b16 %v737, %v733
    %v1206 = vpack.c.b16 %v738, %v734
    %v1207 = vpack.c.b16 %v739, %v735
    %v1208 = vpack.c.b16 %v744, %v740
    %v1209 = vpack.c.b16 %v745, %v741
    %v1210 = vpack.c.b16 %v746, %v742
    %v1211 = vpack.c.b16 %v747, %v743
    %v1212 = vpack.c.b16 %v752, %v748
    %v1213 = vpack.c.b16 %v753, %v749
    %v1214 = vpack.c.b16 %v754, %v750
    %v1215 = vpack.c.b16 %v755, %v751
    %v1216 = vpack.c.b16 %v760, %v756
    %v1217 = vpack.c.b16 %v761, %v757
    %v1218 = vpack.c.b16 %v762, %v758
    %v1219 = vpack.c.b16 %v763, %v759
    %v1220 = vpack.c.b16 %v768, %v764
    %v1221 = vpack.c.b16 %v769, %v765
    %v1222 = vpack.c.b16 %v770, %v766
    %v1223 = vpack.c.b16 %v771, %v767
    %v1224 = vpack.c.b16 %v776, %v772
    %v1225 = vpack.c.b16 %v777, %v773
    %v1226 = vpack.c.b16 %v778, %v774
    %v1227 = vpack.c.b16 %v779, %v775
    %v1228 = vpack.c.b16 %v784, %v780
    %v1229 = vpack.c.b16 %v785, %v781
    %v1230 = vpack.c.b16 %v786, %v782
    %v1231 = vpack.c.b16 %v787, %v783
    %v1232 = vpack.c.b16 %v792, %v788
    %v1233 = vpack.c.b16 %v793, %v789
    %v1234 = vpack.c.b16 %v794, %v790
    %v1235 = vpack.c.b16 %v795, %v791
    %v1236 = vpack.c.b16 %v800, %v796
    %v1237 = vpack.c.b16 %v801, %v797
    %v1238 = vpack.c.b16 %v802, %v798
    %v1239 = vpack.c.b16 %v803, %v799
    %v1240 = vpack.c.b16 %v808, %v804
    %v1241 = vpack.c.b16 %v809, %v805
    %v1242 = vpack.c.b16 %v810, %v806
    %v1243 = vpack.c.b16 %v811, %v807
    %v1244 = vpack.c.b16 %v816, %v812
    %v1245 = vpack.c.b16 %v817, %v813
    %v1246 = vpack.c.b16 %v818, %v814
    %v1247 = vpack.c.b16 %v819, %v815
    %v1248 = vpack.c.b16 %v824, %v820
    %v1249 = vpack.c.b16 %v825, %v821
    %v1250 = vpack.c.b16 %v826, %v822
    %v1251 = vpack.c.b16 %v827, %v823
    %v1252 = vpack.c.b16 %v832, %v828
    %v1253 = vpack.c.b16 %v833, %v829
    %v1254 = vpack.c.b16 %v834, %v830
    %v1255 = vpack.c.b16 %v835, %v831
    %v1256 = vpack.c.b16 %v840, %v836
    %v1257 = vpack.c.b16 %v841, %v837
    %v1258 = vpack.c.b16 %v842, %v838
    %v1259 = vpack.c.b16 %v843, %v839
    %v1260 = vpack.c.b16 %v848, %v844
    %v1261 = vpack.c.b16 %v849, %v845
    %v1262 = vpack.c.b16 %v850, %v846
    %v1263 = vpack.c.b16 %v851, %v847
    %v1264 = vpack.c.b16 %v856, %v852
    %v1265 = vpack.c.b16 %v857, %v853
    %v1266 = vpack.c.b16 %v858, %v854
    %v1267 = vpack.c.b16 %v859, %v855
    %v1268 = vpack.c.b16 %v864, %v860
    %v1269 = vpack.c.b16 %v865, %v861
    %v1270 = vpack.c.b16 %v866, %v862
    %v1271 = vpack.c.b16 %v867, %v863
    %v1272 = vpack.c.b16 %v872, %v868
    %v1273 = vpack.c.b16 %v873, %v869
    %v1274 = vpack.c.b16 %v874, %v870
    %v1275 = vpack.c.b16 %v875, %v871
    %v1276 = vpack.c.b16 %v880, %v876
    %v1277 = vpack.c.b16 %v881, %v877
    %v1278 = vpack.c.b16 %v882, %v878
    %v1279 = vpack.c.b16 %v883, %v879
    %v1280 = vpack.c.b16 %v888, %v884
    %v1281 = vpack.c.b16 %v889, %v885
    %v1282 = vpack.c.b16 %v890, %v886
    %v1283 = vpack.c.b16 %v891, %v887
    %v1284 = vpack.c.b16 %v896, %v892
    %v1285 = vpack.c.b16 %v897, %v893
    %v1286 = vpack.c.b16 %v898, %v894
    %v1287 = vpack.c.b16 %v899, %v895
    %v1288 = vpack.c.b16 %v904, %v900
    %v1289 = vpack.c.b16 %v905, %v901
    %v1290 = vpack.c.b16 %v906, %v902
    %v1291 = vpack.c.b16 %v907, %v903
    %v1292 = vpack.c.b16 %v912, %v908
    %v1293 = vpack.c.b16 %v913, %v909
    %v1294 = vpack.c.b16 %v914, %v910
    %v1295 = vpack.c.b16 %v915, %v911
    %v1296 = vpack.c.b16 %v920, %v916
    %v1297 = vpack.c.b16 %v921, %v917
    %v1298 = vpack.c.b16 %v922, %v918
    %v1299 = vpack.c.b16 %v923, %v919
    %v1300 = vpack.c.b16 %v928, %v924
    %v1301 = vpack.c.b16 %v929, %v925
    %v1302 = vpack.c.b16 %v930, %v926
    %v1303 = vpack.c.b16 %v931, %v927
    %v1304 = vpack.c.b16 %v936, %v932
    %v1305 = vpack.c.b16 %v937, %v933
    %v1306 = vpack.c.b16 %v938, %v934
    %v1307 = vpack.c.b16 %v939, %v935
    %v1308 = vpack.c.b16 %v944, %v940
    %v1309 = vpack.c.b16 %v945, %v941
    %v1310 = vpack.c.b16 %v946, %v942
    %v1311 = vpack.c.b16 %v947, %v943
    %v1312 = vpack.c.b16 %v952, %v948
    %v1313 = vpack.c.b16 %v953, %v949
    %v1314 = vpack.c.b16 %v954, %v950
    %v1315 = vpack.c.b16 %v955, %v951
    %v1316 = vpack.c.b16 %v960, %v956
    %v1317 = vpack.c.b16 %v961, %v957
    %v1318 = vpack.c.b16 %v962, %v958
    %v1319 = vpack.c.b16 %v963, %v959
    %v1320 = vpack.c.b16 %v968, %v964
    %v1321 = vpack.c.b16 %v969, %v965
    %v1322 = vpack.c.b16 %v970, %v966
    %v1323 = vpack.c.b16 %v971, %v967
    %v1324 = vpack.c.b16 %v976, %v972
    %v1325 = vpack.c.b16 %v977, %v973
    %v1326 = vpack.c.b16 %v978, %v974
    %v1327 = vpack.c.b16 %v979, %v975
    %v1328 = vpack.c.b16 %v984, %v980
    %v1329 = vpack.c.b16 %v985, %v981
    %v1330 = vpack.c.b16 %v986, %v982
    %v1331 = vpack.c.b16 %v987, %v983
    %v1332 = vpack.c.b16 %v992, %v988
    %v1333 = vpack.c.b16 %v993, %v989
    %v1334 = vpack.c.b16 %v994, %v990
    %v1335 = vpack.c.b16 %v995, %v991
    %v1336 = vpack.c.b16 %v1000, %v996
    %v1337 = vpack.c.b16 %v1001, %v997
    %v1338 = vpack.c.b16 %v1002, %v998
    %v1339 = vpack.c.b16 %v1003, %v999
    %v1340 = vpack.c.b16 %v1008, %v1004
    %v1341 = vpack.c.b16 %v1009, %v1005
    %v1342 = vpack.c.b16 %v1010, %v1006
    %v1343 = vpack.c.b16 %v1011, %v1007
    %v1344 = vpack.c.b16 %v1016, %v1012
    %v1345 = vpack.c.b16 %v1017, %v1013
    %v1346 = vpack.c.b16 %v1018, %v1014
    %v1347 = vpack.c.b16 %v1019, %v1015
    %v1348 = vpack.c.b16 %v1024, %v1020
    %v1349 = vpack.c.b16 %v1025, %v1021
    %v1350 = vpack.c.b16 %v1026, %v1022
    %v1351 = vpack.c.b16 %v1027, %v1023
    %v1352 = vpack.c.b16 %v1032, %v1028
    %v1353 = vpack.c.b16 %v1033, %v1029
    %v1354 = vpack.c.b16 %v1034, %v1030
    %v1355 = vpack.c.b16 %v1035, %v1031
    %v1356 = vpack.c.b16 %v1040, %v1036
    %v1357 = vpack.c.b16 %v1041, %v1037
    %v1358 = vpack.c.b16 %v1042, %v1038
    %v1359 = vpack.c.b16 %v1043, %v1039
    %v1360 = vpack.c.b16 %v1048, %v1044
    %v1361 = vpack.c.b16 %v1049, %v1045
    %v1362 = vpack.c.b16 %v1050, %v1046
    %v1363 = vpack.c.b16 %v1051, %v1047
    %v1364 = vpack.c.b16 %v1056, %v1052
    %v1365 = vpack.c.b16 %v1057, %v1053
    %v1366 = vpack.c.b16 %v1058, %v1054
    %v1367 = vpack.c.b16 %v1059, %v1055
    %v1368 = vpack.c.b16 %v1064, %v1060
    %v1369 = vpack.c.b16 %v1065, %v1061
    %v1370 = vpack.c.b16 %v1066, %v1062
    %v1371 = vpack.c.b16 %v1067, %v1063
    %v1372 = vpack.c.b16 %v1072, %v1068
    %v1373 = vpack.c.b16 %v1073, %v1069
    %v1374 = vpack.c.b16 %v1074, %v1070
    %v1375 = vpack.c.b16 %v1075, %v1071
    %v1376 = vpack.c.b16 %v1080, %v1076
    %v1377 = vpack.c.b16 %v1081, %v1077
    %v1378 = vpack.c.b16 %v1082, %v1078
    %v1379 = vpack.c.b16 %v1083, %v1079
    %v1380 = vpack.c.b16 %v1088, %v1084
    %v1381 = vpack.c.b16 %v1089, %v1085
    %v1382 = vpack.c.b16 %v1090, %v1086
    %v1383 = vpack.c.b16 %v1091, %v1087
    %v1384 = vpack.c.b16 %v1096, %v1092
    %v1385 = vpack.c.b16 %v1097, %v1093
    %v1386 = vpack.c.b16 %v1098, %v1094
    %v1387 = vpack.c.b16 %v1099, %v1095
    %v1388 = vpack.c.b16 %v1104, %v1100
    %v1389 = vpack.c.b16 %v1105, %v1101
    %v1390 = vpack.c.b16 %v1106, %v1102
    %v1391 = vpack.c.b16 %v1107, %v1103
    %v1392 = vpack.c.b16 %v1112, %v1108
    %v1393 = vpack.c.b16 %v1113, %v1109
    %v1394 = vpack.c.b16 %v1114, %v1110
    %v1395 = vpack.c.b16 %v1115, %v1111
    %v1396 = vpack.c.b16 %v1120, %v1116
    %v1397 = vpack.c.b16 %v1121, %v1117
    %v1398 = vpack.c.b16 %v1122, %v1118
    %v1399 = vpack.c.b16 %v1123, %v1119
    %v1400 = vpack.c.b16 %v1128, %v1124
    %v1401 = vpack.c.b16 %v1129, %v1125
    %v1402 = vpack.c.b16 %v1130, %v1126
    %v1403 = vpack.c.b16 %v1131, %v1127
    %v1404 = vpack.c.b16 %v1136, %v1132
    %v1405 = vpack.c.b16 %v1137, %v1133
    %v1406 = vpack.c.b16 %v1138, %v1134
    %v1407 = vpack.c.b16 %v1139, %v1135
    %v1408 = vpack.c.b16 %v1144, %v1140
    %v1409 = vpack.c.b16 %v1145, %v1141
    %v1410 = vpack.c.b16 %v1146, %v1142
    %v1411 = vpack.c.b16 %v1147, %v1143
    %v1412 = vpack.c.b16 %v1152, %v1148
    %v1413 = vpack.c.b16 %v1153, %v1149
    %v1414 = vpack.c.b16 %v1154, %v1150
    %v1415 = vpack.c.b16 %v1155, %v1151
    %v1416 = vpack.c.b16 %v1160, %v1156
    %v1417 = vpack.c.b16 %v1161, %v1157
    %v1418 = vpack.c.b16 %v1162, %v1158
    %v1419 = vpack.c.b16 %v1163, %v1159
    %1676 = vmatprep.subr.bf16.mxu0 %v1165
    %1677 = vmatpush1.bf16.msra.mxu0 %v1164
    %1678 = vmatprep.subr.bf16.mxu0 %v1169
    %1679 = vmatpush1.bf16.msra.mxu0 %v1168
    %1680 = vmatprep.subr.bf16.mxu0 %v1173
    %1681 = vmatpush1.bf16.msra.mxu0 %v1172
    %1682 = vmatprep.subr.bf16.mxu0 %v1177
    %1683 = vmatpush1.bf16.msra.mxu0 %v1176
    %1684 = vmatprep.subr.bf16.mxu0 %v1181
    %1685 = vmatpush1.bf16.msra.mxu0 %v1180
    %1686 = vmatprep.subr.bf16.mxu0 %v1185
    %1687 = vmatpush1.bf16.msra.mxu0 %v1184
    %1688 = vmatprep.subr.bf16.mxu0 %v1189
    %1689 = vmatpush1.bf16.msra.mxu0 %v1188
    %1690 = vmatprep.subr.bf16.mxu0 %v1193
    %1691 = vmatpush1.bf16.msra.mxu0 %v1192
    %1692 = vmatprep.subr.bf16.mxu0 %v1197
    %1693 = vmatpush1.bf16.msra.mxu0 %v1196
    %1694 = vmatprep.subr.bf16.mxu0 %v1201
    %1695 = vmatpush1.bf16.msra.mxu0 %v1200
    %1696 = vmatprep.subr.bf16.mxu0 %v1205
    %1697 = vmatpush1.bf16.msra.mxu0 %v1204
    %1698 = vmatprep.subr.bf16.mxu0 %v1209
    %1699 = vmatpush1.bf16.msra.mxu0 %v1208
    %1700 = vmatprep.subr.bf16.mxu0 %v1213
    %1701 = vmatpush1.bf16.msra.mxu0 %v1212
    %1702 = vmatprep.subr.bf16.mxu0 %v1217
    %1703 = vmatpush1.bf16.msra.mxu0 %v1216
    %1704 = vmatprep.subr.bf16.mxu0 %v1221
    %1705 = vmatpush1.bf16.msra.mxu0 %v1220
    %1706 = vmatprep.subr.bf16.mxu0 %v1225
    %1707 = vmatpush1.bf16.msra.mxu0 %v1224
    %1708 = vmatprep.mubr.bf16.mxu0 %v381
    %1709 = vmatmul.mubr.bf16.gmra.mrb[0].mxu0 %v380
    %v1710 = vpop.f32.mrb[0].mxu0
    %v1711 = vadd.f32 %v351, %v1710
    %v1712 = vpop.f32.mrb[0].mxu0
    %v1713 = vadd.f32 %v355, %v1712
    %v1714 = vpop.f32.mrb[0].mxu0
    %v1715 = vpop.f32.mrb[0].mxu0
    %1716 = vdwg.mxu0
    %1717 = vmatprep.subr.bf16.mxu0 %v1229
    %1718 = vmatpush1.bf16.msra.mxu0 %v1228
    %1719 = vmatprep.subr.bf16.mxu0 %v1233
    %1720 = vmatpush1.bf16.msra.mxu0 %v1232
    %1721 = vmatprep.subr.bf16.mxu0 %v1237
    %1722 = vmatpush1.bf16.msra.mxu0 %v1236
    %1723 = vmatprep.subr.bf16.mxu0 %v1241
    %1724 = vmatpush1.bf16.msra.mxu0 %v1240
    %1725 = vmatprep.subr.bf16.mxu0 %v1245
    %1726 = vmatpush1.bf16.msra.mxu0 %v1244
    %1727 = vmatprep.subr.bf16.mxu0 %v1249
    %1728 = vmatpush1.bf16.msra.mxu0 %v1248
    %1729 = vmatprep.subr.bf16.mxu0 %v1253
    %1730 = vmatpush1.bf16.msra.mxu0 %v1252
    %1731 = vmatprep.subr.bf16.mxu0 %v1257
    %1732 = vmatpush1.bf16.msra.mxu0 %v1256
    %1733 = vmatprep.subr.bf16.mxu0 %v1261
    %1734 = vmatpush1.bf16.msra.mxu0 %v1260
    %1735 = vmatprep.subr.bf16.mxu0 %v1265
    %1736 = vmatpush1.bf16.msra.mxu0 %v1264
    %1737 = vmatprep.subr.bf16.mxu0 %v1269
    %1738 = vmatpush1.bf16.msra.mxu0 %v1268
    %1739 = vmatprep.subr.bf16.mxu0 %v1273
    %1740 = vmatpush1.bf16.msra.mxu0 %v1272
    %1741 = vmatprep.subr.bf16.mxu0 %v1277
    %1742 = vmatpush1.bf16.msra.mxu0 %v1276
    %1743 = vmatprep.subr.bf16.mxu0 %v1281
    %1744 = vmatpush1.bf16.msra.mxu0 %v1280
    %1745 = vmatprep.subr.bf16.mxu0 %v1285
    %1746 = vmatpush1.bf16.msra.mxu0 %v1284
    %1747 = vmatprep.subr.bf16.mxu0 %v1289
    %1748 = vmatpush1.bf16.msra.mxu0 %v1288
    %1749 = vmatprep.mubr.bf16.mxu0 %v383
    %1750 = vmatmul.mubr.bf16.gmra.mrb[0].mxu0 %v382
    %v1751 = vpop.f32.mrb[0].mxu0
    %v1752 = vadd.f32 %v1711, %v1751
    %v1753 = vpop.f32.mrb[0].mxu0
    %v1754 = vadd.f32 %v1713, %v1753
    %v1755 = vpop.f32.mrb[0].mxu0
    %v1756 = vpop.f32.mrb[0].mxu0
    %1757 = vdwg.mxu0
    %1758 = vmatprep.subr.bf16.mxu0 %v1293
    %1759 = vmatpush1.bf16.msra.mxu0 %v1292
    %1760 = vmatprep.subr.bf16.mxu0 %v1297
    %1761 = vmatpush1.bf16.msra.mxu0 %v1296
    %1762 = vmatprep.subr.bf16.mxu0 %v1301
    %1763 = vmatpush1.bf16.msra.mxu0 %v1300
    %1764 = vmatprep.subr.bf16.mxu0 %v1305
    %1765 = vmatpush1.bf16.msra.mxu0 %v1304
    %1766 = vmatprep.subr.bf16.mxu0 %v1309
    %1767 = vmatpush1.bf16.msra.mxu0 %v1308
    %1768 = vmatprep.subr.bf16.mxu0 %v1313
    %1769 = vmatpush1.bf16.msra.mxu0 %v1312
    %1770 = vmatprep.subr.bf16.mxu0 %v1317
    %1771 = vmatpush1.bf16.msra.mxu0 %v1316
    %1772 = vmatprep.subr.bf16.mxu0 %v1321
    %1773 = vmatpush1.bf16.msra.mxu0 %v1320
    %1774 = vmatprep.subr.bf16.mxu0 %v1325
    %1775 = vmatpush1.bf16.msra.mxu0 %v1324
    %1776 = vmatprep.subr.bf16.mxu0 %v1329
    %1777 = vmatpush1.bf16.msra.mxu0 %v1328
    %1778 = vmatprep.subr.bf16.mxu0 %v1333
    %1779 = vmatpush1.bf16.msra.mxu0 %v1332
    %1780 = vmatprep.subr.bf16.mxu0 %v1337
    %1781 = vmatpush1.bf16.msra.mxu0 %v1336
    %1782 = vmatprep.subr.bf16.mxu0 %v1341
    %1783 = vmatpush1.bf16.msra.mxu0 %v1340
    %1784 = vmatprep.subr.bf16.mxu0 %v1345
    %1785 = vmatpush1.bf16.msra.mxu0 %v1344
    %1786 = vmatprep.subr.bf16.mxu0 %v1349
    %1787 = vmatpush1.bf16.msra.mxu0 %v1348
    %1788 = vmatprep.subr.bf16.mxu0 %v1353
    %1789 = vmatpush1.bf16.msra.mxu0 %v1352
    %1790 = vmatprep.mubr.bf16.mxu0 %v385
    %1791 = vmatmul.mubr.bf16.gmra.mrb[0].mxu0 %v384
    %v1792 = vpop.f32.mrb[0].mxu0
    %v1793 = vadd.f32 %v1752, %v1792
    %v1794 = vpop.f32.mrb[0].mxu0
    %v1795 = vadd.f32 %v1754, %v1794
    %v1796 = vpop.f32.mrb[0].mxu0
    %v1797 = vpop.f32.mrb[0].mxu0
    %1798 = vdwg.mxu0
    %1799 = vmatprep.subr.bf16.mxu0 %v1357
    %1800 = vmatpush1.bf16.msra.mxu0 %v1356
    %1801 = vmatprep.subr.bf16.mxu0 %v1361
    %1802 = vmatpush1.bf16.msra.mxu0 %v1360
    %1803 = vmatprep.subr.bf16.mxu0 %v1365
    %1804 = vmatpush1.bf16.msra.mxu0 %v1364
    %1805 = vmatprep.subr.bf16.mxu0 %v1369
    %1806 = vmatpush1.bf16.msra.mxu0 %v1368
    %1807 = vmatprep.subr.bf16.mxu0 %v1373
    %1808 = vmatpush1.bf16.msra.mxu0 %v1372
    %1809 = vmatprep.subr.bf16.mxu0 %v1377
    %1810 = vmatpush1.bf16.msra.mxu0 %v1376
    %1811 = vmatprep.subr.bf16.mxu0 %v1381
    %1812 = vmatpush1.bf16.msra.mxu0 %v1380
    %1813 = vmatprep.subr.bf16.mxu0 %v1385
    %1814 = vmatpush1.bf16.msra.mxu0 %v1384
    %1815 = vmatprep.subr.bf16.mxu0 %v1389
    %1816 = vmatpush1.bf16.msra.mxu0 %v1388
    %1817 = vmatprep.subr.bf16.mxu0 %v1393
    %1818 = vmatpush1.bf16.msra.mxu0 %v1392
    %1819 = vmatprep.subr.bf16.mxu0 %v1397
    %1820 = vmatpush1.bf16.msra.mxu0 %v1396
    %1821 = vmatprep.subr.bf16.mxu0 %v1401
    %1822 = vmatpush1.bf16.msra.mxu0 %v1400
    %1823 = vmatprep.subr.bf16.mxu0 %v1405
    %1824 = vmatpush1.bf16.msra.mxu0 %v1404
    %1825 = vmatprep.subr.bf16.mxu0 %v1409
    %1826 = vmatpush1.bf16.msra.mxu0 %v1408
    %1827 = vmatprep.subr.bf16.mxu0 %v1413
    %1828 = vmatpush1.bf16.msra.mxu0 %v1412
    %1829 = vmatprep.subr.bf16.mxu0 %v1417
    %1830 = vmatpush1.bf16.msra.mxu0 %v1416
    %1831 = vmatprep.mubr.bf16.mxu0 %v387
    %1832 = vmatmul.mubr.bf16.gmra.mrb[0].mxu0 %v386
    %v1833 = vpop.f32.mrb[0].mxu0
    %v1834 = vadd.f32 %v1793, %v1833
    %v1835 = vpop.f32.mrb[0].mxu0
    %v1836 = vadd.f32 %v1795, %v1835
    %v1837 = vpop.f32.mrb[0].mxu0
    %v1838 = vpop.f32.mrb[0].mxu0
    %1839 = vdwg.mxu0
    %1840 = vmatprep.subr.bf16.mxu0 %v1167
    %1841 = vmatpush1.bf16.msra.mxu0 %v1166
    %1842 = vmatprep.subr.bf16.mxu0 %v1171
    %1843 = vmatpush1.bf16.msra.mxu0 %v1170
    %1844 = vmatprep.subr.bf16.mxu0 %v1175
    %1845 = vmatpush1.bf16.msra.mxu0 %v1174
    %1846 = vmatprep.subr.bf16.mxu0 %v1179
    %1847 = vmatpush1.bf16.msra.mxu0 %v1178
    %1848 = vmatprep.subr.bf16.mxu0 %v1183
    %1849 = vmatpush1.bf16.msra.mxu0 %v1182
    %1850 = vmatprep.subr.bf16.mxu0 %v1187
    %1851 = vmatpush1.bf16.msra.mxu0 %v1186
    %1852 = vmatprep.subr.bf16.mxu0 %v1191
    %1853 = vmatpush1.bf16.msra.mxu0 %v1190
    %1854 = vmatprep.subr.bf16.mxu0 %v1195
    %1855 = vmatpush1.bf16.msra.mxu0 %v1194
    %1856 = vmatprep.subr.bf16.mxu0 %v1199
    %1857 = vmatpush1.bf16.msra.mxu0 %v1198
    %1858 = vmatprep.subr.bf16.mxu0 %v1203
    %1859 = vmatpush1.bf16.msra.mxu0 %v1202
    %1860 = vmatprep.subr.bf16.mxu0 %v1207
    %1861 = vmatpush1.bf16.msra.mxu0 %v1206
    %1862 = vmatprep.subr.bf16.mxu0 %v1211
    %1863 = vmatpush1.bf16.msra.mxu0 %v1210
    %1864 = vmatprep.subr.bf16.mxu0 %v1215
    %1865 = vmatpush1.bf16.msra.mxu0 %v1214
    %1866 = vmatprep.subr.bf16.mxu0 %v1219
    %1867 = vmatpush1.bf16.msra.mxu0 %v1218
    %1868 = vmatprep.subr.bf16.mxu0 %v1223
    %1869 = vmatpush1.bf16.msra.mxu0 %v1222
    %1870 = vmatprep.subr.bf16.mxu0 %v1227
    %1871 = vmatpush1.bf16.msra.mxu0 %v1226
    %1872 = vmatprep.mubr.bf16.mxu0 %v381
    %1873 = vmatmul.mubr.bf16.gmra.mrb[0].mxu0 %v380
    %v1874 = vpop.f32.mrb[0].mxu0
    %v1875 = vadd.f32 %v359, %v1874
    %v1876 = vpop.f32.mrb[0].mxu0
    %v1877 = vadd.f32 %v363, %v1876
    %v1878 = vpop.f32.mrb[0].mxu0
    %v1879 = vpop.f32.mrb[0].mxu0
    %1880 = vdwg.mxu0
    %1881 = vmatprep.subr.bf16.mxu0 %v1231
    %1882 = vmatpush1.bf16.msra.mxu0 %v1230
    %1883 = vmatprep.subr.bf16.mxu0 %v1235
    %1884 = vmatpush1.bf16.msra.mxu0 %v1234
    %1885 = vmatprep.subr.bf16.mxu0 %v1239
    %1886 = vmatpush1.bf16.msra.mxu0 %v1238
    %1887 = vmatprep.subr.bf16.mxu0 %v1243
    %1888 = vmatpush1.bf16.msra.mxu0 %v1242
    %1889 = vmatprep.subr.bf16.mxu0 %v1247
    %1890 = vmatpush1.bf16.msra.mxu0 %v1246
    %1891 = vmatprep.subr.bf16.mxu0 %v1251
    %1892 = vmatpush1.bf16.msra.mxu0 %v1250
    %1893 = vmatprep.subr.bf16.mxu0 %v1255
    %1894 = vmatpush1.bf16.msra.mxu0 %v1254
    %1895 = vmatprep.subr.bf16.mxu0 %v1259
    %1896 = vmatpush1.bf16.msra.mxu0 %v1258
    %1897 = vmatprep.subr.bf16.mxu0 %v1263
    %1898 = vmatpush1.bf16.msra.mxu0 %v1262
    %1899 = vmatprep.subr.bf16.mxu0 %v1267
    %1900 = vmatpush1.bf16.msra.mxu0 %v1266
    %1901 = vmatprep.subr.bf16.mxu0 %v1271
    %1902 = vmatpush1.bf16.msra.mxu0 %v1270
    %1903 = vmatprep.subr.bf16.mxu0 %v1275
    %1904 = vmatpush1.bf16.msra.mxu0 %v1274
    %1905 = vmatprep.subr.bf16.mxu0 %v1279
    %1906 = vmatpush1.bf16.msra.mxu0 %v1278
    %1907 = vmatprep.subr.bf16.mxu0 %v1283
    %1908 = vmatpush1.bf16.msra.mxu0 %v1282
    %1909 = vmatprep.subr.bf16.mxu0 %v1287
    %1910 = vmatpush1.bf16.msra.mxu0 %v1286
    %1911 = vmatprep.subr.bf16.mxu0 %v1291
    %1912 = vmatpush1.bf16.msra.mxu0 %v1290
    %1913 = vmatprep.mubr.bf16.mxu0 %v383
    %1914 = vmatmul.mubr.bf16.gmra.mrb[0].mxu0 %v382
    %v1915 = vpop.f32.mrb[0].mxu0
    %v1916 = vadd.f32 %v1875, %v1915
    %v1917 = vpop.f32.mrb[0].mxu0
    %v1918 = vadd.f32 %v1877, %v1917
    %v1919 = vpop.f32.mrb[0].mxu0
    %v1920 = vpop.f32.mrb[0].mxu0
    %1921 = vdwg.mxu0
    %1922 = vmatprep.subr.bf16.mxu0 %v1295
    %1923 = vmatpush1.bf16.msra.mxu0 %v1294
    %1924 = vmatprep.subr.bf16.mxu0 %v1299
    %1925 = vmatpush1.bf16.msra.mxu0 %v1298
    %1926 = vmatprep.subr.bf16.mxu0 %v1303
    %1927 = vmatpush1.bf16.msra.mxu0 %v1302
    %1928 = vmatprep.subr.bf16.mxu0 %v1307
    %1929 = vmatpush1.bf16.msra.mxu0 %v1306
    %1930 = vmatprep.subr.bf16.mxu0 %v1311
    %1931 = vmatpush1.bf16.msra.mxu0 %v1310
    %1932 = vmatprep.subr.bf16.mxu0 %v1315
    %1933 = vmatpush1.bf16.msra.mxu0 %v1314
    %1934 = vmatprep.subr.bf16.mxu0 %v1319
    %1935 = vmatpush1.bf16.msra.mxu0 %v1318
    %1936 = vmatprep.subr.bf16.mxu0 %v1323
    %1937 = vmatpush1.bf16.msra.mxu0 %v1322
    %1938 = vmatprep.subr.bf16.mxu0 %v1327
    %1939 = vmatpush1.bf16.msra.mxu0 %v1326
    %1940 = vmatprep.subr.bf16.mxu0 %v1331
    %1941 = vmatpush1.bf16.msra.mxu0 %v1330
    %1942 = vmatprep.subr.bf16.mxu0 %v1335
    %1943 = vmatpush1.bf16.msra.mxu0 %v1334
    %1944 = vmatprep.subr.bf16.mxu0 %v1339
    %1945 = vmatpush1.bf16.msra.mxu0 %v1338
    %1946 = vmatprep.subr.bf16.mxu0 %v1343
    %1947 = vmatpush1.bf16.msra.mxu0 %v1342
    %1948 = vmatprep.subr.bf16.mxu0 %v1347
    %1949 = vmatpush1.bf16.msra.mxu0 %v1346
    %1950 = vmatprep.subr.bf16.mxu0 %v1351
    %1951 = vmatpush1.bf16.msra.mxu0 %v1350
    %1952 = vmatprep.subr.bf16.mxu0 %v1355
    %1953 = vmatpush1.bf16.msra.mxu0 %v1354
    %1954 = vmatprep.mubr.bf16.mxu0 %v385
    %1955 = vmatmul.mubr.bf16.gmra.mrb[0].mxu0 %v384
    %v1956 = vpop.f32.mrb[0].mxu0
    %v1957 = vadd.f32 %v1916, %v1956
    %v1958 = vpop.f32.mrb[0].mxu0
    %v1959 = vadd.f32 %v1918, %v1958
    %v1960 = vpop.f32.mrb[0].mxu0
    %v1961 = vpop.f32.mrb[0].mxu0
    %1962 = vdwg.mxu0
    %1963 = vmatprep.subr.bf16.mxu0 %v1359
    %1964 = vmatpush1.bf16.msra.mxu0 %v1358
    %1965 = vmatprep.subr.bf16.mxu0 %v1363
    %1966 = vmatpush1.bf16.msra.mxu0 %v1362
    %1967 = vmatprep.subr.bf16.mxu0 %v1367
    %1968 = vmatpush1.bf16.msra.mxu0 %v1366
    %1969 = vmatprep.subr.bf16.mxu0 %v1371
    %1970 = vmatpush1.bf16.msra.mxu0 %v1370
    %1971 = vmatprep.subr.bf16.mxu0 %v1375
    %1972 = vmatpush1.bf16.msra.mxu0 %v1374
    %1973 = vmatprep.subr.bf16.mxu0 %v1379
    %1974 = vmatpush1.bf16.msra.mxu0 %v1378
    %1975 = vmatprep.subr.bf16.mxu0 %v1383
    %1976 = vmatpush1.bf16.msra.mxu0 %v1382
    %1977 = vmatprep.subr.bf16.mxu0 %v1387
    %1978 = vmatpush1.bf16.msra.mxu0 %v1386
    %1979 = vmatprep.subr.bf16.mxu0 %v1391
    %1980 = vmatpush1.bf16.msra.mxu0 %v1390
    %1981 = vmatprep.subr.bf16.mxu0 %v1395
    %1982 = vmatpush1.bf16.msra.mxu0 %v1394
    %1983 = vmatprep.subr.bf16.mxu0 %v1399
    %1984 = vmatpush1.bf16.msra.mxu0 %v1398
    %1985 = vmatprep.subr.bf16.mxu0 %v1403
    %1986 = vmatpush1.bf16.msra.mxu0 %v1402
    %1987 = vmatprep.subr.bf16.mxu0 %v1407
    %1988 = vmatpush1.bf16.msra.mxu0 %v1406
    %1989 = vmatprep.subr.bf16.mxu0 %v1411
    %1990 = vmatpush1.bf16.msra.mxu0 %v1410
    %1991 = vmatprep.subr.bf16.mxu0 %v1415
    %1992 = vmatpush1.bf16.msra.mxu0 %v1414
    %1993 = vmatprep.subr.bf16.mxu0 %v1419
    %1994 = vmatpush1.bf16.msra.mxu0 %v1418
    %1995 = vmatprep.mubr.bf16.mxu0 %v387
    %1996 = vmatmul.mubr.bf16.gmra.mrb[0].mxu0 %v386
    %v1997 = vpop.f32.mrb[0].mxu0
    %v1998 = vadd.f32 %v1957, %v1997
    %v1999 = vpop.f32.mrb[0].mxu0
    %v2000 = vadd.f32 %v1959, %v1999
    %v2001 = vpop.f32.mrb[0].mxu0
    %v2002 = vpop.f32.mrb[0].mxu0
    %2003 = vdwg.mxu0
    %v2004 = vmax.f32 %v1834, 0.0
    %v2005 = vmax.f32 %v1836, 0.0
    %v2006 = vmax.f32 %v1998, 0.0
    %v2007 = vmax.f32 %v2000, 0.0
    %v2008 = vpack.c.bf16 %v2004, %v2004
    %v2009 = vpack.c.bf16 %v2005, %v2005
    %v2010 = vpack.c.bf16 %v2006, %v2006
    %v2011 = vpack.c.bf16 %v2007, %v2007
    %v2012 = vld [vmem:[%s2] sm:$0xff]
    %v2013 = vld [vmem:[%s2 + $0x8] sm:$0xff]
    %v2014 = vld [vmem:[%s2 + $0x10] sm:$0xff]
    %v2015 = vld [vmem:[%s2 + $0x18] sm:$0xff]
    %v2016 = vld [vmem:[%s2 + $0x20] sm:$0xff]
    %v2017 = vld [vmem:[%s2 + $0x28] sm:$0xff]
    %v2018 = vld [vmem:[%s2 + $0x30] sm:$0xff]
    %v2019 = vld [vmem:[%s2 + $0x38] sm:$0xff]
    %v2020 = vld [vmem:[%s2 + $0x40] sm:$0xff]
    %v2021 = vld [vmem:[%s2 + $0x48] sm:$0xff]
    %v2022 = vld [vmem:[%s2 + $0x50] sm:$0xff]
    %v2023 = vld [vmem:[%s2 + $0x58] sm:$0xff]
    %v2024 = vld [vmem:[%s2 + $0x60] sm:$0xff]
    %v2025 = vld [vmem:[%s2 + $0x68] sm:$0xff]
    %v2026 = vld [vmem:[%s2 + $0x70] sm:$0xff]
    %v2027 = vld [vmem:[%s2 + $0x78] sm:$0xff]
    %v2028 = vld [vmem:[%s2 + $0x80] sm:$0xff]
    %v2029 = vld [vmem:[%s2 + $0x88] sm:$0xff]
    %v2030 = vld [vmem:[%s2 + $0x90] sm:$0xff]
    %v2031 = vld [vmem:[%s2 + $0x98] sm:$0xff]
    %v2032 = vld [vmem:[%s2 + $0xa0] sm:$0xff]
    %v2033 = vld [vmem:[%s2 + $0xa8] sm:$0xff]
    %v2034 = vld [vmem:[%s2 + $0xb0] sm:$0xff]
    %v2035 = vld [vmem:[%s2 + $0xb8] sm:$0xff]
    %v2036 = vld [vmem:[%s2 + $0xc0] sm:$0xff]
    %v2037 = vld [vmem:[%s2 + $0xc8] sm:$0xff]
    %v2038 = vld [vmem:[%s2 + $0xd0] sm:$0xff]
    %v2039 = vld [vmem:[%s2 + $0xd8] sm:$0xff]
    %v2040 = vld [vmem:[%s2 + $0xe0] sm:$0xff]
    %v2041 = vld [vmem:[%s2 + $0xe8] sm:$0xff]
    %v2042 = vld [vmem:[%s2 + $0xf0] sm:$0xff]
    %v2043 = vld [vmem:[%s2 + $0xf8] sm:$0xff]
    %v2044 = vld [vmem:[%s2 + $0x100] sm:$0xff]
    %v2045 = vld [vmem:[%s2 + $0x108] sm:$0xff]
    %v2046 = vld [vmem:[%s2 + $0x110] sm:$0xff]
    %v2047 = vld [vmem:[%s2 + $0x118] sm:$0xff]
    %v2048 = vld [vmem:[%s2 + $0x120] sm:$0xff]
    %v2049 = vld [vmem:[%s2 + $0x128] sm:$0xff]
    %v2050 = vld [vmem:[%s2 + $0x130] sm:$0xff]
    %v2051 = vld [vmem:[%s2 + $0x138] sm:$0xff]
    %v2052 = vld [vmem:[%s2 + $0x140] sm:$0xff]
    %v2053 = vld [vmem:[%s2 + $0x148] sm:$0xff]
    %v2054 = vld [vmem:[%s2 + $0x150] sm:$0xff]
    %v2055 = vld [vmem:[%s2 + $0x158] sm:$0xff]
    %v2056 = vld [vmem:[%s2 + $0x160] sm:$0xff]
    %v2057 = vld [vmem:[%s2 + $0x168] sm:$0xff]
    %v2058 = vld [vmem:[%s2 + $0x170] sm:$0xff]
    %v2059 = vld [vmem:[%s2 + $0x178] sm:$0xff]
    %v2060 = vld [vmem:[%s2 + $0x180] sm:$0xff]
    %v2061 = vld [vmem:[%s2 + $0x188] sm:$0xff]
    %v2062 = vld [vmem:[%s2 + $0x190] sm:$0xff]
    %v2063 = vld [vmem:[%s2 + $0x198] sm:$0xff]
    %v2064 = vld [vmem:[%s2 + $0x1a0] sm:$0xff]
    %v2065 = vld [vmem:[%s2 + $0x1a8] sm:$0xff]
    %v2066 = vld [vmem:[%s2 + $0x1b0] sm:$0xff]
    %v2067 = vld [vmem:[%s2 + $0x1b8] sm:$0xff]
    %v2068 = vld [vmem:[%s2 + $0x1c0] sm:$0xff]
    %v2069 = vld [vmem:[%s2 + $0x1c8] sm:$0xff]
    %v2070 = vld [vmem:[%s2 + $0x1d0] sm:$0xff]
    %v2071 = vld [vmem:[%s2 + $0x1d8] sm:$0xff]
    %v2072 = vld [vmem:[%s2 + $0x1e0] sm:$0xff]
    %v2073 = vld [vmem:[%s2 + $0x1e8] sm:$0xff]
    %v2074 = vld [vmem:[%s2 + $0x1f0] sm:$0xff]
    %v2075 = vld [vmem:[%s2 + $0x1f8] sm:$0xff]
    %v2076 = vld [vmem:[%s2 + $0x200] sm:$0xff]
    %v2077 = vld [vmem:[%s2 + $0x208] sm:$0xff]
    %v2078 = vld [vmem:[%s2 + $0x210] sm:$0xff]
    %v2079 = vld [vmem:[%s2 + $0x218] sm:$0xff]
    %v2080 = vld [vmem:[%s2 + $0x220] sm:$0xff]
    %v2081 = vld [vmem:[%s2 + $0x228] sm:$0xff]
    %v2082 = vld [vmem:[%s2 + $0x230] sm:$0xff]
    %v2083 = vld [vmem:[%s2 + $0x238] sm:$0xff]
    %v2084 = vld [vmem:[%s2 + $0x240] sm:$0xff]
    %v2085 = vld [vmem:[%s2 + $0x248] sm:$0xff]
    %v2086 = vld [vmem:[%s2 + $0x250] sm:$0xff]
    %v2087 = vld [vmem:[%s2 + $0x258] sm:$0xff]
    %v2088 = vld [vmem:[%s2 + $0x260] sm:$0xff]
    %v2089 = vld [vmem:[%s2 + $0x268] sm:$0xff]
    %v2090 = vld [vmem:[%s2 + $0x270] sm:$0xff]
    %v2091 = vld [vmem:[%s2 + $0x278] sm:$0xff]
    %v2092 = vld [vmem:[%s2 + $0x280] sm:$0xff]
    %v2093 = vld [vmem:[%s2 + $0x288] sm:$0xff]
    %v2094 = vld [vmem:[%s2 + $0x290] sm:$0xff]
    %v2095 = vld [vmem:[%s2 + $0x298] sm:$0xff]
    %v2096 = vld [vmem:[%s2 + $0x2a0] sm:$0xff]
    %v2097 = vld [vmem:[%s2 + $0x2a8] sm:$0xff]
    %v2098 = vld [vmem:[%s2 + $0x2b0] sm:$0xff]
    %v2099 = vld [vmem:[%s2 + $0x2b8] sm:$0xff]
    %v2100 = vld [vmem:[%s2 + $0x2c0] sm:$0xff]
    %v2101 = vld [vmem:[%s2 + $0x2c8] sm:$0xff]
    %v2102 = vld [vmem:[%s2 + $0x2d0] sm:$0xff]
    %v2103 = vld [vmem:[%s2 + $0x2d8] sm:$0xff]
    %v2104 = vld [vmem:[%s2 + $0x2e0] sm:$0xff]
    %v2105 = vld [vmem:[%s2 + $0x2e8] sm:$0xff]
    %v2106 = vld [vmem:[%s2 + $0x2f0] sm:$0xff]
    %v2107 = vld [vmem:[%s2 + $0x2f8] sm:$0xff]
    %v2108 = vld [vmem:[%s2 + $0x300] sm:$0xff]
    %v2109 = vld [vmem:[%s2 + $0x308] sm:$0xff]
    %v2110 = vld [vmem:[%s2 + $0x310] sm:$0xff]
    %v2111 = vld [vmem:[%s2 + $0x318] sm:$0xff]
    %v2112 = vld [vmem:[%s2 + $0x320] sm:$0xff]
    %v2113 = vld [vmem:[%s2 + $0x328] sm:$0xff]
    %v2114 = vld [vmem:[%s2 + $0x330] sm:$0xff]
    %v2115 = vld [vmem:[%s2 + $0x338] sm:$0xff]
    %v2116 = vld [vmem:[%s2 + $0x340] sm:$0xff]
    %v2117 = vld [vmem:[%s2 + $0x348] sm:$0xff]
    %v2118 = vld [vmem:[%s2 + $0x350] sm:$0xff]
    %v2119 = vld [vmem:[%s2 + $0x358] sm:$0xff]
    %v2120 = vld [vmem:[%s2 + $0x360] sm:$0xff]
    %v2121 = vld [vmem:[%s2 + $0x368] sm:$0xff]
    %v2122 = vld [vmem:[%s2 + $0x370] sm:$0xff]
    %v2123 = vld [vmem:[%s2 + $0x378] sm:$0xff]
    %v2124 = vld [vmem:[%s2 + $0x380] sm:$0xff]
    %v2125 = vld [vmem:[%s2 + $0x388] sm:$0xff]
    %v2126 = vld [vmem:[%s2 + $0x390] sm:$0xff]
    %v2127 = vld [vmem:[%s2 + $0x398] sm:$0xff]
    %v2128 = vld [vmem:[%s2 + $0x3a0] sm:$0xff]
    %v2129 = vld [vmem:[%s2 + $0x3a8] sm:$0xff]
    %v2130 = vld [vmem:[%s2 + $0x3b0] sm:$0xff]
    %v2131 = vld [vmem:[%s2 + $0x3b8] sm:$0xff]
    %v2132 = vld [vmem:[%s2 + $0x3c0] sm:$0xff]
    %v2133 = vld [vmem:[%s2 + $0x3c8] sm:$0xff]
    %v2134 = vld [vmem:[%s2 + $0x3d0] sm:$0xff]
    %v2135 = vld [vmem:[%s2 + $0x3d8] sm:$0xff]
    %v2136 = vld [vmem:[%s2 + $0x3e0] sm:$0xff]
    %v2137 = vld [vmem:[%s2 + $0x3e8] sm:$0xff]
    %v2138 = vld [vmem:[%s2 + $0x3f0] sm:$0xff]
    %v2139 = vld [vmem:[%s2 + $0x3f8] sm:$0xff]
    %s2140 = scalar_lea.vmem [#allocation7], 1
    %v2141 = vld [vmem:[%s2140] ss:$8 sm:$0xf]
    %v2143 = vlaneseq
    %v2144 = vshrl.u32 %v2143, 7
    %v2145 = vsub.s32 0, %v2144
    %v2146 = vrot.slane %v2141, %v2145
    %v2147 = vlaneseq
    %v2148 = vshrl.u32 %v2147, 7
    %v2149 = vsub.s32 1, %v2148
    %v2150 = vrot.slane %v2141, %v2149
    %v2151 = vlaneseq
    %v2152 = vshrl.u32 %v2151, 7
    %v2153 = vsub.s32 2, %v2152
    %v2154 = vrot.slane %v2141, %v2153
    %v2155 = vlaneseq
    %v2156 = vshrl.u32 %v2155, 7
    %v2157 = vsub.s32 3, %v2156
    %v2158 = vrot.slane %v2141, %v2157
    %v2291 = vunpack.c.l.b16 %v2012
    %v2292 = vunpack.c.h.b16 %v2012
    %v2293 = vunpack.c.l.b16 %v2013
    %v2294 = vunpack.c.h.b16 %v2013
    %v2295 = vunpack.c.l.b16 %v2014
    %v2296 = vunpack.c.h.b16 %v2014
    %v2297 = vunpack.c.l.b16 %v2015
    %v2298 = vunpack.c.h.b16 %v2015
    %v2299 = vunpack.c.l.b16 %v2016
    %v2300 = vunpack.c.h.b16 %v2016
    %v2301 = vunpack.c.l.b16 %v2017
    %v2302 = vunpack.c.h.b16 %v2017
    %v2303 = vunpack.c.l.b16 %v2018
    %v2304 = vunpack.c.h.b16 %v2018
    %v2305 = vunpack.c.l.b16 %v2019
    %v2306 = vunpack.c.h.b16 %v2019
    %v2307 = vunpack.c.l.b16 %v2020
    %v2308 = vunpack.c.h.b16 %v2020
    %v2309 = vunpack.c.l.b16 %v2021
    %v2310 = vunpack.c.h.b16 %v2021
    %v2311 = vunpack.c.l.b16 %v2022
    %v2312 = vunpack.c.h.b16 %v2022
    %v2313 = vunpack.c.l.b16 %v2023
    %v2314 = vunpack.c.h.b16 %v2023
    %v2315 = vunpack.c.l.b16 %v2024
    %v2316 = vunpack.c.h.b16 %v2024
    %v2317 = vunpack.c.l.b16 %v2025
    %v2318 = vunpack.c.h.b16 %v2025
    %v2319 = vunpack.c.l.b16 %v2026
    %v2320 = vunpack.c.h.b16 %v2026
    %v2321 = vunpack.c.l.b16 %v2027
    %v2322 = vunpack.c.h.b16 %v2027
    %v2323 = vunpack.c.l.b16 %v2028
    %v2324 = vunpack.c.h.b16 %v2028
    %v2325 = vunpack.c.l.b16 %v2029
    %v2326 = vunpack.c.h.b16 %v2029
    %v2327 = vunpack.c.l.b16 %v2030
    %v2328 = vunpack.c.h.b16 %v2030
    %v2329 = vunpack.c.l.b16 %v2031
    %v2330 = vunpack.c.h.b16 %v2031
    %v2331 = vunpack.c.l.b16 %v2032
    %v2332 = vunpack.c.h.b16 %v2032
    %v2333 = vunpack.c.l.b16 %v2033
    %v2334 = vunpack.c.h.b16 %v2033
    %v2335 = vunpack.c.l.b16 %v2034
    %v2336 = vunpack.c.h.b16 %v2034
    %v2337 = vunpack.c.l.b16 %v2035
    %v2338 = vunpack.c.h.b16 %v2035
    %v2339 = vunpack.c.l.b16 %v2036
    %v2340 = vunpack.c.h.b16 %v2036
    %v2341 = vunpack.c.l.b16 %v2037
    %v2342 = vunpack.c.h.b16 %v2037
    %v2343 = vunpack.c.l.b16 %v2038
    %v2344 = vunpack.c.h.b16 %v2038
    %v2345 = vunpack.c.l.b16 %v2039
    %v2346 = vunpack.c.h.b16 %v2039
    %v2347 = vunpack.c.l.b16 %v2040
    %v2348 = vunpack.c.h.b16 %v2040
    %v2349 = vunpack.c.l.b16 %v2041
    %v2350 = vunpack.c.h.b16 %v2041
    %v2351 = vunpack.c.l.b16 %v2042
    %v2352 = vunpack.c.h.b16 %v2042
    %v2353 = vunpack.c.l.b16 %v2043
    %v2354 = vunpack.c.h.b16 %v2043
    %v2355 = vunpack.c.l.b16 %v2044
    %v2356 = vunpack.c.h.b16 %v2044
    %v2357 = vunpack.c.l.b16 %v2045
    %v2358 = vunpack.c.h.b16 %v2045
    %v2359 = vunpack.c.l.b16 %v2046
    %v2360 = vunpack.c.h.b16 %v2046
    %v2361 = vunpack.c.l.b16 %v2047
    %v2362 = vunpack.c.h.b16 %v2047
    %v2363 = vunpack.c.l.b16 %v2048
    %v2364 = vunpack.c.h.b16 %v2048
    %v2365 = vunpack.c.l.b16 %v2049
    %v2366 = vunpack.c.h.b16 %v2049
    %v2367 = vunpack.c.l.b16 %v2050
    %v2368 = vunpack.c.h.b16 %v2050
    %v2369 = vunpack.c.l.b16 %v2051
    %v2370 = vunpack.c.h.b16 %v2051
    %v2371 = vunpack.c.l.b16 %v2052
    %v2372 = vunpack.c.h.b16 %v2052
    %v2373 = vunpack.c.l.b16 %v2053
    %v2374 = vunpack.c.h.b16 %v2053
    %v2375 = vunpack.c.l.b16 %v2054
    %v2376 = vunpack.c.h.b16 %v2054
    %v2377 = vunpack.c.l.b16 %v2055
    %v2378 = vunpack.c.h.b16 %v2055
    %v2379 = vunpack.c.l.b16 %v2056
    %v2380 = vunpack.c.h.b16 %v2056
    %v2381 = vunpack.c.l.b16 %v2057
    %v2382 = vunpack.c.h.b16 %v2057
    %v2383 = vunpack.c.l.b16 %v2058
    %v2384 = vunpack.c.h.b16 %v2058
    %v2385 = vunpack.c.l.b16 %v2059
    %v2386 = vunpack.c.h.b16 %v2059
    %v2387 = vunpack.c.l.b16 %v2060
    %v2388 = vunpack.c.h.b16 %v2060
    %v2389 = vunpack.c.l.b16 %v2061
    %v2390 = vunpack.c.h.b16 %v2061
    %v2391 = vunpack.c.l.b16 %v2062
    %v2392 = vunpack.c.h.b16 %v2062
    %v2393 = vunpack.c.l.b16 %v2063
    %v2394 = vunpack.c.h.b16 %v2063
    %v2395 = vunpack.c.l.b16 %v2064
    %v2396 = vunpack.c.h.b16 %v2064
    %v2397 = vunpack.c.l.b16 %v2065
    %v2398 = vunpack.c.h.b16 %v2065
    %v2399 = vunpack.c.l.b16 %v2066
    %v2400 = vunpack.c.h.b16 %v2066
    %v2401 = vunpack.c.l.b16 %v2067
    %v2402 = vunpack.c.h.b16 %v2067
    %v2403 = vunpack.c.l.b16 %v2068
    %v2404 = vunpack.c.h.b16 %v2068
    %v2405 = vunpack.c.l.b16 %v2069
    %v2406 = vunpack.c.h.b16 %v2069
    %v2407 = vunpack.c.l.b16 %v2070
    %v2408 = vunpack.c.h.b16 %v2070
    %v2409 = vunpack.c.l.b16 %v2071
    %v2410 = vunpack.c.h.b16 %v2071
    %v2411 = vunpack.c.l.b16 %v2072
    %v2412 = vunpack.c.h.b16 %v2072
    %v2413 = vunpack.c.l.b16 %v2073
    %v2414 = vunpack.c.h.b16 %v2073
    %v2415 = vunpack.c.l.b16 %v2074
    %v2416 = vunpack.c.h.b16 %v2074
    %v2417 = vunpack.c.l.b16 %v2075
    %v2418 = vunpack.c.h.b16 %v2075
    %v2419 = vunpack.c.l.b16 %v2076
    %v2420 = vunpack.c.h.b16 %v2076
    %v2421 = vunpack.c.l.b16 %v2077
    %v2422 = vunpack.c.h.b16 %v2077
    %v2423 = vunpack.c.l.b16 %v2078
    %v2424 = vunpack.c.h.b16 %v2078
    %v2425 = vunpack.c.l.b16 %v2079
    %v2426 = vunpack.c.h.b16 %v2079
    %v2427 = vunpack.c.l.b16 %v2080
    %v2428 = vunpack.c.h.b16 %v2080
    %v2429 = vunpack.c.l.b16 %v2081
    %v2430 = vunpack.c.h.b16 %v2081
    %v2431 = vunpack.c.l.b16 %v2082
    %v2432 = vunpack.c.h.b16 %v2082
    %v2433 = vunpack.c.l.b16 %v2083
    %v2434 = vunpack.c.h.b16 %v2083
    %v2435 = vunpack.c.l.b16 %v2084
    %v2436 = vunpack.c.h.b16 %v2084
    %v2437 = vunpack.c.l.b16 %v2085
    %v2438 = vunpack.c.h.b16 %v2085
    %v2439 = vunpack.c.l.b16 %v2086
    %v2440 = vunpack.c.h.b16 %v2086
    %v2441 = vunpack.c.l.b16 %v2087
    %v2442 = vunpack.c.h.b16 %v2087
    %v2443 = vunpack.c.l.b16 %v2088
    %v2444 = vunpack.c.h.b16 %v2088
    %v2445 = vunpack.c.l.b16 %v2089
    %v2446 = vunpack.c.h.b16 %v2089
    %v2447 = vunpack.c.l.b16 %v2090
    %v2448 = vunpack.c.h.b16 %v2090
    %v2449 = vunpack.c.l.b16 %v2091
    %v2450 = vunpack.c.h.b16 %v2091
    %v2451 = vunpack.c.l.b16 %v2092
    %v2452 = vunpack.c.h.b16 %v2092
    %v2453 = vunpack.c.l.b16 %v2093
    %v2454 = vunpack.c.h.b16 %v2093
    %v2455 = vunpack.c.l.b16 %v2094
    %v2456 = vunpack.c.h.b16 %v2094
    %v2457 = vunpack.c.l.b16 %v2095
    %v2458 = vunpack.c.h.b16 %v2095
    %v2459 = vunpack.c.l.b16 %v2096
    %v2460 = vunpack.c.h.b16 %v2096
    %v2461 = vunpack.c.l.b16 %v2097
    %v2462 = vunpack.c.h.b16 %v2097
    %v2463 = vunpack.c.l.b16 %v2098
    %v2464 = vunpack.c.h.b16 %v2098
    %v2465 = vunpack.c.l.b16 %v2099
    %v2466 = vunpack.c.h.b16 %v2099
    %v2467 = vunpack.c.l.b16 %v2100
    %v2468 = vunpack.c.h.b16 %v2100
    %v2469 = vunpack.c.l.b16 %v2101
    %v2470 = vunpack.c.h.b16 %v2101
    %v2471 = vunpack.c.l.b16 %v2102
    %v2472 = vunpack.c.h.b16 %v2102
    %v2473 = vunpack.c.l.b16 %v2103
    %v2474 = vunpack.c.h.b16 %v2103
    %v2475 = vunpack.c.l.b16 %v2104
    %v2476 = vunpack.c.h.b16 %v2104
    %v2477 = vunpack.c.l.b16 %v2105
    %v2478 = vunpack.c.h.b16 %v2105
    %v2479 = vunpack.c.l.b16 %v2106
    %v2480 = vunpack.c.h.b16 %v2106
    %v2481 = vunpack.c.l.b16 %v2107
    %v2482 = vunpack.c.h.b16 %v2107
    %v2483 = vunpack.c.l.b16 %v2108
    %v2484 = vunpack.c.h.b16 %v2108
    %v2485 = vunpack.c.l.b16 %v2109
    %v2486 = vunpack.c.h.b16 %v2109
    %v2487 = vunpack.c.l.b16 %v2110
    %v2488 = vunpack.c.h.b16 %v2110
    %v2489 = vunpack.c.l.b16 %v2111
    %v2490 = vunpack.c.h.b16 %v2111
    %v2491 = vunpack.c.l.b16 %v2112
    %v2492 = vunpack.c.h.b16 %v2112
    %v2493 = vunpack.c.l.b16 %v2113
    %v2494 = vunpack.c.h.b16 %v2113
    %v2495 = vunpack.c.l.b16 %v2114
    %v2496 = vunpack.c.h.b16 %v2114
    %v2497 = vunpack.c.l.b16 %v2115
    %v2498 = vunpack.c.h.b16 %v2115
    %v2499 = vunpack.c.l.b16 %v2116
    %v2500 = vunpack.c.h.b16 %v2116
    %v2501 = vunpack.c.l.b16 %v2117
    %v2502 = vunpack.c.h.b16 %v2117
    %v2503 = vunpack.c.l.b16 %v2118
    %v2504 = vunpack.c.h.b16 %v2118
    %v2505 = vunpack.c.l.b16 %v2119
    %v2506 = vunpack.c.h.b16 %v2119
    %v2507 = vunpack.c.l.b16 %v2120
    %v2508 = vunpack.c.h.b16 %v2120
    %v2509 = vunpack.c.l.b16 %v2121
    %v2510 = vunpack.c.h.b16 %v2121
    %v2511 = vunpack.c.l.b16 %v2122
    %v2512 = vunpack.c.h.b16 %v2122
    %v2513 = vunpack.c.l.b16 %v2123
    %v2514 = vunpack.c.h.b16 %v2123
    %v2515 = vunpack.c.l.b16 %v2124
    %v2516 = vunpack.c.h.b16 %v2124
    %v2517 = vunpack.c.l.b16 %v2125
    %v2518 = vunpack.c.h.b16 %v2125
    %v2519 = vunpack.c.l.b16 %v2126
    %v2520 = vunpack.c.h.b16 %v2126
    %v2521 = vunpack.c.l.b16 %v2127
    %v2522 = vunpack.c.h.b16 %v2127
    %v2523 = vunpack.c.l.b16 %v2128
    %v2524 = vunpack.c.h.b16 %v2128
    %v2525 = vunpack.c.l.b16 %v2129
    %v2526 = vunpack.c.h.b16 %v2129
    %v2527 = vunpack.c.l.b16 %v2130
    %v2528 = vunpack.c.h.b16 %v2130
    %v2529 = vunpack.c.l.b16 %v2131
    %v2530 = vunpack.c.h.b16 %v2131
    %v2531 = vunpack.c.l.b16 %v2132
    %v2532 = vunpack.c.h.b16 %v2132
    %v2533 = vunpack.c.l.b16 %v2133
    %v2534 = vunpack.c.h.b16 %v2133
    %v2535 = vunpack.c.l.b16 %v2134
    %v2536 = vunpack.c.h.b16 %v2134
    %v2537 = vunpack.c.l.b16 %v2135
    %v2538 = vunpack.c.h.b16 %v2135
    %v2539 = vunpack.c.l.b16 %v2136
    %v2540 = vunpack.c.h.b16 %v2136
    %v2541 = vunpack.c.l.b16 %v2137
    %v2542 = vunpack.c.h.b16 %v2137
    %v2543 = vunpack.c.l.b16 %v2138
    %v2544 = vunpack.c.h.b16 %v2138
    %v2545 = vunpack.c.l.b16 %v2139
    %v2546 = vunpack.c.h.b16 %v2139
    %v2547 = vpack.c.b16 %v2295, %v2291
    %v2548 = vpack.c.b16 %v2296, %v2292
    %v2549 = vpack.c.b16 %v2297, %v2293
    %v2550 = vpack.c.b16 %v2298, %v2294
    %v2551 = vpack.c.b16 %v2303, %v2299
    %v2552 = vpack.c.b16 %v2304, %v2300
    %v2553 = vpack.c.b16 %v2305, %v2301
    %v2554 = vpack.c.b16 %v2306, %v2302
    %v2555 = vpack.c.b16 %v2311, %v2307
    %v2556 = vpack.c.b16 %v2312, %v2308
    %v2557 = vpack.c.b16 %v2313, %v2309
    %v2558 = vpack.c.b16 %v2314, %v2310
    %v2559 = vpack.c.b16 %v2319, %v2315
    %v2560 = vpack.c.b16 %v2320, %v2316
    %v2561 = vpack.c.b16 %v2321, %v2317
    %v2562 = vpack.c.b16 %v2322, %v2318
    %v2563 = vpack.c.b16 %v2327, %v2323
    %v2564 = vpack.c.b16 %v2328, %v2324
    %v2565 = vpack.c.b16 %v2329, %v2325
    %v2566 = vpack.c.b16 %v2330, %v2326
    %v2567 = vpack.c.b16 %v2335, %v2331
    %v2568 = vpack.c.b16 %v2336, %v2332
    %v2569 = vpack.c.b16 %v2337, %v2333
    %v2570 = vpack.c.b16 %v2338, %v2334
    %v2571 = vpack.c.b16 %v2343, %v2339
    %v2572 = vpack.c.b16 %v2344, %v2340
    %v2573 = vpack.c.b16 %v2345, %v2341
    %v2574 = vpack.c.b16 %v2346, %v2342
    %v2575 = vpack.c.b16 %v2351, %v2347
    %v2576 = vpack.c.b16 %v2352, %v2348
    %v2577 = vpack.c.b16 %v2353, %v2349
    %v2578 = vpack.c.b16 %v2354, %v2350
    %v2579 = vpack.c.b16 %v2359, %v2355
    %v2580 = vpack.c.b16 %v2360, %v2356
    %v2581 = vpack.c.b16 %v2361, %v2357
    %v2582 = vpack.c.b16 %v2362, %v2358
    %v2583 = vpack.c.b16 %v2367, %v2363
    %v2584 = vpack.c.b16 %v2368, %v2364
    %v2585 = vpack.c.b16 %v2369, %v2365
    %v2586 = vpack.c.b16 %v2370, %v2366
    %v2587 = vpack.c.b16 %v2375, %v2371
    %v2588 = vpack.c.b16 %v2376, %v2372
    %v2589 = vpack.c.b16 %v2377, %v2373
    %v2590 = vpack.c.b16 %v2378, %v2374
    %v2591 = vpack.c.b16 %v2383, %v2379
    %v2592 = vpack.c.b16 %v2384, %v2380
    %v2593 = vpack.c.b16 %v2385, %v2381
    %v2594 = vpack.c.b16 %v2386, %v2382
    %v2595 = vpack.c.b16 %v2391, %v2387
    %v2596 = vpack.c.b16 %v2392, %v2388
    %v2597 = vpack.c.b16 %v2393, %v2389
    %v2598 = vpack.c.b16 %v2394, %v2390
    %v2599 = vpack.c.b16 %v2399, %v2395
    %v2600 = vpack.c.b16 %v2400, %v2396
    %v2601 = vpack.c.b16 %v2401, %v2397
    %v2602 = vpack.c.b16 %v2402, %v2398
    %v2603 = vpack.c.b16 %v2407, %v2403
    %v2604 = vpack.c.b16 %v2408, %v2404
    %v2605 = vpack.c.b16 %v2409, %v2405
    %v2606 = vpack.c.b16 %v2410, %v2406
    %v2607 = vpack.c.b16 %v2415, %v2411
    %v2608 = vpack.c.b16 %v2416, %v2412
    %v2609 = vpack.c.b16 %v2417, %v2413
    %v2610 = vpack.c.b16 %v2418, %v2414
    %v2611 = vpack.c.b16 %v2423, %v2419
    %v2612 = vpack.c.b16 %v2424, %v2420
    %v2613 = vpack.c.b16 %v2425, %v2421
    %v2614 = vpack.c.b16 %v2426, %v2422
    %v2615 = vpack.c.b16 %v2431, %v2427
    %v2616 = vpack.c.b16 %v2432, %v2428
    %v2617 = vpack.c.b16 %v2433, %v2429
    %v2618 = vpack.c.b16 %v2434, %v2430
    %v2619 = vpack.c.b16 %v2439, %v2435
    %v2620 = vpack.c.b16 %v2440, %v2436
    %v2621 = vpack.c.b16 %v2441, %v2437
    %v2622 = vpack.c.b16 %v2442, %v2438
    %v2623 = vpack.c.b16 %v2447, %v2443
    %v2624 = vpack.c.b16 %v2448, %v2444
    %v2625 = vpack.c.b16 %v2449, %v2445
    %v2626 = vpack.c.b16 %v2450, %v2446
    %v2627 = vpack.c.b16 %v2455, %v2451
    %v2628 = vpack.c.b16 %v2456, %v2452
    %v2629 = vpack.c.b16 %v2457, %v2453
    %v2630 = vpack.c.b16 %v2458, %v2454
    %v2631 = vpack.c.b16 %v2463, %v2459
    %v2632 = vpack.c.b16 %v2464, %v2460
    %v2633 = vpack.c.b16 %v2465, %v2461
    %v2634 = vpack.c.b16 %v2466, %v2462
    %v2635 = vpack.c.b16 %v2471, %v2467
    %v2636 = vpack.c.b16 %v2472, %v2468
    %v2637 = vpack.c.b16 %v2473, %v2469
    %v2638 = vpack.c.b16 %v2474, %v2470
    %v2639 = vpack.c.b16 %v2479, %v2475
    %v2640 = vpack.c.b16 %v2480, %v2476
    %v2641 = vpack.c.b16 %v2481, %v2477
    %v2642 = vpack.c.b16 %v2482, %v2478
    %v2643 = vpack.c.b16 %v2487, %v2483
    %v2644 = vpack.c.b16 %v2488, %v2484
    %v2645 = vpack.c.b16 %v2489, %v2485
    %v2646 = vpack.c.b16 %v2490, %v2486
    %v2647 = vpack.c.b16 %v2495, %v2491
    %v2648 = vpack.c.b16 %v2496, %v2492
    %v2649 = vpack.c.b16 %v2497, %v2493
    %v2650 = vpack.c.b16 %v2498, %v2494
    %v2651 = vpack.c.b16 %v2503, %v2499
    %v2652 = vpack.c.b16 %v2504, %v2500
    %v2653 = vpack.c.b16 %v2505, %v2501
    %v2654 = vpack.c.b16 %v2506, %v2502
    %v2655 = vpack.c.b16 %v2511, %v2507
    %v2656 = vpack.c.b16 %v2512, %v2508
    %v2657 = vpack.c.b16 %v2513, %v2509
    %v2658 = vpack.c.b16 %v2514, %v2510
    %v2659 = vpack.c.b16 %v2519, %v2515
    %v2660 = vpack.c.b16 %v2520, %v2516
    %v2661 = vpack.c.b16 %v2521, %v2517
    %v2662 = vpack.c.b16 %v2522, %v2518
    %v2663 = vpack.c.b16 %v2527, %v2523
    %v2664 = vpack.c.b16 %v2528, %v2524
    %v2665 = vpack.c.b16 %v2529, %v2525
    %v2666 = vpack.c.b16 %v2530, %v2526
    %v2667 = vpack.c.b16 %v2535, %v2531
    %v2668 = vpack.c.b16 %v2536, %v2532
    %v2669 = vpack.c.b16 %v2537, %v2533
    %v2670 = vpack.c.b16 %v2538, %v2534
    %v2671 = vpack.c.b16 %v2543, %v2539
    %v2672 = vpack.c.b16 %v2544, %v2540
    %v2673 = vpack.c.b16 %v2545, %v2541
    %v2674 = vpack.c.b16 %v2546, %v2542
    %2803 = vmatprep.subr.bf16.mxu0 %v2548
    %2804 = vmatpush1.bf16.msra.mxu0 %v2547
    %2805 = vmatprep.subr.bf16.mxu0 %v2552
    %2806 = vmatpush1.bf16.msra.mxu0 %v2551
    %2807 = vmatprep.subr.bf16.mxu0 %v2556
    %2808 = vmatpush1.bf16.msra.mxu0 %v2555
    %2809 = vmatprep.subr.bf16.mxu0 %v2560
    %2810 = vmatpush1.bf16.msra.mxu0 %v2559
    %2811 = vmatprep.subr.bf16.mxu0 %v2564
    %2812 = vmatpush1.bf16.msra.mxu0 %v2563
    %2813 = vmatprep.subr.bf16.mxu0 %v2568
    %2814 = vmatpush1.bf16.msra.mxu0 %v2567
    %2815 = vmatprep.subr.bf16.mxu0 %v2572
    %2816 = vmatpush1.bf16.msra.mxu0 %v2571
    %2817 = vmatprep.subr.bf16.mxu0 %v2576
    %2818 = vmatpush1.bf16.msra.mxu0 %v2575
    %2819 = vmatprep.subr.bf16.mxu0 %v2580
    %2820 = vmatpush1.bf16.msra.mxu0 %v2579
    %2821 = vmatprep.subr.bf16.mxu0 %v2584
    %2822 = vmatpush1.bf16.msra.mxu0 %v2583
    %2823 = vmatprep.subr.bf16.mxu0 %v2588
    %2824 = vmatpush1.bf16.msra.mxu0 %v2587
    %2825 = vmatprep.subr.bf16.mxu0 %v2592
    %2826 = vmatpush1.bf16.msra.mxu0 %v2591
    %2827 = vmatprep.subr.bf16.mxu0 %v2596
    %2828 = vmatpush1.bf16.msra.mxu0 %v2595
    %2829 = vmatprep.subr.bf16.mxu0 %v2600
    %2830 = vmatpush1.bf16.msra.mxu0 %v2599
    %2831 = vmatprep.subr.bf16.mxu0 %v2604
    %2832 = vmatpush1.bf16.msra.mxu0 %v2603
    %2833 = vmatprep.subr.bf16.mxu0 %v2608
    %2834 = vmatpush1.bf16.msra.mxu0 %v2607
    %2835 = vmatprep.mubr.bf16.mxu0 %v2009
    %2836 = vmatmul.mubr.bf16.gmra.mrb[0].mxu0 %v2008
    %v2837 = vpop.f32.mrb[0].mxu0
    %v2838 = vadd.f32 %v2146, %v2837
    %v2839 = vpop.f32.mrb[0].mxu0
    %v2840 = vadd.f32 %v2150, %v2839
    %v2841 = vpop.f32.mrb[0].mxu0
    %v2842 = vpop.f32.mrb[0].mxu0
    %2843 = vdwg.mxu0
    %2844 = vmatprep.subr.bf16.mxu0 %v2612
    %2845 = vmatpush1.bf16.msra.mxu0 %v2611
    %2846 = vmatprep.subr.bf16.mxu0 %v2616
    %2847 = vmatpush1.bf16.msra.mxu0 %v2615
    %2848 = vmatprep.subr.bf16.mxu0 %v2620
    %2849 = vmatpush1.bf16.msra.mxu0 %v2619
    %2850 = vmatprep.subr.bf16.mxu0 %v2624
    %2851 = vmatpush1.bf16.msra.mxu0 %v2623
    %2852 = vmatprep.subr.bf16.mxu0 %v2628
    %2853 = vmatpush1.bf16.msra.mxu0 %v2627
    %2854 = vmatprep.subr.bf16.mxu0 %v2632
    %2855 = vmatpush1.bf16.msra.mxu0 %v2631
    %2856 = vmatprep.subr.bf16.mxu0 %v2636
    %2857 = vmatpush1.bf16.msra.mxu0 %v2635
    %2858 = vmatprep.subr.bf16.mxu0 %v2640
    %2859 = vmatpush1.bf16.msra.mxu0 %v2639
    %2860 = vmatprep.subr.bf16.mxu0 %v2644
    %2861 = vmatpush1.bf16.msra.mxu0 %v2643
    %2862 = vmatprep.subr.bf16.mxu0 %v2648
    %2863 = vmatpush1.bf16.msra.mxu0 %v2647
    %2864 = vmatprep.subr.bf16.mxu0 %v2652
    %2865 = vmatpush1.bf16.msra.mxu0 %v2651
    %2866 = vmatprep.subr.bf16.mxu0 %v2656
    %2867 = vmatpush1.bf16.msra.mxu0 %v2655
    %2868 = vmatprep.subr.bf16.mxu0 %v2660
    %2869 = vmatpush1.bf16.msra.mxu0 %v2659
    %2870 = vmatprep.subr.bf16.mxu0 %v2664
    %2871 = vmatpush1.bf16.msra.mxu0 %v2663
    %2872 = vmatprep.subr.bf16.mxu0 %v2668
    %2873 = vmatpush1.bf16.msra.mxu0 %v2667
    %2874 = vmatprep.subr.bf16.mxu0 %v2672
    %2875 = vmatpush1.bf16.msra.mxu0 %v2671
    %2876 = vmatprep.mubr.bf16.mxu0 %v2011
    %2877 = vmatmul.mubr.bf16.gmra.mrb[0].mxu0 %v2010
    %v2878 = vpop.f32.mrb[0].mxu0
    %v2879 = vadd.f32 %v2838, %v2878
    %v2880 = vpop.f32.mrb[0].mxu0
    %v2881 = vadd.f32 %v2840, %v2880
    %v2882 = vpop.f32.mrb[0].mxu0
    %v2883 = vpop.f32.mrb[0].mxu0
    %2884 = vdwg.mxu0
    %2885 = vmatprep.subr.bf16.mxu0 %v2550
    %2886 = vmatpush1.bf16.msra.mxu0 %v2549
    %2887 = vmatprep.subr.bf16.mxu0 %v2554
    %2888 = vmatpush1.bf16.msra.mxu0 %v2553
    %2889 = vmatprep.subr.bf16.mxu0 %v2558
    %2890 = vmatpush1.bf16.msra.mxu0 %v2557
    %2891 = vmatprep.subr.bf16.mxu0 %v2562
    %2892 = vmatpush1.bf16.msra.mxu0 %v2561
    %2893 = vmatprep.subr.bf16.mxu0 %v2566
    %2894 = vmatpush1.bf16.msra.mxu0 %v2565
    %2895 = vmatprep.subr.bf16.mxu0 %v2570
    %2896 = vmatpush1.bf16.msra.mxu0 %v2569
    %2897 = vmatprep.subr.bf16.mxu0 %v2574
    %2898 = vmatpush1.bf16.msra.mxu0 %v2573
    %2899 = vmatprep.subr.bf16.mxu0 %v2578
    %2900 = vmatpush1.bf16.msra.mxu0 %v2577
    %2901 = vmatprep.subr.bf16.mxu0 %v2582
    %2902 = vmatpush1.bf16.msra.mxu0 %v2581
    %2903 = vmatprep.subr.bf16.mxu0 %v2586
    %2904 = vmatpush1.bf16.msra.mxu0 %v2585
    %2905 = vmatprep.subr.bf16.mxu0 %v2590
    %2906 = vmatpush1.bf16.msra.mxu0 %v2589
    %2907 = vmatprep.subr.bf16.mxu0 %v2594
    %2908 = vmatpush1.bf16.msra.mxu0 %v2593
    %2909 = vmatprep.subr.bf16.mxu0 %v2598
    %2910 = vmatpush1.bf16.msra.mxu0 %v2597
    %2911 = vmatprep.subr.bf16.mxu0 %v2602
    %2912 = vmatpush1.bf16.msra.mxu0 %v2601
    %2913 = vmatprep.subr.bf16.mxu0 %v2606
    %2914 = vmatpush1.bf16.msra.mxu0 %v2605
    %2915 = vmatprep.subr.bf16.mxu0 %v2610
    %2916 = vmatpush1.bf16.msra.mxu0 %v2609
    %2917 = vmatprep.mubr.bf16.mxu0 %v2009
    %2918 = vmatmul.mubr.bf16.gmra.mrb[0].mxu0 %v2008
    %v2919 = vpop.f32.mrb[0].mxu0
    %v2920 = vadd.f32 %v2154, %v2919
    %v2921 = vpop.f32.mrb[0].mxu0
    %v2922 = vadd.f32 %v2158, %v2921
    %v2923 = vpop.f32.mrb[0].mxu0
    %v2924 = vpop.f32.mrb[0].mxu0
    %2925 = vdwg.mxu0
    %2926 = vmatprep.subr.bf16.mxu0 %v2614
    %2927 = vmatpush1.bf16.msra.mxu0 %v2613
    %2928 = vmatprep.subr.bf16.mxu0 %v2618
    %2929 = vmatpush1.bf16.msra.mxu0 %v2617
    %2930 = vmatprep.subr.bf16.mxu0 %v2622
    %2931 = vmatpush1.bf16.msra.mxu0 %v2621
    %2932 = vmatprep.subr.bf16.mxu0 %v2626
    %2933 = vmatpush1.bf16.msra.mxu0 %v2625
    %2934 = vmatprep.subr.bf16.mxu0 %v2630
    %2935 = vmatpush1.bf16.msra.mxu0 %v2629
    %2936 = vmatprep.subr.bf16.mxu0 %v2634
    %2937 = vmatpush1.bf16.msra.mxu0 %v2633
    %2938 = vmatprep.subr.bf16.mxu0 %v2638
    %2939 = vmatpush1.bf16.msra.mxu0 %v2637
    %2940 = vmatprep.subr.bf16.mxu0 %v2642
    %2941 = vmatpush1.bf16.msra.mxu0 %v2641
    %2942 = vmatprep.subr.bf16.mxu0 %v2646
    %2943 = vmatpush1.bf16.msra.mxu0 %v2645
    %2944 = vmatprep.subr.bf16.mxu0 %v2650
    %2945 = vmatpush1.bf16.msra.mxu0 %v2649
    %2946 = vmatprep.subr.bf16.mxu0 %v2654
    %2947 = vmatpush1.bf16.msra.mxu0 %v2653
    %2948 = vmatprep.subr.bf16.mxu0 %v2658
    %2949 = vmatpush1.bf16.msra.mxu0 %v2657
    %2950 = vmatprep.subr.bf16.mxu0 %v2662
    %2951 = vmatpush1.bf16.msra.mxu0 %v2661
    %2952 = vmatprep.subr.bf16.mxu0 %v2666
    %2953 = vmatpush1.bf16.msra.mxu0 %v2665
    %2954 = vmatprep.subr.bf16.mxu0 %v2670
    %2955 = vmatpush1.bf16.msra.mxu0 %v2669
    %2956 = vmatprep.subr.bf16.mxu0 %v2674
    %2957 = vmatpush1.bf16.msra.mxu0 %v2673
    %2958 = vmatprep.mubr.bf16.mxu0 %v2011
    %2959 = vmatmul.mubr.bf16.gmra.mrb[0].mxu0 %v2010
    %v2960 = vpop.f32.mrb[0].mxu0
    %v2961 = vadd.f32 %v2920, %v2960
    %v2962 = vpop.f32.mrb[0].mxu0
    %v2963 = vadd.f32 %v2922, %v2962
    %v2964 = vpop.f32.mrb[0].mxu0
    %v2965 = vpop.f32.mrb[0].mxu0
    %2966 = vdwg.mxu0
    %v2967 = vmax.f32 %v2879, 0.0
    %v2968 = vmax.f32 %v2881, 0.0
    %v2969 = vmax.f32 %v2961, 0.0
    %v2970 = vmax.f32 %v2963, 0.0
    %v2971 = vpack.c.bf16 %v2967, %v2967
    %v2972 = vpack.c.bf16 %v2968, %v2968
    %v2973 = vpack.c.bf16 %v2969, %v2969
    %v2974 = vpack.c.bf16 %v2970, %v2970
    %v2975 = vld [vmem:[#allocation4] sm:$0xf]
    %v2976 = vld [vmem:[#allocation4 + $0x4] sm:$0xf]
    %v2977 = vld [vmem:[#allocation4 + $0x8] sm:$0xf]
    %v2978 = vld [vmem:[#allocation4 + $0xc] sm:$0xf]
    %v2979 = vld [vmem:[#allocation4 + $0x10] sm:$0xf]
    %v2980 = vld [vmem:[#allocation4 + $0x14] sm:$0xf]
    %v2981 = vld [vmem:[#allocation4 + $0x18] sm:$0xf]
    %v2982 = vld [vmem:[#allocation4 + $0x1c] sm:$0xf]
    %v2983 = vld [vmem:[#allocation4 + $0x20] sm:$0xf]
    %v2984 = vld [vmem:[#allocation4 + $0x24] sm:$0xf]
    %v2985 = vld [vmem:[#allocation4 + $0x28] sm:$0xf]
    %v2986 = vld [vmem:[#allocation4 + $0x2c] sm:$0xf]
    %v2987 = vld [vmem:[#allocation4 + $0x30] sm:$0xf]
    %v2988 = vld [vmem:[#allocation4 + $0x34] sm:$0xf]
    %v2989 = vld [vmem:[#allocation4 + $0x38] sm:$0xf]
    %v2990 = vld [vmem:[#allocation4 + $0x3c] sm:$0xf]
    %v2991 = vld [vmem:[#allocation4 + $0x40] sm:$0xf]
    %v2992 = vld [vmem:[#allocation4 + $0x44] sm:$0xf]
    %v2993 = vld [vmem:[#allocation4 + $0x48] sm:$0xf]
    %v2994 = vld [vmem:[#allocation4 + $0x4c] sm:$0xf]
    %v2995 = vld [vmem:[#allocation4 + $0x50] sm:$0xf]
    %v2996 = vld [vmem:[#allocation4 + $0x54] sm:$0xf]
    %v2997 = vld [vmem:[#allocation4 + $0x58] sm:$0xf]
    %v2998 = vld [vmem:[#allocation4 + $0x5c] sm:$0xf]
    %v2999 = vld [vmem:[#allocation4 + $0x60] sm:$0xf]
    %v3000 = vld [vmem:[#allocation4 + $0x64] sm:$0xf]
    %v3001 = vld [vmem:[#allocation4 + $0x68] sm:$0xf]
    %v3002 = vld [vmem:[#allocation4 + $0x6c] sm:$0xf]
    %v3003 = vld [vmem:[#allocation4 + $0x70] sm:$0xf]
    %v3004 = vld [vmem:[#allocation4 + $0x74] sm:$0xf]
    %v3005 = vld [vmem:[#allocation4 + $0x78] sm:$0xf]
    %v3006 = vld [vmem:[#allocation4 + $0x7c] sm:$0xf]
    %v3007 = vld [vmem:[#allocation4 + $0x80] sm:$0xf]
    %v3008 = vld [vmem:[#allocation4 + $0x84] sm:$0xf]
    %v3009 = vld [vmem:[#allocation4 + $0x88] sm:$0xf]
    %v3010 = vld [vmem:[#allocation4 + $0x8c] sm:$0xf]
    %v3011 = vld [vmem:[#allocation4 + $0x90] sm:$0xf]
    %v3012 = vld [vmem:[#allocation4 + $0x94] sm:$0xf]
    %v3013 = vld [vmem:[#allocation4 + $0x98] sm:$0xf]
    %v3014 = vld [vmem:[#allocation4 + $0x9c] sm:$0xf]
    %v3015 = vld [vmem:[#allocation4 + $0xa0] sm:$0xf]
    %v3016 = vld [vmem:[#allocation4 + $0xa4] sm:$0xf]
    %v3017 = vld [vmem:[#allocation4 + $0xa8] sm:$0xf]
    %v3018 = vld [vmem:[#allocation4 + $0xac] sm:$0xf]
    %v3019 = vld [vmem:[#allocation4 + $0xb0] sm:$0xf]
    %v3020 = vld [vmem:[#allocation4 + $0xb4] sm:$0xf]
    %v3021 = vld [vmem:[#allocation4 + $0xb8] sm:$0xf]
    %v3022 = vld [vmem:[#allocation4 + $0xbc] sm:$0xf]
    %v3023 = vld [vmem:[#allocation4 + $0xc0] sm:$0xf]
    %v3024 = vld [vmem:[#allocation4 + $0xc4] sm:$0xf]
    %v3025 = vld [vmem:[#allocation4 + $0xc8] sm:$0xf]
    %v3026 = vld [vmem:[#allocation4 + $0xcc] sm:$0xf]
    %v3027 = vld [vmem:[#allocation4 + $0xd0] sm:$0xf]
    %v3028 = vld [vmem:[#allocation4 + $0xd4] sm:$0xf]
    %v3029 = vld [vmem:[#allocation4 + $0xd8] sm:$0xf]
    %v3030 = vld [vmem:[#allocation4 + $0xdc] sm:$0xf]
    %v3031 = vld [vmem:[#allocation4 + $0xe0] sm:$0xf]
    %v3032 = vld [vmem:[#allocation4 + $0xe4] sm:$0xf]
    %v3033 = vld [vmem:[#allocation4 + $0xe8] sm:$0xf]
    %v3034 = vld [vmem:[#allocation4 + $0xec] sm:$0xf]
    %v3035 = vld [vmem:[#allocation4 + $0xf0] sm:$0xf]
    %v3036 = vld [vmem:[#allocation4 + $0xf4] sm:$0xf]
    %v3037 = vld [vmem:[#allocation4 + $0xf8] sm:$0xf]
    %v3038 = vld [vmem:[#allocation4 + $0xfc] sm:$0xf]
    %v3039 = vld [vmem:[#allocation7 + $0x2] ss:$0 sm:$0xff]
    %v3104 = vunpack.c.l.b16 %v2975
    %v3105 = vunpack.c.l.b16 %v2976
    %v3106 = vunpack.c.l.b16 %v2977
    %v3107 = vunpack.c.l.b16 %v2978
    %v3108 = vunpack.c.l.b16 %v2979
    %v3109 = vunpack.c.l.b16 %v2980
    %v3110 = vunpack.c.l.b16 %v2981
    %v3111 = vunpack.c.l.b16 %v2982
    %v3112 = vunpack.c.l.b16 %v2983
    %v3113 = vunpack.c.l.b16 %v2984
    %v3114 = vunpack.c.l.b16 %v2985
    %v3115 = vunpack.c.l.b16 %v2986
    %v3116 = vunpack.c.l.b16 %v2987
    %v3117 = vunpack.c.l.b16 %v2988
    %v3118 = vunpack.c.l.b16 %v2989
    %v3119 = vunpack.c.l.b16 %v2990
    %v3120 = vunpack.c.l.b16 %v2991
    %v3121 = vunpack.c.l.b16 %v2992
    %v3122 = vunpack.c.l.b16 %v2993
    %v3123 = vunpack.c.l.b16 %v2994
    %v3124 = vunpack.c.l.b16 %v2995
    %v3125 = vunpack.c.l.b16 %v2996
    %v3126 = vunpack.c.l.b16 %v2997
    %v3127 = vunpack.c.l.b16 %v2998
    %v3128 = vunpack.c.l.b16 %v2999
    %v3129 = vunpack.c.l.b16 %v3000
    %v3130 = vunpack.c.l.b16 %v3001
    %v3131 = vunpack.c.l.b16 %v3002
    %v3132 = vunpack.c.l.b16 %v3003
    %v3133 = vunpack.c.l.b16 %v3004
    %v3134 = vunpack.c.l.b16 %v3005
    %v3135 = vunpack.c.l.b16 %v3006
    %v3136 = vunpack.c.l.b16 %v3007
    %v3137 = vunpack.c.l.b16 %v3008
    %v3138 = vunpack.c.l.b16 %v3009
    %v3139 = vunpack.c.l.b16 %v3010
    %v3140 = vunpack.c.l.b16 %v3011
    %v3141 = vunpack.c.l.b16 %v3012
    %v3142 = vunpack.c.l.b16 %v3013
    %v3143 = vunpack.c.l.b16 %v3014
    %v3144 = vunpack.c.l.b16 %v3015
    %v3145 = vunpack.c.l.b16 %v3016
    %v3146 = vunpack.c.l.b16 %v3017
    %v3147 = vunpack.c.l.b16 %v3018
    %v3148 = vunpack.c.l.b16 %v3019
    %v3149 = vunpack.c.l.b16 %v3020
    %v3150 = vunpack.c.l.b16 %v3021
    %v3151 = vunpack.c.l.b16 %v3022
    %v3152 = vunpack.c.l.b16 %v3023
    %v3153 = vunpack.c.l.b16 %v3024
    %v3154 = vunpack.c.l.b16 %v3025
    %v3155 = vunpack.c.l.b16 %v3026
    %v3156 = vunpack.c.l.b16 %v3027
    %v3157 = vunpack.c.l.b16 %v3028
    %v3158 = vunpack.c.l.b16 %v3029
    %v3159 = vunpack.c.l.b16 %v3030
    %v3160 = vunpack.c.l.b16 %v3031
    %v3161 = vunpack.c.l.b16 %v3032
    %v3162 = vunpack.c.l.b16 %v3033
    %v3163 = vunpack.c.l.b16 %v3034
    %v3164 = vunpack.c.l.b16 %v3035
    %v3165 = vunpack.c.l.b16 %v3036
    %v3166 = vunpack.c.l.b16 %v3037
    %v3167 = vunpack.c.l.b16 %v3038
    %v3168 = vpack.c.b16 %v3105, %v3104
    %v3169 = vpack.c.b16 %v3107, %v3106
    %v3170 = vpack.c.b16 %v3109, %v3108
    %v3171 = vpack.c.b16 %v3111, %v3110
    %v3172 = vpack.c.b16 %v3113, %v3112
    %v3173 = vpack.c.b16 %v3115, %v3114
    %v3174 = vpack.c.b16 %v3117, %v3116
    %v3175 = vpack.c.b16 %v3119, %v3118
    %v3176 = vpack.c.b16 %v3121, %v3120
    %v3177 = vpack.c.b16 %v3123, %v3122
    %v3178 = vpack.c.b16 %v3125, %v3124
    %v3179 = vpack.c.b16 %v3127, %v3126
    %v3180 = vpack.c.b16 %v3129, %v3128
    %v3181 = vpack.c.b16 %v3131, %v3130
    %v3182 = vpack.c.b16 %v3133, %v3132
    %v3183 = vpack.c.b16 %v3135, %v3134
    %v3184 = vpack.c.b16 %v3137, %v3136
    %v3185 = vpack.c.b16 %v3139, %v3138
    %v3186 = vpack.c.b16 %v3141, %v3140
    %v3187 = vpack.c.b16 %v3143, %v3142
    %v3188 = vpack.c.b16 %v3145, %v3144
    %v3189 = vpack.c.b16 %v3147, %v3146
    %v3190 = vpack.c.b16 %v3149, %v3148
    %v3191 = vpack.c.b16 %v3151, %v3150
    %v3192 = vpack.c.b16 %v3153, %v3152
    %v3193 = vpack.c.b16 %v3155, %v3154
    %v3194 = vpack.c.b16 %v3157, %v3156
    %v3195 = vpack.c.b16 %v3159, %v3158
    %v3196 = vpack.c.b16 %v3161, %v3160
    %v3197 = vpack.c.b16 %v3163, %v3162
    %v3198 = vpack.c.b16 %v3165, %v3164
    %v3199 = vpack.c.b16 %v3167, %v3166
    %3232 = vmatprep.subr.bf16.mxu0 0
    %3233 = vmatpush1.bf16.msra.mxu0 %v3168
    %3234 = vmatprep.subr.bf16.mxu0 0
    %3235 = vmatpush1.bf16.msra.mxu0 %v3169
    %3236 = vmatprep.subr.bf16.mxu0 0
    %3237 = vmatpush1.bf16.msra.mxu0 %v3170
    %3238 = vmatprep.subr.bf16.mxu0 0
    %3239 = vmatpush1.bf16.msra.mxu0 %v3171
    %3240 = vmatprep.subr.bf16.mxu0 0
    %3241 = vmatpush1.bf16.msra.mxu0 %v3172
    %3242 = vmatprep.subr.bf16.mxu0 0
    %3243 = vmatpush1.bf16.msra.mxu0 %v3173
    %3244 = vmatprep.subr.bf16.mxu0 0
    %3245 = vmatpush1.bf16.msra.mxu0 %v3174
    %3246 = vmatprep.subr.bf16.mxu0 0
    %3247 = vmatpush1.bf16.msra.mxu0 %v3175
    %3248 = vmatprep.subr.bf16.mxu0 0
    %3249 = vmatpush1.bf16.msra.mxu0 %v3176
    %3250 = vmatprep.subr.bf16.mxu0 0
    %3251 = vmatpush1.bf16.msra.mxu0 %v3177
    %3252 = vmatprep.subr.bf16.mxu0 0
    %3253 = vmatpush1.bf16.msra.mxu0 %v3178
    %3254 = vmatprep.subr.bf16.mxu0 0
    %3255 = vmatpush1.bf16.msra.mxu0 %v3179
    %3256 = vmatprep.subr.bf16.mxu0 0
    %3257 = vmatpush1.bf16.msra.mxu0 %v3180
    %3258 = vmatprep.subr.bf16.mxu0 0
    %3259 = vmatpush1.bf16.msra.mxu0 %v3181
    %3260 = vmatprep.subr.bf16.mxu0 0
    %3261 = vmatpush1.bf16.msra.mxu0 %v3182
    %3262 = vmatprep.subr.bf16.mxu0 0
    %3263 = vmatpush1.bf16.msra.mxu0 %v3183
    %3264 = vmatprep.mubr.bf16.mxu0 %v2972
    %3265 = vmatmul.mubr.bf16.gmra.mrb[0].mxu0 %v2971
    %v3266 = vpop.f32.mrb[0].mxu0
    %v3267 = vadd.f32 %v3039, %v3266
    %v3268 = vpop.f32.mrb[0].mxu0
    %v3269 = vpop.f32.mrb[0].mxu0
    %v3270 = vpop.f32.mrb[0].mxu0
    %3271 = vdwg.mxu0
    %3272 = vmatprep.subr.bf16.mxu0 0
    %3273 = vmatpush1.bf16.msra.mxu0 %v3184
    %3274 = vmatprep.subr.bf16.mxu0 0
    %3275 = vmatpush1.bf16.msra.mxu0 %v3185
    %3276 = vmatprep.subr.bf16.mxu0 0
    %3277 = vmatpush1.bf16.msra.mxu0 %v3186
    %3278 = vmatprep.subr.bf16.mxu0 0
    %3279 = vmatpush1.bf16.msra.mxu0 %v3187
    %3280 = vmatprep.subr.bf16.mxu0 0
    %3281 = vmatpush1.bf16.msra.mxu0 %v3188
    %3282 = vmatprep.subr.bf16.mxu0 0
    %3283 = vmatpush1.bf16.msra.mxu0 %v3189
    %3284 = vmatprep.subr.bf16.mxu0 0
    %3285 = vmatpush1.bf16.msra.mxu0 %v3190
    %3286 = vmatprep.subr.bf16.mxu0 0
    %3287 = vmatpush1.bf16.msra.mxu0 %v3191
    %3288 = vmatprep.subr.bf16.mxu0 0
    %3289 = vmatpush1.bf16.msra.mxu0 %v3192
    %3290 = vmatprep.subr.bf16.mxu0 0
    %3291 = vmatpush1.bf16.msra.mxu0 %v3193
    %3292 = vmatprep.subr.bf16.mxu0 0
    %3293 = vmatpush1.bf16.msra.mxu0 %v3194
    %3294 = vmatprep.subr.bf16.mxu0 0
    %3295 = vmatpush1.bf16.msra.mxu0 %v3195
    %3296 = vmatprep.subr.bf16.mxu0 0
    %3297 = vmatpush1.bf16.msra.mxu0 %v3196
    %3298 = vmatprep.subr.bf16.mxu0 0
    %3299 = vmatpush1.bf16.msra.mxu0 %v3197
    %3300 = vmatprep.subr.bf16.mxu0 0
    %3301 = vmatpush1.bf16.msra.mxu0 %v3198
    %3302 = vmatprep.subr.bf16.mxu0 0
    %3303 = vmatpush1.bf16.msra.mxu0 %v3199
    %3304 = vmatprep.mubr.bf16.mxu0 %v2974
    %3305 = vmatmul.mubr.bf16.gmra.mrb[0].mxu0 %v2973
    %v3306 = vpop.f32.mrb[0].mxu0
    %v3307 = vadd.f32 %v3267, %v3306
    %v3308 = vpop.f32.mrb[0].mxu0
    %v3309 = vpop.f32.mrb[0].mxu0
    %v3310 = vpop.f32.mrb[0].mxu0
    %3311 = vdwg.mxu0
    %v3312 = vtanh.pop %v3307
    %v3313 = vmul.f32 %v3312, 10.0
    %v3314 = vxor.u32 %v3307, 2147483648
    %v3315 = vmul.f32 %v3314, 1.442695
    %v3316 = vpow.pop %v3315
    %v3317 = vadd.f32 %v3316, 1.0
    %v3318 = vrcp.pop %v3317
    %v3319 = vmul.f32 1.0, %v3318
    %v3320 = vsub.f32 0.0, %v3307
    %v3321 = vmax.f32 %v3320, 0.0
    %v3322 = vand.u32 2147483647, %v3307
    %v3323 = vsub.f32 0.0, %v3322
    %v3324 = vmul.f32 %v3323, 1.442695
    %v3325 = vpow.pop %v3324
    %v3326 = vadd.f32 %v3325, 1.0
    %v3327 = vlog2.pop %v3326
    %v3328 = vmul.f32 %v3327, 0.6931472
    %v3329 = vmul.f32 -0.5, %v3325
    %v3330 = vadd.f32 %v3329, 1.0
    %v3331 = vmul.f32 %v3330, %v3325
    %v3332 = vand.u32 2147483647, %v3325
    %vm3333 = vcmp.lt.f32.partialorder %v3332, 0.0004427343
    %v3334 = vsel %vm3333, %v3331, %v3328
    %v3335 = vadd.f32 %v3321, %v3334
    %v3336 = vmul.f32 %v3335, -2.0
    %v3337 = vmul.f32 %v3319, %v3319
    %v3338 = vsub.f32 %v3336, %v3337
    %v3339 = vmul.f32 %v3313, %v3313
    %3341 = vrot.lane.b32.xlu0 %v3339, 64
    %v3342 = vpop.permute.xlu0 %3341
    %v3344 = vsub.f32 %v3338, %v3342
    %3346 = vrot.lane.b32.xlu0 %v3344, 64
    %v3347 = vpop.permute.xlu0 %3346
    %vm3349 = vcmask 523264
    %v3350 = vsel %vm3349, %v3347, 0.0
    %3351 = vadd.xlane.f32.xlu0 %v3350
    %v3352 = vpop.xlane.xlu0 %3351
    %v3353 = vpack.c.bf16 %v3313, %v3313
    %v3354 = vld [vmem:[%s4] sm:$0xf]
    %v3355 = vld [vmem:[%s4 + $0x4] sm:$0xf]
    %v3356 = vld [vmem:[%s4 + $0x8] sm:$0xf]
    %v3357 = vld [vmem:[%s4 + $0xc] sm:$0xf]
    %v3358 = vld [vmem:[%s4 + $0x10] sm:$0xf]
    %v3359 = vld [vmem:[%s4 + $0x14] sm:$0xf]
    %v3360 = vld [vmem:[%s4 + $0x18] sm:$0xf]
    %v3361 = vld [vmem:[%s4 + $0x1c] sm:$0xf]
    %v3362 = vld [vmem:[#allocation7 + $0x3] ss:$0 sm:$0xff]
    %v3371 = vunpack.c.l.b16 %v3354
    %v3372 = vunpack.c.l.b16 %v3355
    %v3373 = vunpack.c.l.b16 %v3356
    %v3374 = vunpack.c.l.b16 %v3357
    %v3375 = vunpack.c.l.b16 %v3358
    %v3376 = vunpack.c.l.b16 %v3359
    %v3377 = vunpack.c.l.b16 %v3360
    %v3378 = vunpack.c.l.b16 %v3361
    %v3379 = vpack.c.b16 %v3372, %v3371
    %v3380 = vpack.c.b16 %v3374, %v3373
    %v3381 = vpack.c.b16 %v3376, %v3375
    %v3382 = vpack.c.b16 %v3378, %v3377
    %v3388 = vsel %vm3349, %v3353, 0
    %3390 = vmatprep.subr.bf16.mxu0 0
    %3391 = vmatpush1.bf16.msra.mxu0 %v3379
    %3392 = vmatprep.subr.bf16.mxu0 0
    %3393 = vmatpush1.bf16.msra.mxu0 %v3380
    %3394 = vmatprep.subr.bf16.mxu0 0
    %3395 = vmatpush1.bf16.msra.mxu0 %v3381
    %3396 = vmatprep.subr.bf16.mxu0 0
    %3397 = vmatpush1.bf16.msra.mxu0 %v3382
    %3398 = vmatprep.subr.bf16.mxu0 0
    %3399 = vmatpush1.bf16.msra.mxu0 0
    %3400 = vmatprep.subr.bf16.mxu0 0
    %3401 = vmatpush1.bf16.msra.mxu0 0
    %3402 = vmatprep.subr.bf16.mxu0 0
    %3403 = vmatpush1.bf16.msra.mxu0 0
    %3404 = vmatprep.subr.bf16.mxu0 0
    %3405 = vmatpush1.bf16.msra.mxu0 0
    %3406 = vmatprep.subr.bf16.mxu0 0
    %3407 = vmatpush1.bf16.msra.mxu0 0
    %3408 = vmatprep.subr.bf16.mxu0 0
    %3409 = vmatpush1.bf16.msra.mxu0 0
    %3410 = vmatprep.subr.bf16.mxu0 0
    %3411 = vmatpush1.bf16.msra.mxu0 0
    %3412 = vmatprep.subr.bf16.mxu0 0
    %3413 = vmatpush1.bf16.msra.mxu0 0
    %3414 = vmatprep.subr.bf16.mxu0 0
    %3415 = vmatpush1.bf16.msra.mxu0 0
    %3416 = vmatprep.subr.bf16.mxu0 0
    %3417 = vmatpush1.bf16.msra.mxu0 0
    %3418 = vmatprep.subr.bf16.mxu0 0
    %3419 = vmatpush1.bf16.msra.mxu0 0
    %3420 = vmatprep.subr.bf16.mxu0 0
    %3421 = vmatpush1.bf16.msra.mxu0 0
    %3422 = vmatprep.mubr.bf16.mxu0 0
    %3423 = vmatmul.mubr.bf16.gmra.mrb[0].mxu0 %v3388
    %v3424 = vpop.f32.mrb[0].mxu0
    %v3425 = vadd.f32 %v3362, %v3424
    %v3426 = vpop.f32.mrb[0].mxu0
    %v3427 = vpop.f32.mrb[0].mxu0
    %v3428 = vpop.f32.mrb[0].mxu0
    %3429 = vdwg.mxu0
    %v3430 = vxor.u32 %v3425, 2147483648
    %v3431 = vmul.f32 %v3430, 1.442695
    %v3432 = vpow.pop %v3431
    %v3433 = vadd.f32 %v3432, 1.0
    %v3434 = vrcp.pop %v3433
    %v3435 = vmul.f32 1.0, %v3434
    %v3436 = vround.ne.pseudo %v3435
    %v3437 = vsub.f32 %v3436, 0.5
    %v3438 = vpack.c.bf16 %v3437, %v3437
    %v3439 = vld [vmem:[%s5] sm:$0xff]
    %v3440 = vld [vmem:[%s5 + $0x8] sm:$0xff]
    %v3441 = vld [vmem:[%s5 + $0x10] sm:$0xff]
    %v3442 = vld [vmem:[%s5 + $0x18] sm:$0xff]
    %v3443 = vld [vmem:[%s5 + $0x20] sm:$0xff]
    %v3444 = vld [vmem:[%s5 + $0x28] sm:$0xff]
    %v3445 = vld [vmem:[%s5 + $0x30] sm:$0xff]
    %v3446 = vld [vmem:[%s5 + $0x38] sm:$0xff]
    %s3447 = scalar_lea.vmem [#allocation7], 4
    %v3448 = vld [vmem:[%s3447] ss:$8 sm:$0x3]
    %v3450 = vlaneseq
    %v3451 = vshrl.u32 %v3450, 7
    %v3452 = vsub.s32 0, %v3451
    %v3453 = vrot.slane %v3448, %v3452
    %v3454 = vlaneseq
    %v3455 = vshrl.u32 %v3454, 7
    %v3456 = vsub.s32 1, %v3455
    %v3457 = vrot.slane %v3448, %v3456
    %v3468 = vunpack.c.l.b16 %v3439
    %v3469 = vunpack.c.h.b16 %v3439
    %v3470 = vunpack.c.l.b16 %v3440
    %v3471 = vunpack.c.h.b16 %v3440
    %v3472 = vunpack.c.l.b16 %v3441
    %v3473 = vunpack.c.h.b16 %v3441
    %v3474 = vunpack.c.l.b16 %v3442
    %v3475 = vunpack.c.h.b16 %v3442
    %v3476 = vunpack.c.l.b16 %v3443
    %v3477 = vunpack.c.h.b16 %v3443
    %v3478 = vunpack.c.l.b16 %v3444
    %v3479 = vunpack.c.h.b16 %v3444
    %v3480 = vunpack.c.l.b16 %v3445
    %v3481 = vunpack.c.h.b16 %v3445
    %v3482 = vunpack.c.l.b16 %v3446
    %v3483 = vunpack.c.h.b16 %v3446
    %v3484 = vpack.c.b16 %v3470, %v3468
    %v3485 = vpack.c.b16 %v3471, %v3469
    %v3486 = vpack.c.b16 %v3474, %v3472
    %v3487 = vpack.c.b16 %v3475, %v3473
    %v3488 = vpack.c.b16 %v3478, %v3476
    %v3489 = vpack.c.b16 %v3479, %v3477
    %v3490 = vpack.c.b16 %v3482, %v3480
    %v3491 = vpack.c.b16 %v3483, %v3481
    %v3501 = vsel %vm3349, %v3438, 0
    %3503 = vmatprep.subr.bf16.mxu0 %v3485
    %3504 = vmatpush1.bf16.msra.mxu0 %v3484
    %3505 = vmatprep.subr.bf16.mxu0 %v3487
    %3506 = vmatpush1.bf16.msra.mxu0 %v3486
    %3507 = vmatprep.subr.bf16.mxu0 %v3489
    %3508 = vmatpush1.bf16.msra.mxu0 %v3488
    %3509 = vmatprep.subr.bf16.mxu0 %v3491
    %3510 = vmatpush1.bf16.msra.mxu0 %v3490
    %3511 = vmatprep.subr.bf16.mxu0 0
    %3512 = vmatpush1.bf16.msra.mxu0 0
    %3513 = vmatprep.subr.bf16.mxu0 0
    %3514 = vmatpush1.bf16.msra.mxu0 0
    %3515 = vmatprep.subr.bf16.mxu0 0
    %3516 = vmatpush1.bf16.msra.mxu0 0
    %3517 = vmatprep.subr.bf16.mxu0 0
    %3518 = vmatpush1.bf16.msra.mxu0 0
    %3519 = vmatprep.subr.bf16.mxu0 0
    %3520 = vmatpush1.bf16.msra.mxu0 0
    %3521 = vmatprep.subr.bf16.mxu0 0
    %3522 = vmatpush1.bf16.msra.mxu0 0
    %3523 = vmatprep.subr.bf16.mxu0 0
    %3524 = vmatpush1.bf16.msra.mxu0 0
    %3525 = vmatprep.subr.bf16.mxu0 0
    %3526 = vmatpush1.bf16.msra.mxu0 0
    %3527 = vmatprep.subr.bf16.mxu0 0
    %3528 = vmatpush1.bf16.msra.mxu0 0
    %3529 = vmatprep.subr.bf16.mxu0 0
    %3530 = vmatpush1.bf16.msra.mxu0 0
    %3531 = vmatprep.subr.bf16.mxu0 0
    %3532 = vmatpush1.bf16.msra.mxu0 0
    %3533 = vmatprep.subr.bf16.mxu0 0
    %3534 = vmatpush1.bf16.msra.mxu0 0
    %3535 = vmatprep.mubr.bf16.mxu0 0
    %3536 = vmatmul.mubr.bf16.gmra.mrb[0].mxu0 %v3501
    %v3537 = vpop.f32.mrb[0].mxu0
    %v3538 = vadd.f32 %v3453, %v3537
    %v3539 = vpop.f32.mrb[0].mxu0
    %v3540 = vadd.f32 %v3457, %v3539
    %v3541 = vpop.f32.mrb[0].mxu0
    %v3542 = vpop.f32.mrb[0].mxu0
    %3543 = vdwg.mxu0
    %v3544 = vmax.f32 %v3538, 0.0
    %v3545 = vmax.f32 %v3540, 0.0
    %v3546 = vpack.c.bf16 %v3544, %v3544
    %v3547 = vpack.c.bf16 %v3545, %v3545
    %v3548 = vld [vmem:[#allocation6] sm:$0xff]
    %v3549 = vld [vmem:[#allocation6 + $0x8] sm:$0xff]
    %v3550 = vld [vmem:[#allocation6 + $0x10] sm:$0xff]
    %v3551 = vld [vmem:[#allocation6 + $0x18] sm:$0xff]
    %v3552 = vld [vmem:[#allocation6 + $0x20] sm:$0xff]
    %v3553 = vld [vmem:[#allocation6 + $0x28] sm:$0xff]
    %v3554 = vld [vmem:[#allocation6 + $0x30] sm:$0xff]
    %v3555 = vld [vmem:[#allocation6 + $0x38] sm:$0xff]
    %v3556 = vld [vmem:[#allocation6 + $0x40] sm:$0xff]
    %v3557 = vld [vmem:[#allocation6 + $0x48] sm:$0xff]
    %v3558 = vld [vmem:[#allocation6 + $0x50] sm:$0xff]
    %v3559 = vld [vmem:[#allocation6 + $0x58] sm:$0xff]
    %v3560 = vld [vmem:[#allocation6 + $0x60] sm:$0xff]
    %v3561 = vld [vmem:[#allocation6 + $0x68] sm:$0xff]
    %v3562 = vld [vmem:[#allocation6 + $0x70] sm:$0xff]
    %v3563 = vld [vmem:[#allocation6 + $0x78] sm:$0xff]
    %v3564 = vld [vmem:[#allocation6 + $0x80] sm:$0xff]
    %v3565 = vld [vmem:[#allocation6 + $0x88] sm:$0xff]
    %v3566 = vld [vmem:[#allocation6 + $0x90] sm:$0xff]
    %v3567 = vld [vmem:[#allocation6 + $0x98] sm:$0xff]
    %v3568 = vld [vmem:[#allocation6 + $0xa0] sm:$0xff]
    %v3569 = vld [vmem:[#allocation6 + $0xa8] sm:$0xff]
    %v3570 = vld [vmem:[#allocation6 + $0xb0] sm:$0xff]
    %v3571 = vld [vmem:[#allocation6 + $0xb8] sm:$0xff]
    %v3572 = vld [vmem:[#allocation6 + $0xc0] sm:$0xff]
    %v3573 = vld [vmem:[#allocation6 + $0xc8] sm:$0xff]
    %v3574 = vld [vmem:[#allocation6 + $0xd0] sm:$0xff]
    %v3575 = vld [vmem:[#allocation6 + $0xd8] sm:$0xff]
    %v3576 = vld [vmem:[#allocation6 + $0xe0] sm:$0xff]
    %v3577 = vld [vmem:[#allocation6 + $0xe8] sm:$0xff]
    %v3578 = vld [vmem:[#allocation6 + $0xf0] sm:$0xff]
    %v3579 = vld [vmem:[#allocation6 + $0xf8] sm:$0xff]
    %s3580 = scalar_lea.vmem [#allocation7], 5
    %v3581 = vld [vmem:[%s3580] ss:$8 sm:$0x3]
    %v3583 = vlaneseq
    %v3584 = vshrl.u32 %v3583, 7
    %v3585 = vsub.s32 0, %v3584
    %v3586 = vrot.slane %v3581, %v3585
    %v3587 = vlaneseq
    %v3588 = vshrl.u32 %v3587, 7
    %v3589 = vsub.s32 1, %v3588
    %v3590 = vrot.slane %v3581, %v3589
    %v3625 = vunpack.c.l.b16 %v3548
    %v3626 = vunpack.c.h.b16 %v3548
    %v3627 = vunpack.c.l.b16 %v3549
    %v3628 = vunpack.c.h.b16 %v3549
    %v3629 = vunpack.c.l.b16 %v3550
    %v3630 = vunpack.c.h.b16 %v3550
    %v3631 = vunpack.c.l.b16 %v3551
    %v3632 = vunpack.c.h.b16 %v3551
    %v3633 = vunpack.c.l.b16 %v3552
    %v3634 = vunpack.c.h.b16 %v3552
    %v3635 = vunpack.c.l.b16 %v3553
    %v3636 = vunpack.c.h.b16 %v3553
    %v3637 = vunpack.c.l.b16 %v3554
    %v3638 = vunpack.c.h.b16 %v3554
    %v3639 = vunpack.c.l.b16 %v3555
    %v3640 = vunpack.c.h.b16 %v3555
    %v3641 = vunpack.c.l.b16 %v3556
    %v3642 = vunpack.c.h.b16 %v3556
    %v3643 = vunpack.c.l.b16 %v3557
    %v3644 = vunpack.c.h.b16 %v3557
    %v3645 = vunpack.c.l.b16 %v3558
    %v3646 = vunpack.c.h.b16 %v3558
    %v3647 = vunpack.c.l.b16 %v3559
    %v3648 = vunpack.c.h.b16 %v3559
    %v3649 = vunpack.c.l.b16 %v3560
    %v3650 = vunpack.c.h.b16 %v3560
    %v3651 = vunpack.c.l.b16 %v3561
    %v3652 = vunpack.c.h.b16 %v3561
    %v3653 = vunpack.c.l.b16 %v3562
    %v3654 = vunpack.c.h.b16 %v3562
    %v3655 = vunpack.c.l.b16 %v3563
    %v3656 = vunpack.c.h.b16 %v3563
    %v3657 = vunpack.c.l.b16 %v3564
    %v3658 = vunpack.c.h.b16 %v3564
    %v3659 = vunpack.c.l.b16 %v3565
    %v3660 = vunpack.c.h.b16 %v3565
    %v3661 = vunpack.c.l.b16 %v3566
    %v3662 = vunpack.c.h.b16 %v3566
    %v3663 = vunpack.c.l.b16 %v3567
    %v3664 = vunpack.c.h.b16 %v3567
    %v3665 = vunpack.c.l.b16 %v3568
    %v3666 = vunpack.c.h.b16 %v3568
    %v3667 = vunpack.c.l.b16 %v3569
    %v3668 = vunpack.c.h.b16 %v3569
    %v3669 = vunpack.c.l.b16 %v3570
    %v3670 = vunpack.c.h.b16 %v3570
    %v3671 = vunpack.c.l.b16 %v3571
    %v3672 = vunpack.c.h.b16 %v3571
    %v3673 = vunpack.c.l.b16 %v3572
    %v3674 = vunpack.c.h.b16 %v3572
    %v3675 = vunpack.c.l.b16 %v3573
    %v3676 = vunpack.c.h.b16 %v3573
    %v3677 = vunpack.c.l.b16 %v3574
    %v3678 = vunpack.c.h.b16 %v3574
    %v3679 = vunpack.c.l.b16 %v3575
    %v3680 = vunpack.c.h.b16 %v3575
    %v3681 = vunpack.c.l.b16 %v3576
    %v3682 = vunpack.c.h.b16 %v3576
    %v3683 = vunpack.c.l.b16 %v3577
    %v3684 = vunpack.c.h.b16 %v3577
    %v3685 = vunpack.c.l.b16 %v3578
    %v3686 = vunpack.c.h.b16 %v3578
    %v3687 = vunpack.c.l.b16 %v3579
    %v3688 = vunpack.c.h.b16 %v3579
    %v3689 = vpack.c.b16 %v3627, %v3625
    %v3690 = vpack.c.b16 %v3628, %v3626
    %v3691 = vpack.c.b16 %v3631, %v3629
    %v3692 = vpack.c.b16 %v3632, %v3630
    %v3693 = vpack.c.b16 %v3635, %v3633
    %v3694 = vpack.c.b16 %v3636, %v3634
    %v3695 = vpack.c.b16 %v3639, %v3637
    %v3696 = vpack.c.b16 %v3640, %v3638
    %v3697 = vpack.c.b16 %v3643, %v3641
    %v3698 = vpack.c.b16 %v3644, %v3642
    %v3699 = vpack.c.b16 %v3647, %v3645
    %v3700 = vpack.c.b16 %v3648, %v3646
    %v3701 = vpack.c.b16 %v3651, %v3649
    %v3702 = vpack.c.b16 %v3652, %v3650
    %v3703 = vpack.c.b16 %v3655, %v3653
    %v3704 = vpack.c.b16 %v3656, %v3654
    %v3705 = vpack.c.b16 %v3659, %v3657
    %v3706 = vpack.c.b16 %v3660, %v3658
    %v3707 = vpack.c.b16 %v3663, %v3661
    %v3708 = vpack.c.b16 %v3664, %v3662
    %v3709 = vpack.c.b16 %v3667, %v3665
    %v3710 = vpack.c.b16 %v3668, %v3666
    %v3711 = vpack.c.b16 %v3671, %v3669
    %v3712 = vpack.c.b16 %v3672, %v3670
    %v3713 = vpack.c.b16 %v3675, %v3673
    %v3714 = vpack.c.b16 %v3676, %v3674
    %v3715 = vpack.c.b16 %v3679, %v3677
    %v3716 = vpack.c.b16 %v3680, %v3678
    %v3717 = vpack.c.b16 %v3683, %v3681
    %v3718 = vpack.c.b16 %v3684, %v3682
    %v3719 = vpack.c.b16 %v3687, %v3685
    %v3720 = vpack.c.b16 %v3688, %v3686
    %3753 = vmatprep.subr.bf16.mxu0 %v3690
    %3754 = vmatpush1.bf16.msra.mxu0 %v3689
    %3755 = vmatprep.subr.bf16.mxu0 %v3692
    %3756 = vmatpush1.bf16.msra.mxu0 %v3691
    %3757 = vmatprep.subr.bf16.mxu0 %v3694
    %3758 = vmatpush1.bf16.msra.mxu0 %v3693
    %3759 = vmatprep.subr.bf16.mxu0 %v3696
    %3760 = vmatpush1.bf16.msra.mxu0 %v3695
    %3761 = vmatprep.subr.bf16.mxu0 %v3698
    %3762 = vmatpush1.bf16.msra.mxu0 %v3697
    %3763 = vmatprep.subr.bf16.mxu0 %v3700
    %3764 = vmatpush1.bf16.msra.mxu0 %v3699
    %3765 = vmatprep.subr.bf16.mxu0 %v3702
    %3766 = vmatpush1.bf16.msra.mxu0 %v3701
    %3767 = vmatprep.subr.bf16.mxu0 %v3704
    %3768 = vmatpush1.bf16.msra.mxu0 %v3703
    %3769 = vmatprep.subr.bf16.mxu0 %v3706
    %3770 = vmatpush1.bf16.msra.mxu0 %v3705
    %3771 = vmatprep.subr.bf16.mxu0 %v3708
    %3772 = vmatpush1.bf16.msra.mxu0 %v3707
    %3773 = vmatprep.subr.bf16.mxu0 %v3710
    %3774 = vmatpush1.bf16.msra.mxu0 %v3709
    %3775 = vmatprep.subr.bf16.mxu0 %v3712
    %3776 = vmatpush1.bf16.msra.mxu0 %v3711
    %3777 = vmatprep.subr.bf16.mxu0 %v3714
    %3778 = vmatpush1.bf16.msra.mxu0 %v3713
    %3779 = vmatprep.subr.bf16.mxu0 %v3716
    %3780 = vmatpush1.bf16.msra.mxu0 %v3715
    %3781 = vmatprep.subr.bf16.mxu0 %v3718
    %3782 = vmatpush1.bf16.msra.mxu0 %v3717
    %3783 = vmatprep.subr.bf16.mxu0 %v3720
    %3784 = vmatpush1.bf16.msra.mxu0 %v3719
    %3785 = vmatprep.mubr.bf16.mxu0 %v3547
    %3786 = vmatmul.mubr.bf16.gmra.mrb[0].mxu0 %v3546
    %v3787 = vpop.f32.mrb[0].mxu0
    %v3788 = vadd.f32 %v3586, %v3787
    %v3789 = vpop.f32.mrb[0].mxu0
    %v3790 = vadd.f32 %v3590, %v3789
    %v3791 = vpop.f32.mrb[0].mxu0
    %v3792 = vpop.f32.mrb[0].mxu0
    %3793 = vdwg.mxu0
    %v3794 = vmax.f32 %v3788, 0.0
    %v3795 = vpack.c.bf16 %v3794, %v3794
    %v3796 = vld [vmem:[%s7] sm:$0xf]
    %v3797 = vld [vmem:[%s7 + $0x4] sm:$0xf]
    %v3798 = vld [vmem:[%s7 + $0x8] sm:$0xf]
    %v3799 = vld [vmem:[%s7 + $0xc] sm:$0xf]
    %v3800 = vld [vmem:[%s7 + $0x10] sm:$0xf]
    %v3801 = vld [vmem:[%s7 + $0x14] sm:$0xf]
    %v3802 = vld [vmem:[%s7 + $0x18] sm:$0xf]
    %v3803 = vld [vmem:[%s7 + $0x1c] sm:$0xf]
    %v3804 = vld [vmem:[%s7 + $0x20] sm:$0xf]
    %v3805 = vld [vmem:[%s7 + $0x24] sm:$0xf]
    %v3806 = vld [vmem:[%s7 + $0x28] sm:$0xf]
    %v3807 = vld [vmem:[%s7 + $0x2c] sm:$0xf]
    %v3808 = vld [vmem:[%s7 + $0x30] sm:$0xf]
    %v3809 = vld [vmem:[%s7 + $0x34] sm:$0xf]
    %v3810 = vld [vmem:[%s7 + $0x38] sm:$0xf]
    %v3811 = vld [vmem:[%s7 + $0x3c] sm:$0xf]
    %v3812 = vld [vmem:[#allocation7 + $0x6] ss:$0 sm:$0xff]
    %v3829 = vunpack.c.l.b16 %v3796
    %v3830 = vunpack.c.l.b16 %v3797
    %v3831 = vunpack.c.l.b16 %v3798
    %v3832 = vunpack.c.l.b16 %v3799
    %v3833 = vunpack.c.l.b16 %v3800
    %v3834 = vunpack.c.l.b16 %v3801
    %v3835 = vunpack.c.l.b16 %v3802
    %v3836 = vunpack.c.l.b16 %v3803
    %v3837 = vunpack.c.l.b16 %v3804
    %v3838 = vunpack.c.l.b16 %v3805
    %v3839 = vunpack.c.l.b16 %v3806
    %v3840 = vunpack.c.l.b16 %v3807
    %v3841 = vunpack.c.l.b16 %v3808
    %v3842 = vunpack.c.l.b16 %v3809
    %v3843 = vunpack.c.l.b16 %v3810
    %v3844 = vunpack.c.l.b16 %v3811
    %v3845 = vpack.c.b16 %v3830, %v3829
    %v3846 = vpack.c.b16 %v3832, %v3831
    %v3847 = vpack.c.b16 %v3834, %v3833
    %v3848 = vpack.c.b16 %v3836, %v3835
    %v3849 = vpack.c.b16 %v3838, %v3837
    %v3850 = vpack.c.b16 %v3840, %v3839
    %v3851 = vpack.c.b16 %v3842, %v3841
    %v3852 = vpack.c.b16 %v3844, %v3843
    %3861 = vmatprep.subr.bf16.mxu0 0
    %3862 = vmatpush1.bf16.msra.mxu0 %v3845
    %3863 = vmatprep.subr.bf16.mxu0 0
    %3864 = vmatpush1.bf16.msra.mxu0 %v3846
    %3865 = vmatprep.subr.bf16.mxu0 0
    %3866 = vmatpush1.bf16.msra.mxu0 %v3847
    %3867 = vmatprep.subr.bf16.mxu0 0
    %3868 = vmatpush1.bf16.msra.mxu0 %v3848
    %3869 = vmatprep.subr.bf16.mxu0 0
    %3870 = vmatpush1.bf16.msra.mxu0 %v3849
    %3871 = vmatprep.subr.bf16.mxu0 0
    %3872 = vmatpush1.bf16.msra.mxu0 %v3850
    %3873 = vmatprep.subr.bf16.mxu0 0
    %3874 = vmatpush1.bf16.msra.mxu0 %v3851
    %3875 = vmatprep.subr.bf16.mxu0 0
    %3876 = vmatpush1.bf16.msra.mxu0 %v3852
    %3877 = vmatprep.subr.bf16.mxu0 0
    %3878 = vmatpush1.bf16.msra.mxu0 0
    %3879 = vmatprep.subr.bf16.mxu0 0
    %3880 = vmatpush1.bf16.msra.mxu0 0
    %3881 = vmatprep.subr.bf16.mxu0 0
    %3882 = vmatpush1.bf16.msra.mxu0 0
    %3883 = vmatprep.subr.bf16.mxu0 0
    %3884 = vmatpush1.bf16.msra.mxu0 0
    %3885 = vmatprep.subr.bf16.mxu0 0
    %3886 = vmatpush1.bf16.msra.mxu0 0
    %3887 = vmatprep.subr.bf16.mxu0 0
    %3888 = vmatpush1.bf16.msra.mxu0 0
    %3889 = vmatprep.subr.bf16.mxu0 0
    %3890 = vmatpush1.bf16.msra.mxu0 0
    %3891 = vmatprep.subr.bf16.mxu0 0
    %3892 = vmatpush1.bf16.msra.mxu0 0
    %3893 = vmatprep.mubr.bf16.mxu0 0
    %3894 = vmatmul.mubr.bf16.gmra.mrb[0].mxu0 %v3795
    %v3895 = vpop.f32.mrb[0].mxu0
    %v3896 = vadd.f32 %v3812, %v3895
    %v3897 = vpop.f32.mrb[0].mxu0
    %v3898 = vpop.f32.mrb[0].mxu0
    %v3899 = vpop.f32.mrb[0].mxu0
    %3900 = vdwg.mxu0
    %vm3901 = vcmask 212096
    %v3902 = vsel %vm3901, %v3896, -inf
    %3903 = vmax.xlane.f32.xlu0 %v3902
    %v3904 = vpop.xlane.xlu0 %3903
    %v3905 = vsub.f32 %v3896, %v3904
    %v3906 = vmul.f32 %v3905, 1.442695
    %v3907 = vpow.pop %v3906
    %3909 = vrot.lane.b32.xlu0 %v3907, 112
    %v3910 = vpop.permute.xlu0 %3909
    %vm3912 = vcmask 80896
    %v3913 = vsel %vm3912, %v3910, 0.0
    %3914 = vadd.xlane.f32.xlu0 %v3913
    %v3915 = vpop.xlane.xlu0 %3914
    %v3916 = vlog2.pop %v3915
    %v3917 = vmul.f32 %v3916, 0.6931472
    %v3918 = vsub.f32 %v3905, %v3917
    %3920 = vrot.lane.b32.xlu0 %v3918, 112
    %v3921 = vpop.permute.xlu0 %3920
    %v3923 = vsel %vm3912, %v3921, 0.0
    %v3924 = vsel %vm3912, %v3896, -inf
    %3925 = vmax.xlane.f32.xlu0 %v3924
    %v3926 = vpop.xlane.xlu0 %3925
    %v3927 = vsub.f32 %v3896, %v3926
    %v3928 = vmul.f32 %v3927, 1.442695
    %v3929 = vpow.pop %v3928
    %v3930 = vsel %vm3912, %v3929, 0.0
    %3931 = vadd.xlane.f32.xlu0 %v3930
    %v3932 = vpop.xlane.xlu0 %3931
    %v3933 = vlog2.pop %v3932
    %v3934 = vmul.f32 %v3933, 0.6931472
    %v3935 = vsub.f32 %v3927, %v3934
    %v3936 = vsel %vm3912, %v3935, 0.0
    %v3937 = vsel %vm3912, %v3790, -inf
    %3938 = vmax.xlane.f32.xlu0 %v3937
    %v3939 = vpop.xlane.xlu0 %3938
    %v3940 = vsub.f32 %v3790, %v3939
    %v3941 = vmul.f32 %v3940, 1.442695
    %v3942 = vpow.pop %v3941
    %v3943 = vsel %vm3912, %v3942, 0.0
    %3944 = vadd.xlane.f32.xlu0 %v3943
    %v3945 = vpop.xlane.xlu0 %3944
    %v3946 = vlog2.pop %v3945
    %v3947 = vmul.f32 %v3946, 0.6931472
    %v3948 = vsub.f32 %v3940, %v3947
    %v3949 = vsel %vm3912, %v3948, 0.0
    %v3950 = vsel %vm3901, %v3790, -inf
    %3951 = vmax.xlane.f32.xlu0 %v3950
    %v3952 = vpop.xlane.xlu0 %3951
    %v3953 = vsub.f32 %v3790, %v3952
    %v3954 = vmul.f32 %v3953, 1.442695
    %v3955 = vpow.pop %v3954
    %3957 = vrot.lane.b32.xlu0 %v3955, 112
    %v3958 = vpop.permute.xlu0 %3957
    %v3960 = vsel %vm3912, %v3958, 0.0
    %3961 = vadd.xlane.f32.xlu0 %v3960
    %v3962 = vpop.xlane.xlu0 %3961
    %v3963 = vlog2.pop %v3962
    %v3964 = vmul.f32 %v3963, 0.6931472
    %v3965 = vsub.f32 %v3953, %v3964
    %3967 = vrot.lane.b32.xlu0 %v3965, 112
    %v3968 = vpop.permute.xlu0 %3967
    %v3970 = vsel %vm3912, %v3968, 0.0
    %vm3971 = vcmask 7168
    %v3972 = vsel %vm3971, %v3352, 0.0
    %3974 = vrot.lane.b32.xlu0 %v3936, 16
    %v3975 = vpop.permute.xlu0 %3974
    %3978 = vrot.lane.b32.xlu0 %v3949, 32
    %v3979 = vpop.permute.xlu0 %3978
    %3982 = vrot.lane.b32.xlu0 %v3970, 48
    %v3983 = vpop.permute.xlu0 %3982
    %3986 = vrot.lane.b32.xlu0 %v3972, 64
    %v3987 = vpop.permute.xlu0 %3986
    %vm3989 = vcmask 130048
    %v3990 = vsel %vm3989, %v3923, %v3975
    %vm3991 = vcmask 261120
    %v3992 = vsel %vm3991, %v3990, %v3979
    %vm3993 = vcmask 392192
    %v3994 = vsel %vm3993, %v3992, %v3983
    %v3995 = vsel %vm3349, %v3994, %v3987
    %3996 = vst [vmem:[%s9] sm:$0xff] %v3995
    // Predicated region
    $region54: #{net_forward.1} parent=1 // pred_check
      _
    $region55: #{net_forward.1} parent=1 // pred_check_branch
      %3998 = sbr.rel (0) target = $region57
    $region56: #{net_forward.1} parent=1 // pred_region
      _
    $region57: #{net_forward.1} parent=1 // pred_fallthru
      _
    // Predicated region
    $region58: #{net_forward.1} parent=1 // pred_check
      _
    $region59: #{net_forward.1} parent=1 // pred_check_branch
      %4000 = sbr.rel (0) target = $region61
    $region60: #{net_forward.1} parent=1 // pred_region
      _
    $region61: #{net_forward.1} parent=1 // pred_fallthru
      _
    %4001 = vsyncpa [#allocation3], 1
    %4002 = vsyncpa [#allocation5], 1
    %4003 = vsyncpa [#allocation8], 1

</llo_original>
